<compile_context>
chip_gen: v6e
topology: v6e:2x2x1
jax: 0.10.0
libtpu: 0.0.40
codegen_flags: <defaults>
</compile_context>

<pallas_src>
import functools

import jax
import jax.numpy as jnp
from jax import lax
from jax.experimental import pallas as pl
from jax.experimental.pallas import tpu as pltpu

_LANE = 128
_SUBLANE = 8


def _round_up(n, m):
    return (n + m - 1) // m * m


def _rand_bits_u32(shape, salt_u32):
    """Counter-based hash PRNG (per-element, deterministic given salt).

    Pure jnp/lax integer ops so it lowers on Mosaic *and* in interpret mode
    (unlike pltpu.prng_seed / prng_random_bits).
    """
    rows = lax.broadcasted_iota(jnp.uint32, shape, 0)
    cols = lax.broadcasted_iota(jnp.uint32, shape, 1)
    x = rows * jnp.uint32(0x9E3779B9) + cols * jnp.uint32(0x85EBCA6B) + salt_u32
    x = (x ^ (x >> jnp.uint32(16))) * jnp.uint32(0x7FEB352D)
    x = (x ^ (x >> jnp.uint32(15))) * jnp.uint32(0x846CA68B)
    x = x ^ (x >> jnp.uint32(16))
    return x


def _dropout_relu(h, p, seed, layer, tile_u32):
    """relu(inverted_dropout(h, p)) fused into a single select.

    Integer-threshold keep test (no float conversion of the random bits).
    """
    if p <= 0.0:
        return jnp.maximum(h, 0.0)
    # Mix user seed + layer statically (exact Python ints), tile index at runtime,
    # so every (tile, layer) pair gets an independent deterministic stream.
    base = ((int(seed) * 0x9E3779B1) ^ (layer * 0x85EBCA77)) & 0xFFFFFFFF
    salt = jnp.uint32(base) + tile_u32 * jnp.uint32(0xC2B2AE3D)
    bits = _rand_bits_u32(h.shape, salt)
    r31 = (bits >> jnp.uint32(1)).astype(jnp.int32)           # uniform in [0, 2^31)
    thresh = jnp.int32(min(int(p * (1 << 31)), (1 << 31) - 1))
    keep = (r31 >= thresh) & (h > 0.0)
    scale = jnp.float32(1.0 / (1.0 - p))
    return jnp.where(keep, h * scale, jnp.float32(0.0))


def densenet_kernel(x_ref, w1_ref, b1_ref, w2_ref, b2_ref, w3_ref, b3_ref,
                    o_ref, *, p1, p2, seed):
    tile = pl.program_id(0).astype(jnp.uint32)

    # layer 1: relu(dropout(x @ W1 + b1)); bf16 inputs, f32 MXU accumulation
    h = jnp.dot(x_ref[...], w1_ref[...],
                preferred_element_type=jnp.float32) + b1_ref[...]
    h = _dropout_relu(h, p1, seed, 1, tile)

    # layer 2: relu(dropout(h @ W2 + b2))
    h = jnp.dot(h.astype(w2_ref.dtype), w2_ref[...],
                preferred_element_type=jnp.float32) + b2_ref[...]
    h = _dropout_relu(h, p2, seed, 2, tile)

    # layer 3: logits into a lane-dense (tb, 128) slab (cols 10..127 are zero
    # because W3/b3 were zero-padded on the host).
    o_ref[...] = (jnp.dot(h.astype(w3_ref.dtype), w3_ref[...],
                          preferred_element_type=jnp.float32)
                  + b3_ref[...]).astype(o_ref.dtype)


def densenet_forward(x, params, dropout_rates, seed, *, batch_tile=256):
    w1, b1, w2, b2, w3, b3 = params
    B, D = x.shape
    h0, h1 = w1.shape[1], w2.shape[1]
    n_out = w3.shape[1]

    # ---- host-side layout prep: padding + bf16 casts -----------------------
    Dp = _round_up(D, _LANE)        # 784 -> 896 (fully lane-dense LHS)
    Np = _round_up(n_out, _LANE)    # 10  -> 128 (lane-dense output slab)
    tb = _round_up(max(_SUBLANE, min(int(batch_tile), _round_up(B, _SUBLANE))),
                   _SUBLANE)
    Bp = _round_up(B, tb)

    bf = jnp.bfloat16
    xp = jnp.pad(x, ((0, Bp - B), (0, Dp - D))).astype(bf)
    w1p = jnp.pad(w1, ((0, Dp - D), (0, 0))).astype(bf)
    w2p = w2.astype(bf)
    w3p = jnp.pad(w3, ((0, 0), (0, Np - n_out))).astype(bf)
    b1p = b1.reshape(1, h0).astype(jnp.float32)
    b2p = b2.reshape(1, h1).astype(jnp.float32)
    b3p = jnp.pad(b3.reshape(1, n_out), ((0, 0), (0, Np - n_out))
                  ).astype(jnp.float32)

    kern = functools.partial(densenet_kernel,
                             p1=float(dropout_rates[0]),
                             p2=float(dropout_rates[1]),
                             seed=int(seed))

    def resident(arr):
        # Constant block index: the (tiny, ~0.3 MiB) weights/biases are DMA'd
        # once and stay resident in VMEM for the whole batch grid.  Do NOT
        # change this to a per-tile index_map or pl.ANY.
        return pl.BlockSpec(arr.shape, lambda i: (0, 0))

    out = pl.pallas_call(
        kern,
        out_shape=jax.ShapeDtypeStruct((Bp, Np), jnp.float32),
        grid=(Bp // tb,),
        in_specs=[
            pl.BlockSpec((tb, Dp), lambda i: (i, 0)),   # streaming x tile
            resident(w1p), resident(b1p),
            resident(w2p), resident(b2p),
            resident(w3p), resident(b3p),
        ],
        out_specs=pl.BlockSpec((tb, Np), lambda i: (i, 0)),
        compiler_params=pltpu.CompilerParams(
            # tiles are fully independent (PRNG re-derived per tile), so this
            # lets v7x shard the batch grid across both TensorCores.
            dimension_semantics=("parallel",)),
    )(xp, w1p, b1p, w2p, b2p, w3p, b3p)

    return out[:B, :n_out].astype(x.dtype)


def init_params(key, hidden_sizes, dtype=jnp.float32):
    """Deterministic init matching nn.Linear's default (uniform +-1/sqrt(fan_in))."""
    dims = [784, hidden_sizes[0], hidden_sizes[1], 10]
    params = []
    for li in range(3):
        fan_in, fan_out = dims[li], dims[li + 1]
        key, kw, kb = jax.random.split(key, 3)
        bound = 1.0 / (fan_in ** 0.5)
        w = jax.random.uniform(kw, (fan_in, fan_out), dtype,
                               minval=-bound, maxval=bound)
        b = jax.random.uniform(kb, (1, fan_out), dtype,
                               minval=-bound, maxval=bound)
        params += [w, b]
    return tuple(params)


def densenet_reference(x, params):
    """Pure-JAX reference (eval mode) with the same bf16-input / f32-accum
    numerics as the kernel."""
    w1, b1, w2, b2, w3, b3 = params
    bf = jnp.bfloat16
    h = jnp.maximum(jnp.dot(x.astype(bf), w1.astype(bf),
                            preferred_element_type=jnp.float32) + b1, 0.0)
    h = jnp.maximum(jnp.dot(h.astype(bf), w2.astype(bf),
                            preferred_element_type=jnp.float32) + b2, 0.0)
    return jnp.dot(h.astype(bf), w3.astype(bf),
                   preferred_element_type=jnp.float32) + b3


if __name__ == "__main__":
    key = jax.random.PRNGKey(0)
    hidden_sizes = (128, 64)
    dropout_rates = (0.25, 0.25)
    batch = 512
    batch_tile = 256   # 256-row tiles: multiple of 8 sublanes, fills MXU rows

    kx, kp = jax.random.split(key)
    x = jax.random.normal(kx, (batch, 784), jnp.float32)
    params = init_params(kp, hidden_sizes)

    # Training-mode forward (dropout active, deterministic in-kernel PRNG).
    out_train = densenet_forward(x, params, dropout_rates, seed=1234,
                                 batch_tile=batch_tile)
    out_train = jax.block_until_ready(out_train)
    assert out_train.shape == (batch, 10)

    # Eval-mode (p = 0) must match the pure-JAX reference.
    out_eval = densenet_forward(x, params, (0.0, 0.0), seed=0,
                                batch_tile=batch_tile)
    out_eval = jax.block_until_ready(out_eval)
    ref = densenet_reference(x, params)
    assert jnp.allclose(out_eval, ref, atol=2e-3, rtol=2e-3), "mismatch vs reference"

    # Dropout must actually perturb the output in training mode.
    assert not jnp.allclose(out_train, out_eval, atol=1e-3), "dropout inactive"

    print("KERNEL_OK")
</pallas_src>

<mosaic_0001>
module attributes {stable_mosaic.version = 11 : i64} {
  func.func @densenet_kernel(%arg0: i32, %arg1: memref<256x896xbf16, #tpu.memory_space<vmem>>, %arg2: memref<896x128xbf16, #tpu.memory_space<vmem>>, %arg3: memref<1x128xf32, #tpu.memory_space<vmem>>, %arg4: memref<128x64xbf16, #tpu.memory_space<vmem>>, %arg5: memref<1x64xf32, #tpu.memory_space<vmem>>, %arg6: memref<64x128xbf16, #tpu.memory_space<vmem>>, %arg7: memref<1x128xf32, #tpu.memory_space<vmem>>, %arg8: memref<256x128xf32, #tpu.memory_space<vmem>>) attributes {dimension_semantics = [#tpu.dimension_semantics<parallel>], iteration_bounds = array<i64: 2>, scalar_prefetch = 0 : i64, scratch_operands = 0 : i64, tpu.core_type = #tpu.core_type<tc>, window_params = [{transform_indices = @transform_0, window_bounds = array<i64: 256, 896>}, {pipeline_mode = #tpu.pipeline_mode<synchronous>, transform_indices = @transform_1, window_bounds = array<i64: 896, 128>}, {pipeline_mode = #tpu.pipeline_mode<synchronous>, transform_indices = @transform_2, window_bounds = array<i64: 1, 128>}, {pipeline_mode = #tpu.pipeline_mode<synchronous>, transform_indices = @transform_3, window_bounds = array<i64: 128, 64>}, {pipeline_mode = #tpu.pipeline_mode<synchronous>, transform_indices = @transform_4, window_bounds = array<i64: 1, 64>}, {pipeline_mode = #tpu.pipeline_mode<synchronous>, transform_indices = @transform_5, window_bounds = array<i64: 64, 128>}, {pipeline_mode = #tpu.pipeline_mode<synchronous>, transform_indices = @transform_6, window_bounds = array<i64: 1, 128>}, {transform_indices = @transform_7, window_bounds = array<i64: 256, 128>}]} {
    %c0 = arith.constant 0 : index
    %c0_0 = arith.constant 0 : index
    %0 = vector.load %arg1[%c0, %c0_0] : memref<256x896xbf16, #tpu.memory_space<vmem>>, vector<256x896xbf16>
    %c0_1 = arith.constant 0 : index
    %c0_2 = arith.constant 0 : index
    %1 = vector.load %arg2[%c0_1, %c0_2] : memref<896x128xbf16, #tpu.memory_space<vmem>>, vector<896x128xbf16>
    %cst = arith.constant dense<0.000000e+00> : vector<256x128xf32>
    %2 = tpu.matmul %0, %1, %cst {dimension_numbers = #tpu.dot_dimension_numbers<[1], [0], [0], [1], [0, 0, 1, 1], [], []>} : vector<256x896xbf16>, vector<896x128xbf16>, vector<256x128xf32> -> vector<256x128xf32>
    %c0_3 = arith.constant 0 : index
    %c0_4 = arith.constant 0 : index
    %3 = vector.load %arg3[%c0_3, %c0_4] : memref<1x128xf32, #tpu.memory_space<vmem>>, vector<1x128xf32>
    %4 = vector.broadcast %3 : vector<1x128xf32> to vector<256x128xf32>
    %5 = arith.addf %2, %4 : vector<256x128xf32>
    %c-1028477379_i32 = arith.constant -1028477379 : i32
    %6 = arith.muli %arg0, %c-1028477379_i32 : i32
    %c579034437_i32 = arith.constant 579034437 : i32
    %7 = arith.addi %c579034437_i32, %6 : i32
    %8 = tpu.iota {dimensions = array<i32: 0>} : vector<256x128xi32>
    %9 = tpu.iota {dimensions = array<i32: 1>} : vector<256x128xi32>
    %c-1640531527_i32 = arith.constant -1640531527 : i32
    %10 = vector.broadcast %c-1640531527_i32 : i32 to vector<256x128xi32>
    %11 = arith.muli %8, %10 : vector<256x128xi32>
    %c-2048144789_i32 = arith.constant -2048144789 : i32
    %12 = vector.broadcast %c-2048144789_i32 : i32 to vector<256x128xi32>
    %13 = arith.muli %9, %12 : vector<256x128xi32>
    %14 = arith.addi %11, %13 : vector<256x128xi32>
    %15 = vector.broadcast %7 : i32 to vector<256x128xi32>
    %16 = arith.addi %14, %15 : vector<256x128xi32>
    %c16_i32 = arith.constant 16 : i32
    %17 = vector.broadcast %c16_i32 : i32 to vector<256x128xi32>
    %18 = arith.shrui %16, %17 : vector<256x128xi32>
    %19 = arith.xori %16, %18 : vector<256x128xi32>
    %c2146121005_i32 = arith.constant 2146121005 : i32
    %20 = vector.broadcast %c2146121005_i32 : i32 to vector<256x128xi32>
    %21 = arith.muli %19, %20 : vector<256x128xi32>
    %c15_i32 = arith.constant 15 : i32
    %22 = vector.broadcast %c15_i32 : i32 to vector<256x128xi32>
    %23 = arith.shrui %21, %22 : vector<256x128xi32>
    %24 = arith.xori %21, %23 : vector<256x128xi32>
    %c-2073254261_i32 = arith.constant -2073254261 : i32
    %25 = vector.broadcast %c-2073254261_i32 : i32 to vector<256x128xi32>
    %26 = arith.muli %24, %25 : vector<256x128xi32>
    %c16_i32_5 = arith.constant 16 : i32
    %27 = vector.broadcast %c16_i32_5 : i32 to vector<256x128xi32>
    %28 = arith.shrui %26, %27 : vector<256x128xi32>
    %29 = arith.xori %26, %28 : vector<256x128xi32>
    %c1_i32 = arith.constant 1 : i32
    %30 = vector.broadcast %c1_i32 : i32 to vector<256x128xi32>
    %31 = arith.shrui %29, %30 : vector<256x128xi32>
    %c536870912_i32 = arith.constant 536870912 : i32
    %32 = vector.broadcast %c536870912_i32 : i32 to vector<256x128xi32>
    %33 = arith.cmpi sge, %31, %32 : vector<256x128xi32>
    %cst_6 = arith.constant 0.000000e+00 : f32
    %34 = vector.broadcast %cst_6 : f32 to vector<256x128xf32>
    %35 = arith.cmpf ogt, %5, %34 : vector<256x128xf32>
    %36 = arith.andi %33, %35 : vector<256x128xi1>
    %cst_7 = arith.constant 1.33333337 : f32
    %37 = vector.broadcast %cst_7 : f32 to vector<256x128xf32>
    %38 = arith.mulf %5, %37 : vector<256x128xf32>
    %cst_8 = arith.constant 0.000000e+00 : f32
    %39 = vector.broadcast %cst_8 : f32 to vector<256x128xf32>
    %40 = arith.select %36, %38, %39 : vector<256x128xi1>, vector<256x128xf32>
    %41 = arith.truncf %40 : vector<256x128xf32> to vector<256x128xbf16>
    %c0_9 = arith.constant 0 : index
    %c0_10 = arith.constant 0 : index
    %42 = vector.load %arg4[%c0_9, %c0_10] : memref<128x64xbf16, #tpu.memory_space<vmem>>, vector<128x64xbf16>
    %cst_11 = arith.constant dense<0.000000e+00> : vector<256x64xf32>
    %43 = tpu.matmul %41, %42, %cst_11 {dimension_numbers = #tpu.dot_dimension_numbers<[1], [0], [0], [1], [0, 0, 1, 1], [], []>} : vector<256x128xbf16>, vector<128x64xbf16>, vector<256x64xf32> -> vector<256x64xf32>
    %c0_12 = arith.constant 0 : index
    %c0_13 = arith.constant 0 : index
    %44 = vector.load %arg5[%c0_12, %c0_13] : memref<1x64xf32, #tpu.memory_space<vmem>>, vector<1x64xf32>
    %45 = vector.broadcast %44 : vector<1x64xf32> to vector<256x64xf32>
    %46 = arith.addf %43, %45 : vector<256x64xf32>
    %c-1028477379_i32_14 = arith.constant -1028477379 : i32
    %47 = arith.muli %arg0, %c-1028477379_i32_14 : i32
    %c-1396767780_i32 = arith.constant -1396767780 : i32
    %48 = arith.addi %c-1396767780_i32, %47 : i32
    %49 = tpu.iota {dimensions = array<i32: 0>} : vector<256x64xi32>
    %50 = tpu.iota {dimensions = array<i32: 1>} : vector<256x64xi32>
    %c-1640531527_i32_15 = arith.constant -1640531527 : i32
    %51 = vector.broadcast %c-1640531527_i32_15 : i32 to vector<256x64xi32>
    %52 = arith.muli %49, %51 : vector<256x64xi32>
    %c-2048144789_i32_16 = arith.constant -2048144789 : i32
    %53 = vector.broadcast %c-2048144789_i32_16 : i32 to vector<256x64xi32>
    %54 = arith.muli %50, %53 : vector<256x64xi32>
    %55 = arith.addi %52, %54 : vector<256x64xi32>
    %56 = vector.broadcast %48 : i32 to vector<256x64xi32>
    %57 = arith.addi %55, %56 : vector<256x64xi32>
    %c16_i32_17 = arith.constant 16 : i32
    %58 = vector.broadcast %c16_i32_17 : i32 to vector<256x64xi32>
    %59 = arith.shrui %57, %58 : vector<256x64xi32>
    %60 = arith.xori %57, %59 : vector<256x64xi32>
    %c2146121005_i32_18 = arith.constant 2146121005 : i32
    %61 = vector.broadcast %c2146121005_i32_18 : i32 to vector<256x64xi32>
    %62 = arith.muli %60, %61 : vector<256x64xi32>
    %c15_i32_19 = arith.constant 15 : i32
    %63 = vector.broadcast %c15_i32_19 : i32 to vector<256x64xi32>
    %64 = arith.shrui %62, %63 : vector<256x64xi32>
    %65 = arith.xori %62, %64 : vector<256x64xi32>
    %c-2073254261_i32_20 = arith.constant -2073254261 : i32
    %66 = vector.broadcast %c-2073254261_i32_20 : i32 to vector<256x64xi32>
    %67 = arith.muli %65, %66 : vector<256x64xi32>
    %c16_i32_21 = arith.constant 16 : i32
    %68 = vector.broadcast %c16_i32_21 : i32 to vector<256x64xi32>
    %69 = arith.shrui %67, %68 : vector<256x64xi32>
    %70 = arith.xori %67, %69 : vector<256x64xi32>
    %c1_i32_22 = arith.constant 1 : i32
    %71 = vector.broadcast %c1_i32_22 : i32 to vector<256x64xi32>
    %72 = arith.shrui %70, %71 : vector<256x64xi32>
    %c536870912_i32_23 = arith.constant 536870912 : i32
    %73 = vector.broadcast %c536870912_i32_23 : i32 to vector<256x64xi32>
    %74 = arith.cmpi sge, %72, %73 : vector<256x64xi32>
    %cst_24 = arith.constant 0.000000e+00 : f32
    %75 = vector.broadcast %cst_24 : f32 to vector<256x64xf32>
    %76 = arith.cmpf ogt, %46, %75 : vector<256x64xf32>
    %77 = arith.andi %74, %76 : vector<256x64xi1>
    %cst_25 = arith.constant 1.33333337 : f32
    %78 = vector.broadcast %cst_25 : f32 to vector<256x64xf32>
    %79 = arith.mulf %46, %78 : vector<256x64xf32>
    %cst_26 = arith.constant 0.000000e+00 : f32
    %80 = vector.broadcast %cst_26 : f32 to vector<256x64xf32>
    %81 = arith.select %77, %79, %80 : vector<256x64xi1>, vector<256x64xf32>
    %82 = arith.truncf %81 : vector<256x64xf32> to vector<256x64xbf16>
    %c0_27 = arith.constant 0 : index
    %c0_28 = arith.constant 0 : index
    %83 = vector.load %arg6[%c0_27, %c0_28] : memref<64x128xbf16, #tpu.memory_space<vmem>>, vector<64x128xbf16>
    %cst_29 = arith.constant dense<0.000000e+00> : vector<256x128xf32>
    %84 = tpu.matmul %82, %83, %cst_29 {dimension_numbers = #tpu.dot_dimension_numbers<[1], [0], [0], [1], [0, 0, 1, 1], [], []>} : vector<256x64xbf16>, vector<64x128xbf16>, vector<256x128xf32> -> vector<256x128xf32>
    %c0_30 = arith.constant 0 : index
    %c0_31 = arith.constant 0 : index
    %85 = vector.load %arg7[%c0_30, %c0_31] : memref<1x128xf32, #tpu.memory_space<vmem>>, vector<1x128xf32>
    %86 = vector.broadcast %85 : vector<1x128xf32> to vector<256x128xf32>
    %87 = arith.addf %84, %86 : vector<256x128xf32>
    %c0_32 = arith.constant 0 : index
    %c0_33 = arith.constant 0 : index
    %88 = vector.load %arg8[%c0_32, %c0_33] : memref<256x128xf32, #tpu.memory_space<vmem>>, vector<256x128xf32>
    tpu.vector_store %arg8[%c0_32, %c0_33], %87 {strides = array<i32>} : memref<256x128xf32, #tpu.memory_space<vmem>>, vector<256x128xf32>,
    return
  }
  func.func @transform_0(%arg0: i32) -> (i32, i32) {
    %c0_i32 = arith.constant 0 : i32
    %c0_i32_0 = arith.constant 0 : i32
    return %arg0, %c0_i32 : i32, i32
  }
  func.func @transform_1(%arg0: i32) -> (i32, i32) {
    %c0_i32 = arith.constant 0 : i32
    %c0_i32_0 = arith.constant 0 : i32
    %c0_i32_1 = arith.constant 0 : i32
    return %c0_i32, %c0_i32_0 : i32, i32
  }
  func.func @transform_2(%arg0: i32) -> (i32, i32) {
    %c0_i32 = arith.constant 0 : i32
    %c0_i32_0 = arith.constant 0 : i32
    %c0_i32_1 = arith.constant 0 : i32
    return %c0_i32, %c0_i32_0 : i32, i32
  }
  func.func @transform_3(%arg0: i32) -> (i32, i32) {
    %c0_i32 = arith.constant 0 : i32
    %c0_i32_0 = arith.constant 0 : i32
    %c0_i32_1 = arith.constant 0 : i32
    return %c0_i32, %c0_i32_0 : i32, i32
  }
  func.func @transform_4(%arg0: i32) -> (i32, i32) {
    %c0_i32 = arith.constant 0 : i32
    %c0_i32_0 = arith.constant 0 : i32
    %c0_i32_1 = arith.constant 0 : i32
    return %c0_i32, %c0_i32_0 : i32, i32
  }
  func.func @transform_5(%arg0: i32) -> (i32, i32) {
    %c0_i32 = arith.constant 0 : i32
    %c0_i32_0 = arith.constant 0 : i32
    %c0_i32_1 = arith.constant 0 : i32
    return %c0_i32, %c0_i32_0 : i32, i32
  }
  func.func @transform_6(%arg0: i32) -> (i32, i32) {
    %c0_i32 = arith.constant 0 : i32
    %c0_i32_0 = arith.constant 0 : i32
    %c0_i32_1 = arith.constant 0 : i32
    return %c0_i32, %c0_i32_0 : i32, i32
  }
  func.func @transform_7(%arg0: i32) -> (i32, i32) {
    %c0_i32 = arith.constant 0 : i32
    %c0_i32_0 = arith.constant 0 : i32
    return %arg0, %c0_i32 : i32, i32
  }
}

</mosaic_0001>

<llo_original>
// kernel: tpu_custom_call.1
$region0: #{tpu_custom_call.1}
  #allocation0 [shape = 'u32[]', space=smem, size = 0x4, offset = 0x4, fixed_abs, tag = 'smem constant byte address 0x4 - core index']
  #allocation1 [shape = 'u32[144,128]{1,0:T(1,128)}', space=vmem, size = 0x12000, scoped, tag = 'internal scratch']
  %s0 = inlined_call_operand.hbm [shape: bf16[512,896], index: 0, kind: input, shape index: {}]
  %s1 = inlined_call_operand.hbm [shape: bf16[896,128], index: 1, kind: input, shape index: {}]
  %s2 = inlined_call_operand.vmem [shape: f32[1,128], index: 2, kind: input, shape index: {}]
  %s3 = inlined_call_operand.vmem [shape: bf16[128,64], index: 3, kind: input, shape index: {}]
  %s4 = inlined_call_operand.vmem [shape: f32[1,64], index: 4, kind: input, shape index: {}]
  %s5 = inlined_call_operand.vmem [shape: bf16[64,128], index: 5, kind: input, shape index: {}]
  %s6 = inlined_call_operand.vmem [shape: f32[1,128], index: 6, kind: input, shape index: {}]
  %s7 = inlined_call_operand.hbm [shape: f32[512,128], index: 7, kind: output, shape index: {}]
  %s8 = sld [smem:[#allocation0]]
  $region69: #{tpu_custom_call.1} parent=0
    _
  %s10 = ssub.s32 1, %s8
  %s11 = scalar_select 0, %s10, %s8
  $region1: #{tpu_custom_call.1} parent=0
    #allocation2 [shape = 'u8[917504]{0}', space=vmem, size = 0xe0000, scoped, tag = 'input window, operand 0']
    #allocation3 [shape = 's32[2]{0}', space=sflag, size = 0x8, scoped, tag = 'scoped memory for tpu_custom_call.1']
    #allocation4 [shape = 's32[2]{0}', space=sflag, size = 0x8, scoped, tag = 'scoped memory for tpu_custom_call.1']
    #allocation5 [shape = 'u8[229376]{0}', space=vmem, size = 0x38000, scoped, tag = 'input window, operand 1, single buffered']
    #allocation6 [shape = 's32[1]{0}', space=sflag, size = 0x4, scoped, tag = 'scoped memory for tpu_custom_call.1']
    #allocation7 [shape = 'u8[262144]{0}', space=vmem, size = 0x40000, scoped, tag = 'output window, operand 0']
    %12 = vsyncpa [#allocation3], 0
    %s13 = scalar_lea.sflag [#allocation3], 1
    %14 = vsyncpa %s13, 0
    %15 = vsyncpa [#allocation6], 0
    %16 = vsyncpa [#allocation4], 0
    %s17 = scalar_lea.sflag [#allocation4], 1
    %18 = vsyncpa %s17, 0
    loop: start=0, step=1, limit=4
    $region2: #{tpu_custom_call.1} parent=1 // loop_pre_header
      _
    $region3: #{tpu_custom_call.1} parent=1 // loop_header
      %s20 = sphi 0, %s24
      %p21 = scmp.ge.s32.totalorder %s20, 4
      %s30 = sphi 0, %s32
      %s33 = sphi 0, %s30
      %s34 = sphi 0, %s33
      %s50 = sphi 0, %s34
      %s54 = sphi 0, %s54
      %s56 = sphi 0, %s54
      %s57 = sphi 0, %s56
      %s71 = sphi 0, %s57
      %s75 = sphi 0, %s75
      %s77 = sphi 0, %s75
      %s78 = sphi 0, %s77
      %s92 = sphi 0, %s78
      %s96 = sphi 0, %s96
      %s98 = sphi 0, %s96
      %s99 = sphi 0, %s98
      %s113 = sphi 0, %s99
      %s117 = sphi 0, %s117
      %s119 = sphi 0, %s117
      %s120 = sphi 0, %s119
      %s134 = sphi 0, %s120
      %s138 = sphi 0, %s138
      %s140 = sphi 0, %s138
      %s141 = sphi 0, %s140
      %s155 = sphi 0, %s141
      %s159 = sphi 0, %s159
      %s161 = sphi 0, %s159
      %s162 = sphi 0, %s161
      %s176 = sphi 0, %s162
      %s182 = sphi 0, %s184
      %s185 = sphi 0, %s182
      %s186 = sphi 0, %s185
      %s202 = sphi 0, %s186
    $region4: #{tpu_custom_call.1} parent=1 // loop_header_branch
      %23 = sbr.rel (%p21) target = $region8
    $region5: #{tpu_custom_call.1} parent=1 // loop_body
      %s25 = ssub.s32 %s20, 1
      %s26 = ssub.s32 %s20, 2
      %s27 = sadd.s32 %s20, 1
      %s28 = ssub.s32 %s20, %s27
      %p29 = scmp.eq.s32.totalorder %s28, 0
      %s31 = sadd.s32 %s30, 1
      %s32 = scalar_select %p29, %s30, %s31
      %p35 = pneg %p29
      %p36 = scmp.eq.s32.totalorder %s20, 1
      %p37 = por %p35, %p36
      %p38 = scmp.ne.s32.totalorder %s30, %s33
      %p39 = scmp.eq.s32.totalorder %s20, 0
      %p40 = por %p38, %p39
      %p41 = scmp.ne.s32.totalorder %s30, %s33
      %p42 = scmp.eq.s32.totalorder %s25, 1
      %p43 = por %p41, %p42
      %p44 = scmp.ne.s32.totalorder %s33, %s34
      %p45 = scmp.eq.s32.totalorder %s25, 0
      %p46 = por %p44, %p45
      %p47 = scmp.ne.s32.totalorder %s33, %s34
      %p48 = scmp.eq.s32.totalorder %s26, 1
      %p49 = por %p47, %p48
      %p51 = scmp.ne.s32.totalorder %s34, %s50
      %p52 = scmp.eq.s32.totalorder %s26, 0
      %p53 = por %p51, %p52
      %s55 = sadd.s32 %s54, 1
      %p58 = scmp.eq.s32.totalorder %s20, 1
      %p59 = scmp.ne.s32.totalorder %s54, %s56
      %p60 = scmp.eq.s32.totalorder %s20, 0
      %p61 = por %p59, %p60
      %p62 = scmp.ne.s32.totalorder %s54, %s56
      %p63 = scmp.eq.s32.totalorder %s25, 1
      %p64 = por %p62, %p63
      %p65 = scmp.ne.s32.totalorder %s56, %s57
      %p66 = scmp.eq.s32.totalorder %s25, 0
      %p67 = por %p65, %p66
      %p68 = scmp.ne.s32.totalorder %s56, %s57
      %p69 = scmp.eq.s32.totalorder %s26, 1
      %p70 = por %p68, %p69
      %p72 = scmp.ne.s32.totalorder %s57, %s71
      %p73 = scmp.eq.s32.totalorder %s26, 0
      %p74 = por %p72, %p73
      %s76 = sadd.s32 %s75, 1
      %p79 = scmp.eq.s32.totalorder %s20, 1
      %p80 = scmp.ne.s32.totalorder %s75, %s77
      %p81 = scmp.eq.s32.totalorder %s20, 0
      %p82 = por %p80, %p81
      %p83 = scmp.ne.s32.totalorder %s75, %s77
      %p84 = scmp.eq.s32.totalorder %s25, 1
      %p85 = por %p83, %p84
      %p86 = scmp.ne.s32.totalorder %s77, %s78
      %p87 = scmp.eq.s32.totalorder %s25, 0
      %p88 = por %p86, %p87
      %p89 = scmp.ne.s32.totalorder %s77, %s78
      %p90 = scmp.eq.s32.totalorder %s26, 1
      %p91 = por %p89, %p90
      %p93 = scmp.ne.s32.totalorder %s78, %s92
      %p94 = scmp.eq.s32.totalorder %s26, 0
      %p95 = por %p93, %p94
      %s97 = sadd.s32 %s96, 1
      %p100 = scmp.eq.s32.totalorder %s20, 1
      %p101 = scmp.ne.s32.totalorder %s96, %s98
      %p102 = scmp.eq.s32.totalorder %s20, 0
      %p103 = por %p101, %p102
      %p104 = scmp.ne.s32.totalorder %s96, %s98
      %p105 = scmp.eq.s32.totalorder %s25, 1
      %p106 = por %p104, %p105
      %p107 = scmp.ne.s32.totalorder %s98, %s99
      %p108 = scmp.eq.s32.totalorder %s25, 0
      %p109 = por %p107, %p108
      %p110 = scmp.ne.s32.totalorder %s98, %s99
      %p111 = scmp.eq.s32.totalorder %s26, 1
      %p112 = por %p110, %p111
      %p114 = scmp.ne.s32.totalorder %s99, %s113
      %p115 = scmp.eq.s32.totalorder %s26, 0
      %p116 = por %p114, %p115
      %s118 = sadd.s32 %s117, 1
      %p121 = scmp.eq.s32.totalorder %s20, 1
      %p122 = scmp.ne.s32.totalorder %s117, %s119
      %p123 = scmp.eq.s32.totalorder %s20, 0
      %p124 = por %p122, %p123
      %p125 = scmp.ne.s32.totalorder %s117, %s119
      %p126 = scmp.eq.s32.totalorder %s25, 1
      %p127 = por %p125, %p126
      %p128 = scmp.ne.s32.totalorder %s119, %s120
      %p129 = scmp.eq.s32.totalorder %s25, 0
      %p130 = por %p128, %p129
      %p131 = scmp.ne.s32.totalorder %s119, %s120
      %p132 = scmp.eq.s32.totalorder %s26, 1
      %p133 = por %p131, %p132
      %p135 = scmp.ne.s32.totalorder %s120, %s134
      %p136 = scmp.eq.s32.totalorder %s26, 0
      %p137 = por %p135, %p136
      %s139 = sadd.s32 %s138, 1
      %p142 = scmp.eq.s32.totalorder %s20, 1
      %p143 = scmp.ne.s32.totalorder %s138, %s140
      %p144 = scmp.eq.s32.totalorder %s20, 0
      %p145 = por %p143, %p144
      %p146 = scmp.ne.s32.totalorder %s138, %s140
      %p147 = scmp.eq.s32.totalorder %s25, 1
      %p148 = por %p146, %p147
      %p149 = scmp.ne.s32.totalorder %s140, %s141
      %p150 = scmp.eq.s32.totalorder %s25, 0
      %p151 = por %p149, %p150
      %p152 = scmp.ne.s32.totalorder %s140, %s141
      %p153 = scmp.eq.s32.totalorder %s26, 1
      %p154 = por %p152, %p153
      %p156 = scmp.ne.s32.totalorder %s141, %s155
      %p157 = scmp.eq.s32.totalorder %s26, 0
      %p158 = por %p156, %p157
      %s160 = sadd.s32 %s159, 1
      %p163 = scmp.eq.s32.totalorder %s20, 1
      %p164 = scmp.ne.s32.totalorder %s159, %s161
      %p165 = scmp.eq.s32.totalorder %s20, 0
      %p166 = por %p164, %p165
      %p167 = scmp.ne.s32.totalorder %s159, %s161
      %p168 = scmp.eq.s32.totalorder %s25, 1
      %p169 = por %p167, %p168
      %p170 = scmp.ne.s32.totalorder %s161, %s162
      %p171 = scmp.eq.s32.totalorder %s25, 0
      %p172 = por %p170, %p171
      %p173 = scmp.ne.s32.totalorder %s161, %s162
      %p174 = scmp.eq.s32.totalorder %s26, 1
      %p175 = por %p173, %p174
      %p177 = scmp.ne.s32.totalorder %s162, %s176
      %p178 = scmp.eq.s32.totalorder %s26, 0
      %p179 = por %p177, %p178
      %s180 = ssub.s32 %s20, %s27
      %p181 = scmp.eq.s32.totalorder %s180, 0
      %s183 = sadd.s32 %s182, 1
      %s184 = scalar_select %p181, %s182, %s183
      %p187 = pneg %p181
      %p188 = scmp.eq.s32.totalorder %s20, 1
      %p189 = por %p187, %p188
      %p190 = scmp.ne.s32.totalorder %s182, %s185
      %p191 = scmp.eq.s32.totalorder %s20, 0
      %p192 = por %p190, %p191
      %p193 = scmp.ne.s32.totalorder %s182, %s185
      %p194 = scmp.eq.s32.totalorder %s25, 1
      %p195 = por %p193, %p194
      %p196 = scmp.ne.s32.totalorder %s185, %s186
      %p197 = scmp.eq.s32.totalorder %s25, 0
      %p198 = por %p196, %p197
      %p199 = scmp.ne.s32.totalorder %s185, %s186
      %p200 = scmp.eq.s32.totalorder %s26, 1
      %p201 = por %p199, %p200
      %p203 = scmp.ne.s32.totalorder %s186, %s202
      %p204 = scmp.eq.s32.totalorder %s26, 0
      %p205 = por %p203, %p204
      %p206 = scmp.le.s32.totalorder 1, %s20
      %p207 = scmp.lt.s32.totalorder %s20, 3
      %p208 = pnand %p206, %p207
      %p209 = pneg %p208
      // Predicated region
      $region9: #{tpu_custom_call.1} parent=5 // pred_check
        _
      $region10: #{tpu_custom_call.1} parent=5 // pred_check_branch
        %211 = sbr.rel (%p208) target = $region12
      $region11: #{tpu_custom_call.1} parent=5 // pred_region
        %s212 = ssub.s32 %s20, 1
        // Predicated region
        $region13: #{tpu_custom_call.1} parent=11 // pred_check
          %p213 = pneg %p67
        $region14: #{tpu_custom_call.1} parent=11 // pred_check_branch
          %215 = sbr.rel (%p213) target = $region16
        $region15: #{tpu_custom_call.1} parent=11 // pred_region
          %s217 = ssub.s32 7168, 7168
          %218 = vsyncadd [#allocation6], %s217
          %s219 = sshll.u32 [#allocation5], 4
          %s220 = int_to_ptr.vmem [resolvable:$true] %s219
          %225 = dma.hbm_to_vmem [thread:$0]  %s1, 7168, %s220, [#allocation6], 64, 64, 4
        $region16: #{tpu_custom_call.1} parent=11 // pred_fallthru
          _
        // Predicated region
        $region17: #{tpu_custom_call.1} parent=11 // pred_check
          %p226 = pneg %p88
        $region18: #{tpu_custom_call.1} parent=11 // pred_check_branch
          %228 = sbr.rel (%p226) target = $region20
        $region19: #{tpu_custom_call.1} parent=11 // pred_region
          _
        $region20: #{tpu_custom_call.1} parent=11 // pred_fallthru
          _
        // Predicated region
        $region21: #{tpu_custom_call.1} parent=11 // pred_check
          %p229 = pneg %p109
        $region22: #{tpu_custom_call.1} parent=11 // pred_check_branch
          %231 = sbr.rel (%p229) target = $region24
        $region23: #{tpu_custom_call.1} parent=11 // pred_region
          _
        $region24: #{tpu_custom_call.1} parent=11 // pred_fallthru
          _
        // Predicated region
        $region25: #{tpu_custom_call.1} parent=11 // pred_check
          %p232 = pneg %p130
        $region26: #{tpu_custom_call.1} parent=11 // pred_check_branch
          %234 = sbr.rel (%p232) target = $region28
        $region27: #{tpu_custom_call.1} parent=11 // pred_region
          _
        $region28: #{tpu_custom_call.1} parent=11 // pred_fallthru
          _
        // Predicated region
        $region29: #{tpu_custom_call.1} parent=11 // pred_check
          %p235 = pneg %p151
        $region30: #{tpu_custom_call.1} parent=11 // pred_check_branch
          %237 = sbr.rel (%p235) target = $region32
        $region31: #{tpu_custom_call.1} parent=11 // pred_region
          _
        $region32: #{tpu_custom_call.1} parent=11 // pred_fallthru
          _
        // Predicated region
        $region33: #{tpu_custom_call.1} parent=11 // pred_check
          %p238 = pneg %p172
        $region34: #{tpu_custom_call.1} parent=11 // pred_check_branch
          %240 = sbr.rel (%p238) target = $region36
        $region35: #{tpu_custom_call.1} parent=11 // pred_region
          _
        $region36: #{tpu_custom_call.1} parent=11 // pred_fallthru
          _
      $region12: #{tpu_custom_call.1} parent=5 // pred_fallthru
        _
      %p241 = scmp.lt.s32.totalorder %s20, 2
      // Predicated region
      $region37: #{tpu_custom_call.1} parent=5 // pred_check
        %p242 = pneg %p241
      $region38: #{tpu_custom_call.1} parent=5 // pred_check_branch
        %244 = sbr.rel (%p242) target = $region40
      $region39: #{tpu_custom_call.1} parent=5 // pred_region
        // Predicated region
        $region41: #{tpu_custom_call.1} parent=39 // pred_check
          %p245 = pneg %p40
        $region42: #{tpu_custom_call.1} parent=39 // pred_check_branch
          %247 = sbr.rel (%p245) target = $region44
        $region43: #{tpu_custom_call.1} parent=39 // pred_region
          %s248 = sand.u32 %s30, 1
          %s249 = scalar_lea.sflag [#allocation3], %s248
          %s250 = sand.u32 %s30, 1
          %s251 = smul.addr %s250, 896
          %s252 = scalar_lea.vmem [#allocation2], %s251
          %s253 = smul.u32 32, %s20
          %s255 = ssub.s32 14336, 14336
          %256 = vsyncadd %s249, %s255
          %s257 = smul.addr %s253, 7
          %s258 = smul.addr %s257, 64
          %s259 = scalar_lea.hbm %s0, %s258
          %s260 = sshll.u32 %s252, 4
          %s261 = int_to_ptr.vmem [resolvable:$true] %s260
          %266 = dma.hbm_to_vmem [thread:$0]  %s259, 14336, %s261, %s249, 448, 448, 28
        $region44: #{tpu_custom_call.1} parent=39 // pred_fallthru
          _
      $region40: #{tpu_custom_call.1} parent=5 // pred_fallthru
        _
      %p267 = scmp.le.s32.totalorder 1, %s20
      %p268 = scmp.lt.s32.totalorder %s20, 3
      %p269 = pnand %p267, %p268
      %p270 = pneg %p269
      // Predicated region
      $region45: #{tpu_custom_call.1} parent=5 // pred_check
        _
      $region46: #{tpu_custom_call.1} parent=5 // pred_check_branch
        %272 = sbr.rel (%p269) target = $region48
      $region47: #{tpu_custom_call.1} parent=5 // pred_region
        %s273 = ssub.s32 %s20, 1
        %s274 = sand.u32 %s33, 1
        %s275 = scalar_lea.sflag [#allocation3], %s274
        %s276 = sand.u32 %s33, 1
        %s277 = smul.addr %s276, 896
        %s278 = scalar_lea.vmem [#allocation2], %s277
        // Predicated region
        $region49: #{tpu_custom_call.1} parent=47 // pred_check
          %p279 = pneg %p46
        $region50: #{tpu_custom_call.1} parent=47 // pred_check_branch
          %281 = sbr.rel (%p279) target = $region52
        $region51: #{tpu_custom_call.1} parent=47 // pred_region
          %282 = dma.done %s275, 14336
        $region52: #{tpu_custom_call.1} parent=47 // pred_fallthru
          _
        // Predicated region
        $region53: #{tpu_custom_call.1} parent=47 // pred_check
          %p283 = pneg %p67
        $region54: #{tpu_custom_call.1} parent=47 // pred_check_branch
          %285 = sbr.rel (%p283) target = $region56
        $region55: #{tpu_custom_call.1} parent=47 // pred_region
          %286 = dma.done [#allocation6], 7168
        $region56: #{tpu_custom_call.1} parent=47 // pred_fallthru
          _
        %s287 = sand.u32 %s33, 1
        %s288 = scalar_lea.sflag [#allocation3], %s287
        %s289 = sand.u32 %s33, 1
        %s290 = smul.addr %s289, 896
        %s291 = scalar_lea.vmem [#allocation2], %s290
        %p292 = pneg %p46
        %p293 = pneg %p43
        %p294 = pneg %p67
        %p295 = pneg %p64
        %p296 = pneg %p88
        %p297 = pneg %p85
        %p298 = pneg %p109
        %p299 = pneg %p106
        %p300 = pneg %p130
        %p301 = pneg %p127
        %p302 = pneg %p151
        %p303 = pneg %p148
        %p304 = pneg %p172
        %p305 = pneg %p169
        %p306 = pneg %p198
        %p307 = pneg %p195
        %s308 = sand.u32 %s185, 1
        %s309 = scalar_lea.sflag [#allocation4], %s308
        %s310 = sand.u32 %s185, 1
        %s311 = smul.addr %s310, 256
        %s312 = scalar_lea.vmem [#allocation7], %s311
        %s313 = smul.u32 32, %s25
        %s314 = smul.u32 32, %s25
        %v316 = vld [vmem:[%s278] sm:$0xff]
        %v317 = vld [vmem:[%s278 + $0x8] sm:$0xff]
        %v318 = vld [vmem:[%s278 + $0x10] sm:$0xff]
        %v319 = vld [vmem:[%s278 + $0x18] sm:$0xf]
        %v320 = vld [vmem:[%s278 + $0x1c] sm:$0xff]
        %v321 = vld [vmem:[%s278 + $0x24] sm:$0xff]
        %v322 = vld [vmem:[%s278 + $0x2c] sm:$0xff]
        %v323 = vld [vmem:[%s278 + $0x34] sm:$0xf]
        %v324 = vld [vmem:[%s278 + $0x38] sm:$0xff]
        %v325 = vld [vmem:[%s278 + $0x40] sm:$0xff]
        %v326 = vld [vmem:[%s278 + $0x48] sm:$0xff]
        %v327 = vld [vmem:[%s278 + $0x50] sm:$0xf]
        %v328 = vld [vmem:[%s278 + $0x54] sm:$0xff]
        %v329 = vld [vmem:[%s278 + $0x5c] sm:$0xff]
        %v330 = vld [vmem:[%s278 + $0x64] sm:$0xff]
        %v331 = vld [vmem:[%s278 + $0x6c] sm:$0xf]
        %v332 = vld [vmem:[%s278 + $0x70] sm:$0xff]
        %v333 = vld [vmem:[%s278 + $0x78] sm:$0xff]
        %v334 = vld [vmem:[%s278 + $0x80] sm:$0xff]
        %v335 = vld [vmem:[%s278 + $0x88] sm:$0xf]
        %v336 = vld [vmem:[%s278 + $0x8c] sm:$0xff]
        %v337 = vld [vmem:[%s278 + $0x94] sm:$0xff]
        %v338 = vld [vmem:[%s278 + $0x9c] sm:$0xff]
        %v339 = vld [vmem:[%s278 + $0xa4] sm:$0xf]
        %v340 = vld [vmem:[%s278 + $0xa8] sm:$0xff]
        %v341 = vld [vmem:[%s278 + $0xb0] sm:$0xff]
        %v342 = vld [vmem:[%s278 + $0xb8] sm:$0xff]
        %v343 = vld [vmem:[%s278 + $0xc0] sm:$0xf]
        %v344 = vld [vmem:[%s278 + $0xc4] sm:$0xff]
        %v345 = vld [vmem:[%s278 + $0xcc] sm:$0xff]
        %v346 = vld [vmem:[%s278 + $0xd4] sm:$0xff]
        %v347 = vld [vmem:[%s278 + $0xdc] sm:$0xf]
        %v348 = vld [vmem:[%s278 + $0xe0] sm:$0xff]
        %v349 = vld [vmem:[%s278 + $0xe8] sm:$0xff]
        %v350 = vld [vmem:[%s278 + $0xf0] sm:$0xff]
        %v351 = vld [vmem:[%s278 + $0xf8] sm:$0xf]
        %v352 = vld [vmem:[%s278 + $0xfc] sm:$0xff]
        %v353 = vld [vmem:[%s278 + $0x104] sm:$0xff]
        %v354 = vld [vmem:[%s278 + $0x10c] sm:$0xff]
        %v355 = vld [vmem:[%s278 + $0x114] sm:$0xf]
        %v356 = vld [vmem:[%s278 + $0x118] sm:$0xff]
        %v357 = vld [vmem:[%s278 + $0x120] sm:$0xff]
        %v358 = vld [vmem:[%s278 + $0x128] sm:$0xff]
        %v359 = vld [vmem:[%s278 + $0x130] sm:$0xf]
        %v360 = vld [vmem:[%s278 + $0x134] sm:$0xff]
        %v361 = vld [vmem:[%s278 + $0x13c] sm:$0xff]
        %v362 = vld [vmem:[%s278 + $0x144] sm:$0xff]
        %v363 = vld [vmem:[%s278 + $0x14c] sm:$0xf]
        %v364 = vld [vmem:[%s278 + $0x150] sm:$0xff]
        %v365 = vld [vmem:[%s278 + $0x158] sm:$0xff]
        %v366 = vld [vmem:[%s278 + $0x160] sm:$0xff]
        %v367 = vld [vmem:[%s278 + $0x168] sm:$0xf]
        %v368 = vld [vmem:[%s278 + $0x16c] sm:$0xff]
        %v369 = vld [vmem:[%s278 + $0x174] sm:$0xff]
        %v370 = vld [vmem:[%s278 + $0x17c] sm:$0xff]
        %v371 = vld [vmem:[%s278 + $0x184] sm:$0xf]
        %v372 = vld [vmem:[%s278 + $0x188] sm:$0xff]
        %v373 = vld [vmem:[%s278 + $0x190] sm:$0xff]
        %v374 = vld [vmem:[%s278 + $0x198] sm:$0xff]
        %v375 = vld [vmem:[%s278 + $0x1a0] sm:$0xf]
        %v376 = vld [vmem:[%s278 + $0x1a4] sm:$0xff]
        %v377 = vld [vmem:[%s278 + $0x1ac] sm:$0xff]
        %v378 = vld [vmem:[%s278 + $0x1b4] sm:$0xff]
        %v379 = vld [vmem:[%s278 + $0x1bc] sm:$0xf]
        %v380 = vld [vmem:[%s278 + $0x1c0] sm:$0xff]
        %v381 = vld [vmem:[%s278 + $0x1c8] sm:$0xff]
        %v382 = vld [vmem:[%s278 + $0x1d0] sm:$0xff]
        %v383 = vld [vmem:[%s278 + $0x1d8] sm:$0xf]
        %v384 = vld [vmem:[%s278 + $0x1dc] sm:$0xff]
        %v385 = vld [vmem:[%s278 + $0x1e4] sm:$0xff]
        %v386 = vld [vmem:[%s278 + $0x1ec] sm:$0xff]
        %v387 = vld [vmem:[%s278 + $0x1f4] sm:$0xf]
        %v388 = vld [vmem:[%s278 + $0x1f8] sm:$0xff]
        %v389 = vld [vmem:[%s278 + $0x200] sm:$0xff]
        %v390 = vld [vmem:[%s278 + $0x208] sm:$0xff]
        %v391 = vld [vmem:[%s278 + $0x210] sm:$0xf]
        %v392 = vld [vmem:[%s278 + $0x214] sm:$0xff]
        %v393 = vld [vmem:[%s278 + $0x21c] sm:$0xff]
        %v394 = vld [vmem:[%s278 + $0x224] sm:$0xff]
        %v395 = vld [vmem:[%s278 + $0x22c] sm:$0xf]
        %v396 = vld [vmem:[%s278 + $0x230] sm:$0xff]
        %v397 = vld [vmem:[%s278 + $0x238] sm:$0xff]
        %v398 = vld [vmem:[%s278 + $0x240] sm:$0xff]
        %v399 = vld [vmem:[%s278 + $0x248] sm:$0xf]
        %v400 = vld [vmem:[%s278 + $0x24c] sm:$0xff]
        %v401 = vld [vmem:[%s278 + $0x254] sm:$0xff]
        %v402 = vld [vmem:[%s278 + $0x25c] sm:$0xff]
        %v403 = vld [vmem:[%s278 + $0x264] sm:$0xf]
        %v404 = vld [vmem:[%s278 + $0x268] sm:$0xff]
        %v405 = vld [vmem:[%s278 + $0x270] sm:$0xff]
        %v406 = vld [vmem:[%s278 + $0x278] sm:$0xff]
        %v407 = vld [vmem:[%s278 + $0x280] sm:$0xf]
        %v408 = vld [vmem:[%s278 + $0x284] sm:$0xff]
        %v409 = vld [vmem:[%s278 + $0x28c] sm:$0xff]
        %v410 = vld [vmem:[%s278 + $0x294] sm:$0xff]
        %v411 = vld [vmem:[%s278 + $0x29c] sm:$0xf]
        %v412 = vld [vmem:[%s278 + $0x2a0] sm:$0xff]
        %v413 = vld [vmem:[%s278 + $0x2a8] sm:$0xff]
        %v414 = vld [vmem:[%s278 + $0x2b0] sm:$0xff]
        %v415 = vld [vmem:[%s278 + $0x2b8] sm:$0xf]
        %v416 = vld [vmem:[%s278 + $0x2bc] sm:$0xff]
        %v417 = vld [vmem:[%s278 + $0x2c4] sm:$0xff]
        %v418 = vld [vmem:[%s278 + $0x2cc] sm:$0xff]
        %v419 = vld [vmem:[%s278 + $0x2d4] sm:$0xf]
        %v420 = vld [vmem:[%s278 + $0x2d8] sm:$0xff]
        %v421 = vld [vmem:[%s278 + $0x2e0] sm:$0xff]
        %v422 = vld [vmem:[%s278 + $0x2e8] sm:$0xff]
        %v423 = vld [vmem:[%s278 + $0x2f0] sm:$0xf]
        %v424 = vld [vmem:[%s278 + $0x2f4] sm:$0xff]
        %v425 = vld [vmem:[%s278 + $0x2fc] sm:$0xff]
        %v426 = vld [vmem:[%s278 + $0x304] sm:$0xff]
        %v427 = vld [vmem:[%s278 + $0x30c] sm:$0xf]
        %v428 = vld [vmem:[%s278 + $0x310] sm:$0xff]
        %v429 = vld [vmem:[%s278 + $0x318] sm:$0xff]
        %v430 = vld [vmem:[%s278 + $0x320] sm:$0xff]
        %v431 = vld [vmem:[%s278 + $0x328] sm:$0xf]
        %v432 = vld [vmem:[%s278 + $0x32c] sm:$0xff]
        %v433 = vld [vmem:[%s278 + $0x334] sm:$0xff]
        %v434 = vld [vmem:[%s278 + $0x33c] sm:$0xff]
        %v435 = vld [vmem:[%s278 + $0x344] sm:$0xf]
        %v436 = vld [vmem:[%s278 + $0x348] sm:$0xff]
        %v437 = vld [vmem:[%s278 + $0x350] sm:$0xff]
        %v438 = vld [vmem:[%s278 + $0x358] sm:$0xff]
        %v439 = vld [vmem:[%s278 + $0x360] sm:$0xf]
        %v440 = vld [vmem:[%s278 + $0x364] sm:$0xff]
        %v441 = vld [vmem:[%s278 + $0x36c] sm:$0xff]
        %v442 = vld [vmem:[%s278 + $0x374] sm:$0xff]
        %v443 = vld [vmem:[%s278 + $0x37c] sm:$0xf]
        %v444 = vld [vmem:[#allocation5] sm:$0xf]
        %v445 = vld [vmem:[#allocation5 + $0x4] sm:$0xf]
        %v446 = vld [vmem:[#allocation5 + $0x8] sm:$0xf]
        %v447 = vld [vmem:[#allocation5 + $0xc] sm:$0xf]
        %v448 = vld [vmem:[#allocation5 + $0x10] sm:$0xf]
        %v449 = vld [vmem:[#allocation5 + $0x14] sm:$0xf]
        %v450 = vld [vmem:[#allocation5 + $0x18] sm:$0xf]
        %v451 = vld [vmem:[#allocation5 + $0x1c] sm:$0xf]
        %v452 = vld [vmem:[#allocation5 + $0x20] sm:$0xf]
        %v453 = vld [vmem:[#allocation5 + $0x24] sm:$0xf]
        %v454 = vld [vmem:[#allocation5 + $0x28] sm:$0xf]
        %v455 = vld [vmem:[#allocation5 + $0x2c] sm:$0xf]
        %v456 = vld [vmem:[#allocation5 + $0x30] sm:$0xf]
        %v457 = vld [vmem:[#allocation5 + $0x34] sm:$0xf]
        %v458 = vld [vmem:[#allocation5 + $0x38] sm:$0xf]
        %v459 = vld [vmem:[#allocation5 + $0x3c] sm:$0xf]
        %v460 = vld [vmem:[#allocation5 + $0x40] sm:$0xf]
        %v461 = vld [vmem:[#allocation5 + $0x44] sm:$0xf]
        %v462 = vld [vmem:[#allocation5 + $0x48] sm:$0xf]
        %v463 = vld [vmem:[#allocation5 + $0x4c] sm:$0xf]
        %v464 = vld [vmem:[#allocation5 + $0x50] sm:$0xf]
        %v465 = vld [vmem:[#allocation5 + $0x54] sm:$0xf]
        %v466 = vld [vmem:[#allocation5 + $0x58] sm:$0xf]
        %v467 = vld [vmem:[#allocation5 + $0x5c] sm:$0xf]
        %v468 = vld [vmem:[#allocation5 + $0x60] sm:$0xf]
        %v469 = vld [vmem:[#allocation5 + $0x64] sm:$0xf]
        %v470 = vld [vmem:[#allocation5 + $0x68] sm:$0xf]
        %v471 = vld [vmem:[#allocation5 + $0x6c] sm:$0xf]
        %v472 = vld [vmem:[#allocation5 + $0x70] sm:$0xf]
        %v473 = vld [vmem:[#allocation5 + $0x74] sm:$0xf]
        %v474 = vld [vmem:[#allocation5 + $0x78] sm:$0xf]
        %v475 = vld [vmem:[#allocation5 + $0x7c] sm:$0xf]
        %v476 = vld [vmem:[#allocation5 + $0x80] sm:$0xf]
        %v477 = vld [vmem:[#allocation5 + $0x84] sm:$0xf]
        %v478 = vld [vmem:[#allocation5 + $0x88] sm:$0xf]
        %v479 = vld [vmem:[#allocation5 + $0x8c] sm:$0xf]
        %v480 = vld [vmem:[#allocation5 + $0x90] sm:$0xf]
        %v481 = vld [vmem:[#allocation5 + $0x94] sm:$0xf]
        %v482 = vld [vmem:[#allocation5 + $0x98] sm:$0xf]
        %v483 = vld [vmem:[#allocation5 + $0x9c] sm:$0xf]
        %v484 = vld [vmem:[#allocation5 + $0xa0] sm:$0xf]
        %v485 = vld [vmem:[#allocation5 + $0xa4] sm:$0xf]
        %v486 = vld [vmem:[#allocation5 + $0xa8] sm:$0xf]
        %v487 = vld [vmem:[#allocation5 + $0xac] sm:$0xf]
        %v488 = vld [vmem:[#allocation5 + $0xb0] sm:$0xf]
        %v489 = vld [vmem:[#allocation5 + $0xb4] sm:$0xf]
        %v490 = vld [vmem:[#allocation5 + $0xb8] sm:$0xf]
        %v491 = vld [vmem:[#allocation5 + $0xbc] sm:$0xf]
        %v492 = vld [vmem:[#allocation5 + $0xc0] sm:$0xf]
        %v493 = vld [vmem:[#allocation5 + $0xc4] sm:$0xf]
        %v494 = vld [vmem:[#allocation5 + $0xc8] sm:$0xf]
        %v495 = vld [vmem:[#allocation5 + $0xcc] sm:$0xf]
        %v496 = vld [vmem:[#allocation5 + $0xd0] sm:$0xf]
        %v497 = vld [vmem:[#allocation5 + $0xd4] sm:$0xf]
        %v498 = vld [vmem:[#allocation5 + $0xd8] sm:$0xf]
        %v499 = vld [vmem:[#allocation5 + $0xdc] sm:$0xf]
        %v500 = vld [vmem:[#allocation5 + $0xe0] sm:$0xf]
        %v501 = vld [vmem:[#allocation5 + $0xe4] sm:$0xf]
        %v502 = vld [vmem:[#allocation5 + $0xe8] sm:$0xf]
        %v503 = vld [vmem:[#allocation5 + $0xec] sm:$0xf]
        %v504 = vld [vmem:[#allocation5 + $0xf0] sm:$0xf]
        %v505 = vld [vmem:[#allocation5 + $0xf4] sm:$0xf]
        %v506 = vld [vmem:[#allocation5 + $0xf8] sm:$0xf]
        %v507 = vld [vmem:[#allocation5 + $0xfc] sm:$0xf]
        %v508 = vld [vmem:[#allocation5 + $0x100] sm:$0xf]
        %v509 = vld [vmem:[#allocation5 + $0x104] sm:$0xf]
        %v510 = vld [vmem:[#allocation5 + $0x108] sm:$0xf]
        %v511 = vld [vmem:[#allocation5 + $0x10c] sm:$0xf]
        %v512 = vld [vmem:[#allocation5 + $0x110] sm:$0xf]
        %v513 = vld [vmem:[#allocation5 + $0x114] sm:$0xf]
        %v514 = vld [vmem:[#allocation5 + $0x118] sm:$0xf]
        %v515 = vld [vmem:[#allocation5 + $0x11c] sm:$0xf]
        %v516 = vld [vmem:[#allocation5 + $0x120] sm:$0xf]
        %v517 = vld [vmem:[#allocation5 + $0x124] sm:$0xf]
        %v518 = vld [vmem:[#allocation5 + $0x128] sm:$0xf]
        %v519 = vld [vmem:[#allocation5 + $0x12c] sm:$0xf]
        %v520 = vld [vmem:[#allocation5 + $0x130] sm:$0xf]
        %v521 = vld [vmem:[#allocation5 + $0x134] sm:$0xf]
        %v522 = vld [vmem:[#allocation5 + $0x138] sm:$0xf]
        %v523 = vld [vmem:[#allocation5 + $0x13c] sm:$0xf]
        %v524 = vld [vmem:[#allocation5 + $0x140] sm:$0xf]
        %v525 = vld [vmem:[#allocation5 + $0x144] sm:$0xf]
        %v526 = vld [vmem:[#allocation5 + $0x148] sm:$0xf]
        %v527 = vld [vmem:[#allocation5 + $0x14c] sm:$0xf]
        %v528 = vld [vmem:[#allocation5 + $0x150] sm:$0xf]
        %v529 = vld [vmem:[#allocation5 + $0x154] sm:$0xf]
        %v530 = vld [vmem:[#allocation5 + $0x158] sm:$0xf]
        %v531 = vld [vmem:[#allocation5 + $0x15c] sm:$0xf]
        %v532 = vld [vmem:[#allocation5 + $0x160] sm:$0xf]
        %v533 = vld [vmem:[#allocation5 + $0x164] sm:$0xf]
        %v534 = vld [vmem:[#allocation5 + $0x168] sm:$0xf]
        %v535 = vld [vmem:[#allocation5 + $0x16c] sm:$0xf]
        %v536 = vld [vmem:[#allocation5 + $0x170] sm:$0xf]
        %v537 = vld [vmem:[#allocation5 + $0x174] sm:$0xf]
        %v538 = vld [vmem:[#allocation5 + $0x178] sm:$0xf]
        %v539 = vld [vmem:[#allocation5 + $0x17c] sm:$0xf]
        %v540 = vld [vmem:[#allocation5 + $0x180] sm:$0xf]
        %v541 = vld [vmem:[#allocation5 + $0x184] sm:$0xf]
        %v542 = vld [vmem:[#allocation5 + $0x188] sm:$0xf]
        %v543 = vld [vmem:[#allocation5 + $0x18c] sm:$0xf]
        %v544 = vld [vmem:[#allocation5 + $0x190] sm:$0xf]
        %v545 = vld [vmem:[#allocation5 + $0x194] sm:$0xf]
        %v546 = vld [vmem:[#allocation5 + $0x198] sm:$0xf]
        %v547 = vld [vmem:[#allocation5 + $0x19c] sm:$0xf]
        %v548 = vld [vmem:[#allocation5 + $0x1a0] sm:$0xf]
        %v549 = vld [vmem:[#allocation5 + $0x1a4] sm:$0xf]
        %v550 = vld [vmem:[#allocation5 + $0x1a8] sm:$0xf]
        %v551 = vld [vmem:[#allocation5 + $0x1ac] sm:$0xf]
        %v552 = vld [vmem:[#allocation5 + $0x1b0] sm:$0xf]
        %v553 = vld [vmem:[#allocation5 + $0x1b4] sm:$0xf]
        %v554 = vld [vmem:[#allocation5 + $0x1b8] sm:$0xf]
        %v555 = vld [vmem:[#allocation5 + $0x1bc] sm:$0xf]
        %v556 = vld [vmem:[%s2] sm:$0x1]
        %v558 = vlaneseq
        %v559 = vshrl.u32 %v558, 7
        %v560 = vsub.s32 0, %v559
        %v561 = vrot.slane %v556, %v560
        %v691 = vunpack.c.l.b16 %v316
        %v692 = vunpack.c.h.b16 %v316
        %v693 = vunpack.c.l.b16 %v317
        %v694 = vunpack.c.h.b16 %v317
        %v695 = vunpack.c.l.b16 %v318
        %v696 = vunpack.c.h.b16 %v318
        %v697 = vunpack.c.l.b16 %v319
        %v698 = vunpack.c.l.b16 %v320
        %v699 = vunpack.c.h.b16 %v320
        %v700 = vunpack.c.l.b16 %v321
        %v701 = vunpack.c.h.b16 %v321
        %v702 = vunpack.c.l.b16 %v322
        %v703 = vunpack.c.h.b16 %v322
        %v704 = vunpack.c.l.b16 %v323
        %v705 = vunpack.c.l.b16 %v324
        %v706 = vunpack.c.h.b16 %v324
        %v707 = vunpack.c.l.b16 %v325
        %v708 = vunpack.c.h.b16 %v325
        %v709 = vunpack.c.l.b16 %v326
        %v710 = vunpack.c.h.b16 %v326
        %v711 = vunpack.c.l.b16 %v327
        %v712 = vunpack.c.l.b16 %v328
        %v713 = vunpack.c.h.b16 %v328
        %v714 = vunpack.c.l.b16 %v329
        %v715 = vunpack.c.h.b16 %v329
        %v716 = vunpack.c.l.b16 %v330
        %v717 = vunpack.c.h.b16 %v330
        %v718 = vunpack.c.l.b16 %v331
        %v719 = vunpack.c.l.b16 %v332
        %v720 = vunpack.c.h.b16 %v332
        %v721 = vunpack.c.l.b16 %v333
        %v722 = vunpack.c.h.b16 %v333
        %v723 = vunpack.c.l.b16 %v334
        %v724 = vunpack.c.h.b16 %v334
        %v725 = vunpack.c.l.b16 %v335
        %v726 = vunpack.c.l.b16 %v336
        %v727 = vunpack.c.h.b16 %v336
        %v728 = vunpack.c.l.b16 %v337
        %v729 = vunpack.c.h.b16 %v337
        %v730 = vunpack.c.l.b16 %v338
        %v731 = vunpack.c.h.b16 %v338
        %v732 = vunpack.c.l.b16 %v339
        %v733 = vunpack.c.l.b16 %v340
        %v734 = vunpack.c.h.b16 %v340
        %v735 = vunpack.c.l.b16 %v341
        %v736 = vunpack.c.h.b16 %v341
        %v737 = vunpack.c.l.b16 %v342
        %v738 = vunpack.c.h.b16 %v342
        %v739 = vunpack.c.l.b16 %v343
        %v740 = vunpack.c.l.b16 %v344
        %v741 = vunpack.c.h.b16 %v344
        %v742 = vunpack.c.l.b16 %v345
        %v743 = vunpack.c.h.b16 %v345
        %v744 = vunpack.c.l.b16 %v346
        %v745 = vunpack.c.h.b16 %v346
        %v746 = vunpack.c.l.b16 %v347
        %v747 = vunpack.c.l.b16 %v348
        %v748 = vunpack.c.h.b16 %v348
        %v749 = vunpack.c.l.b16 %v349
        %v750 = vunpack.c.h.b16 %v349
        %v751 = vunpack.c.l.b16 %v350
        %v752 = vunpack.c.h.b16 %v350
        %v753 = vunpack.c.l.b16 %v351
        %v754 = vunpack.c.l.b16 %v352
        %v755 = vunpack.c.h.b16 %v352
        %v756 = vunpack.c.l.b16 %v353
        %v757 = vunpack.c.h.b16 %v353
        %v758 = vunpack.c.l.b16 %v354
        %v759 = vunpack.c.h.b16 %v354
        %v760 = vunpack.c.l.b16 %v355
        %v761 = vunpack.c.l.b16 %v356
        %v762 = vunpack.c.h.b16 %v356
        %v763 = vunpack.c.l.b16 %v357
        %v764 = vunpack.c.h.b16 %v357
        %v765 = vunpack.c.l.b16 %v358
        %v766 = vunpack.c.h.b16 %v358
        %v767 = vunpack.c.l.b16 %v359
        %v768 = vunpack.c.l.b16 %v360
        %v769 = vunpack.c.h.b16 %v360
        %v770 = vunpack.c.l.b16 %v361
        %v771 = vunpack.c.h.b16 %v361
        %v772 = vunpack.c.l.b16 %v362
        %v773 = vunpack.c.h.b16 %v362
        %v774 = vunpack.c.l.b16 %v363
        %v775 = vunpack.c.l.b16 %v364
        %v776 = vunpack.c.h.b16 %v364
        %v777 = vunpack.c.l.b16 %v365
        %v778 = vunpack.c.h.b16 %v365
        %v779 = vunpack.c.l.b16 %v366
        %v780 = vunpack.c.h.b16 %v366
        %v781 = vunpack.c.l.b16 %v367
        %v782 = vunpack.c.l.b16 %v368
        %v783 = vunpack.c.h.b16 %v368
        %v784 = vunpack.c.l.b16 %v369
        %v785 = vunpack.c.h.b16 %v369
        %v786 = vunpack.c.l.b16 %v370
        %v787 = vunpack.c.h.b16 %v370
        %v788 = vunpack.c.l.b16 %v371
        %v789 = vunpack.c.l.b16 %v372
        %v790 = vunpack.c.h.b16 %v372
        %v791 = vunpack.c.l.b16 %v373
        %v792 = vunpack.c.h.b16 %v373
        %v793 = vunpack.c.l.b16 %v374
        %v794 = vunpack.c.h.b16 %v374
        %v795 = vunpack.c.l.b16 %v375
        %v796 = vunpack.c.l.b16 %v376
        %v797 = vunpack.c.h.b16 %v376
        %v798 = vunpack.c.l.b16 %v377
        %v799 = vunpack.c.h.b16 %v377
        %v800 = vunpack.c.l.b16 %v378
        %v801 = vunpack.c.h.b16 %v378
        %v802 = vunpack.c.l.b16 %v379
        %v803 = vunpack.c.l.b16 %v380
        %v804 = vunpack.c.h.b16 %v380
        %v805 = vunpack.c.l.b16 %v381
        %v806 = vunpack.c.h.b16 %v381
        %v807 = vunpack.c.l.b16 %v382
        %v808 = vunpack.c.h.b16 %v382
        %v809 = vunpack.c.l.b16 %v383
        %v810 = vunpack.c.l.b16 %v384
        %v811 = vunpack.c.h.b16 %v384
        %v812 = vunpack.c.l.b16 %v385
        %v813 = vunpack.c.h.b16 %v385
        %v814 = vunpack.c.l.b16 %v386
        %v815 = vunpack.c.h.b16 %v386
        %v816 = vunpack.c.l.b16 %v387
        %v817 = vunpack.c.l.b16 %v388
        %v818 = vunpack.c.h.b16 %v388
        %v819 = vunpack.c.l.b16 %v389
        %v820 = vunpack.c.h.b16 %v389
        %v821 = vunpack.c.l.b16 %v390
        %v822 = vunpack.c.h.b16 %v390
        %v823 = vunpack.c.l.b16 %v391
        %v824 = vunpack.c.l.b16 %v392
        %v825 = vunpack.c.h.b16 %v392
        %v826 = vunpack.c.l.b16 %v393
        %v827 = vunpack.c.h.b16 %v393
        %v828 = vunpack.c.l.b16 %v394
        %v829 = vunpack.c.h.b16 %v394
        %v830 = vunpack.c.l.b16 %v395
        %v831 = vunpack.c.l.b16 %v396
        %v832 = vunpack.c.h.b16 %v396
        %v833 = vunpack.c.l.b16 %v397
        %v834 = vunpack.c.h.b16 %v397
        %v835 = vunpack.c.l.b16 %v398
        %v836 = vunpack.c.h.b16 %v398
        %v837 = vunpack.c.l.b16 %v399
        %v838 = vunpack.c.l.b16 %v400
        %v839 = vunpack.c.h.b16 %v400
        %v840 = vunpack.c.l.b16 %v401
        %v841 = vunpack.c.h.b16 %v401
        %v842 = vunpack.c.l.b16 %v402
        %v843 = vunpack.c.h.b16 %v402
        %v844 = vunpack.c.l.b16 %v403
        %v845 = vunpack.c.l.b16 %v404
        %v846 = vunpack.c.h.b16 %v404
        %v847 = vunpack.c.l.b16 %v405
        %v848 = vunpack.c.h.b16 %v405
        %v849 = vunpack.c.l.b16 %v406
        %v850 = vunpack.c.h.b16 %v406
        %v851 = vunpack.c.l.b16 %v407
        %v852 = vunpack.c.l.b16 %v408
        %v853 = vunpack.c.h.b16 %v408
        %v854 = vunpack.c.l.b16 %v409
        %v855 = vunpack.c.h.b16 %v409
        %v856 = vunpack.c.l.b16 %v410
        %v857 = vunpack.c.h.b16 %v410
        %v858 = vunpack.c.l.b16 %v411
        %v859 = vunpack.c.l.b16 %v412
        %v860 = vunpack.c.h.b16 %v412
        %v861 = vunpack.c.l.b16 %v413
        %v862 = vunpack.c.h.b16 %v413
        %v863 = vunpack.c.l.b16 %v414
        %v864 = vunpack.c.h.b16 %v414
        %v865 = vunpack.c.l.b16 %v415
        %v866 = vunpack.c.l.b16 %v416
        %v867 = vunpack.c.h.b16 %v416
        %v868 = vunpack.c.l.b16 %v417
        %v869 = vunpack.c.h.b16 %v417
        %v870 = vunpack.c.l.b16 %v418
        %v871 = vunpack.c.h.b16 %v418
        %v872 = vunpack.c.l.b16 %v419
        %v873 = vunpack.c.l.b16 %v420
        %v874 = vunpack.c.h.b16 %v420
        %v875 = vunpack.c.l.b16 %v421
        %v876 = vunpack.c.h.b16 %v421
        %v877 = vunpack.c.l.b16 %v422
        %v878 = vunpack.c.h.b16 %v422
        %v879 = vunpack.c.l.b16 %v423
        %v880 = vunpack.c.l.b16 %v424
        %v881 = vunpack.c.h.b16 %v424
        %v882 = vunpack.c.l.b16 %v425
        %v883 = vunpack.c.h.b16 %v425
        %v884 = vunpack.c.l.b16 %v426
        %v885 = vunpack.c.h.b16 %v426
        %v886 = vunpack.c.l.b16 %v427
        %v887 = vunpack.c.l.b16 %v428
        %v888 = vunpack.c.h.b16 %v428
        %v889 = vunpack.c.l.b16 %v429
        %v890 = vunpack.c.h.b16 %v429
        %v891 = vunpack.c.l.b16 %v430
        %v892 = vunpack.c.h.b16 %v430
        %v893 = vunpack.c.l.b16 %v431
        %v894 = vunpack.c.l.b16 %v432
        %v895 = vunpack.c.h.b16 %v432
        %v896 = vunpack.c.l.b16 %v433
        %v897 = vunpack.c.h.b16 %v433
        %v898 = vunpack.c.l.b16 %v434
        %v899 = vunpack.c.h.b16 %v434
        %v900 = vunpack.c.l.b16 %v435
        %v901 = vunpack.c.l.b16 %v436
        %v902 = vunpack.c.h.b16 %v436
        %v903 = vunpack.c.l.b16 %v437
        %v904 = vunpack.c.h.b16 %v437
        %v905 = vunpack.c.l.b16 %v438
        %v906 = vunpack.c.h.b16 %v438
        %v907 = vunpack.c.l.b16 %v439
        %v908 = vunpack.c.l.b16 %v440
        %v909 = vunpack.c.h.b16 %v440
        %v910 = vunpack.c.l.b16 %v441
        %v911 = vunpack.c.h.b16 %v441
        %v912 = vunpack.c.l.b16 %v442
        %v913 = vunpack.c.h.b16 %v442
        %v914 = vunpack.c.l.b16 %v443
        %v915 = vpack.c.b16 %v698, %v691
        %v916 = vpack.c.b16 %v699, %v692
        %v917 = vpack.c.b16 %v700, %v693
        %v918 = vpack.c.b16 %v701, %v694
        %v919 = vpack.c.b16 %v702, %v695
        %v920 = vpack.c.b16 %v703, %v696
        %v921 = vpack.c.b16 %v704, %v697
        %v922 = vpack.c.b16 %v712, %v705
        %v923 = vpack.c.b16 %v713, %v706
        %v924 = vpack.c.b16 %v714, %v707
        %v925 = vpack.c.b16 %v715, %v708
        %v926 = vpack.c.b16 %v716, %v709
        %v927 = vpack.c.b16 %v717, %v710
        %v928 = vpack.c.b16 %v718, %v711
        %v929 = vpack.c.b16 %v726, %v719
        %v930 = vpack.c.b16 %v727, %v720
        %v931 = vpack.c.b16 %v728, %v721
        %v932 = vpack.c.b16 %v729, %v722
        %v933 = vpack.c.b16 %v730, %v723
        %v934 = vpack.c.b16 %v731, %v724
        %v935 = vpack.c.b16 %v732, %v725
        %v936 = vpack.c.b16 %v740, %v733
        %v937 = vpack.c.b16 %v741, %v734
        %v938 = vpack.c.b16 %v742, %v735
        %v939 = vpack.c.b16 %v743, %v736
        %v940 = vpack.c.b16 %v744, %v737
        %v941 = vpack.c.b16 %v745, %v738
        %v942 = vpack.c.b16 %v746, %v739
        %v943 = vpack.c.b16 %v754, %v747
        %v944 = vpack.c.b16 %v755, %v748
        %v945 = vpack.c.b16 %v756, %v749
        %v946 = vpack.c.b16 %v757, %v750
        %v947 = vpack.c.b16 %v758, %v751
        %v948 = vpack.c.b16 %v759, %v752
        %v949 = vpack.c.b16 %v760, %v753
        %v950 = vpack.c.b16 %v768, %v761
        %v951 = vpack.c.b16 %v769, %v762
        %v952 = vpack.c.b16 %v770, %v763
        %v953 = vpack.c.b16 %v771, %v764
        %v954 = vpack.c.b16 %v772, %v765
        %v955 = vpack.c.b16 %v773, %v766
        %v956 = vpack.c.b16 %v774, %v767
        %v957 = vpack.c.b16 %v782, %v775
        %v958 = vpack.c.b16 %v783, %v776
        %v959 = vpack.c.b16 %v784, %v777
        %v960 = vpack.c.b16 %v785, %v778
        %v961 = vpack.c.b16 %v786, %v779
        %v962 = vpack.c.b16 %v787, %v780
        %v963 = vpack.c.b16 %v788, %v781
        %v964 = vpack.c.b16 %v796, %v789
        %v965 = vpack.c.b16 %v797, %v790
        %v966 = vpack.c.b16 %v798, %v791
        %v967 = vpack.c.b16 %v799, %v792
        %v968 = vpack.c.b16 %v800, %v793
        %v969 = vpack.c.b16 %v801, %v794
        %v970 = vpack.c.b16 %v802, %v795
        %v971 = vpack.c.b16 %v810, %v803
        %v972 = vpack.c.b16 %v811, %v804
        %v973 = vpack.c.b16 %v812, %v805
        %v974 = vpack.c.b16 %v813, %v806
        %v975 = vpack.c.b16 %v814, %v807
        %v976 = vpack.c.b16 %v815, %v808
        %v977 = vpack.c.b16 %v816, %v809
        %v978 = vpack.c.b16 %v824, %v817
        %v979 = vpack.c.b16 %v825, %v818
        %v980 = vpack.c.b16 %v826, %v819
        %v981 = vpack.c.b16 %v827, %v820
        %v982 = vpack.c.b16 %v828, %v821
        %v983 = vpack.c.b16 %v829, %v822
        %v984 = vpack.c.b16 %v830, %v823
        %v985 = vpack.c.b16 %v838, %v831
        %v986 = vpack.c.b16 %v839, %v832
        %v987 = vpack.c.b16 %v840, %v833
        %v988 = vpack.c.b16 %v841, %v834
        %v989 = vpack.c.b16 %v842, %v835
        %v990 = vpack.c.b16 %v843, %v836
        %v991 = vpack.c.b16 %v844, %v837
        %v992 = vpack.c.b16 %v852, %v845
        %v993 = vpack.c.b16 %v853, %v846
        %v994 = vpack.c.b16 %v854, %v847
        %v995 = vpack.c.b16 %v855, %v848
        %v996 = vpack.c.b16 %v856, %v849
        %v997 = vpack.c.b16 %v857, %v850
        %v998 = vpack.c.b16 %v858, %v851
        %v999 = vpack.c.b16 %v866, %v859
        %v1000 = vpack.c.b16 %v867, %v860
        %v1001 = vpack.c.b16 %v868, %v861
        %v1002 = vpack.c.b16 %v869, %v862
        %v1003 = vpack.c.b16 %v870, %v863
        %v1004 = vpack.c.b16 %v871, %v864
        %v1005 = vpack.c.b16 %v872, %v865
        %v1006 = vpack.c.b16 %v880, %v873
        %v1007 = vpack.c.b16 %v881, %v874
        %v1008 = vpack.c.b16 %v882, %v875
        %v1009 = vpack.c.b16 %v883, %v876
        %v1010 = vpack.c.b16 %v884, %v877
        %v1011 = vpack.c.b16 %v885, %v878
        %v1012 = vpack.c.b16 %v886, %v879
        %v1013 = vpack.c.b16 %v894, %v887
        %v1014 = vpack.c.b16 %v895, %v888
        %v1015 = vpack.c.b16 %v896, %v889
        %v1016 = vpack.c.b16 %v897, %v890
        %v1017 = vpack.c.b16 %v898, %v891
        %v1018 = vpack.c.b16 %v899, %v892
        %v1019 = vpack.c.b16 %v900, %v893
        %v1020 = vpack.c.b16 %v908, %v901
        %v1021 = vpack.c.b16 %v909, %v902
        %v1022 = vpack.c.b16 %v910, %v903
        %v1023 = vpack.c.b16 %v911, %v904
        %v1024 = vpack.c.b16 %v912, %v905
        %v1025 = vpack.c.b16 %v913, %v906
        %v1026 = vpack.c.b16 %v914, %v907
        %v1251 = vunpack.c.l.b16 %v444
        %v1252 = vunpack.c.l.b16 %v445
        %v1253 = vunpack.c.l.b16 %v446
        %v1254 = vunpack.c.l.b16 %v447
        %v1255 = vunpack.c.l.b16 %v448
        %v1256 = vunpack.c.l.b16 %v449
        %v1257 = vunpack.c.l.b16 %v450
        %v1258 = vunpack.c.l.b16 %v451
        %v1259 = vunpack.c.l.b16 %v452
        %v1260 = vunpack.c.l.b16 %v453
        %v1261 = vunpack.c.l.b16 %v454
        %v1262 = vunpack.c.l.b16 %v455
        %v1263 = vunpack.c.l.b16 %v456
        %v1264 = vunpack.c.l.b16 %v457
        %v1265 = vunpack.c.l.b16 %v458
        %v1266 = vunpack.c.l.b16 %v459
        %v1267 = vunpack.c.l.b16 %v460
        %v1268 = vunpack.c.l.b16 %v461
        %v1269 = vunpack.c.l.b16 %v462
        %v1270 = vunpack.c.l.b16 %v463
        %v1271 = vunpack.c.l.b16 %v464
        %v1272 = vunpack.c.l.b16 %v465
        %v1273 = vunpack.c.l.b16 %v466
        %v1274 = vunpack.c.l.b16 %v467
        %v1275 = vunpack.c.l.b16 %v468
        %v1276 = vunpack.c.l.b16 %v469
        %v1277 = vunpack.c.l.b16 %v470
        %v1278 = vunpack.c.l.b16 %v471
        %v1279 = vunpack.c.l.b16 %v472
        %v1280 = vunpack.c.l.b16 %v473
        %v1281 = vunpack.c.l.b16 %v474
        %v1282 = vunpack.c.l.b16 %v475
        %v1283 = vunpack.c.l.b16 %v476
        %v1284 = vunpack.c.l.b16 %v477
        %v1285 = vunpack.c.l.b16 %v478
        %v1286 = vunpack.c.l.b16 %v479
        %v1287 = vunpack.c.l.b16 %v480
        %v1288 = vunpack.c.l.b16 %v481
        %v1289 = vunpack.c.l.b16 %v482
        %v1290 = vunpack.c.l.b16 %v483
        %v1291 = vunpack.c.l.b16 %v484
        %v1292 = vunpack.c.l.b16 %v485
        %v1293 = vunpack.c.l.b16 %v486
        %v1294 = vunpack.c.l.b16 %v487
        %v1295 = vunpack.c.l.b16 %v488
        %v1296 = vunpack.c.l.b16 %v489
        %v1297 = vunpack.c.l.b16 %v490
        %v1298 = vunpack.c.l.b16 %v491
        %v1299 = vunpack.c.l.b16 %v492
        %v1300 = vunpack.c.l.b16 %v493
        %v1301 = vunpack.c.l.b16 %v494
        %v1302 = vunpack.c.l.b16 %v495
        %v1303 = vunpack.c.l.b16 %v496
        %v1304 = vunpack.c.l.b16 %v497
        %v1305 = vunpack.c.l.b16 %v498
        %v1306 = vunpack.c.l.b16 %v499
        %v1307 = vunpack.c.l.b16 %v500
        %v1308 = vunpack.c.l.b16 %v501
        %v1309 = vunpack.c.l.b16 %v502
        %v1310 = vunpack.c.l.b16 %v503
        %v1311 = vunpack.c.l.b16 %v504
        %v1312 = vunpack.c.l.b16 %v505
        %v1313 = vunpack.c.l.b16 %v506
        %v1314 = vunpack.c.l.b16 %v507
        %v1315 = vunpack.c.l.b16 %v508
        %v1316 = vunpack.c.l.b16 %v509
        %v1317 = vunpack.c.l.b16 %v510
        %v1318 = vunpack.c.l.b16 %v511
        %v1319 = vunpack.c.l.b16 %v512
        %v1320 = vunpack.c.l.b16 %v513
        %v1321 = vunpack.c.l.b16 %v514
        %v1322 = vunpack.c.l.b16 %v515
        %v1323 = vunpack.c.l.b16 %v516
        %v1324 = vunpack.c.l.b16 %v517
        %v1325 = vunpack.c.l.b16 %v518
        %v1326 = vunpack.c.l.b16 %v519
        %v1327 = vunpack.c.l.b16 %v520
        %v1328 = vunpack.c.l.b16 %v521
        %v1329 = vunpack.c.l.b16 %v522
        %v1330 = vunpack.c.l.b16 %v523
        %v1331 = vunpack.c.l.b16 %v524
        %v1332 = vunpack.c.l.b16 %v525
        %v1333 = vunpack.c.l.b16 %v526
        %v1334 = vunpack.c.l.b16 %v527
        %v1335 = vunpack.c.l.b16 %v528
        %v1336 = vunpack.c.l.b16 %v529
        %v1337 = vunpack.c.l.b16 %v530
        %v1338 = vunpack.c.l.b16 %v531
        %v1339 = vunpack.c.l.b16 %v532
        %v1340 = vunpack.c.l.b16 %v533
        %v1341 = vunpack.c.l.b16 %v534
        %v1342 = vunpack.c.l.b16 %v535
        %v1343 = vunpack.c.l.b16 %v536
        %v1344 = vunpack.c.l.b16 %v537
        %v1345 = vunpack.c.l.b16 %v538
        %v1346 = vunpack.c.l.b16 %v539
        %v1347 = vunpack.c.l.b16 %v540
        %v1348 = vunpack.c.l.b16 %v541
        %v1349 = vunpack.c.l.b16 %v542
        %v1350 = vunpack.c.l.b16 %v543
        %v1351 = vunpack.c.l.b16 %v544
        %v1352 = vunpack.c.l.b16 %v545
        %v1353 = vunpack.c.l.b16 %v546
        %v1354 = vunpack.c.l.b16 %v547
        %v1355 = vunpack.c.l.b16 %v548
        %v1356 = vunpack.c.l.b16 %v549
        %v1357 = vunpack.c.l.b16 %v550
        %v1358 = vunpack.c.l.b16 %v551
        %v1359 = vunpack.c.l.b16 %v552
        %v1360 = vunpack.c.l.b16 %v553
        %v1361 = vunpack.c.l.b16 %v554
        %v1362 = vunpack.c.l.b16 %v555
        %v1363 = vpack.c.b16 %v1252, %v1251
        %v1364 = vpack.c.b16 %v1254, %v1253
        %v1365 = vpack.c.b16 %v1256, %v1255
        %v1366 = vpack.c.b16 %v1258, %v1257
        %v1367 = vpack.c.b16 %v1260, %v1259
        %v1368 = vpack.c.b16 %v1262, %v1261
        %v1369 = vpack.c.b16 %v1264, %v1263
        %v1370 = vpack.c.b16 %v1266, %v1265
        %v1371 = vpack.c.b16 %v1268, %v1267
        %v1372 = vpack.c.b16 %v1270, %v1269
        %v1373 = vpack.c.b16 %v1272, %v1271
        %v1374 = vpack.c.b16 %v1274, %v1273
        %v1375 = vpack.c.b16 %v1276, %v1275
        %v1376 = vpack.c.b16 %v1278, %v1277
        %v1377 = vpack.c.b16 %v1280, %v1279
        %v1378 = vpack.c.b16 %v1282, %v1281
        %v1379 = vpack.c.b16 %v1284, %v1283
        %v1380 = vpack.c.b16 %v1286, %v1285
        %v1381 = vpack.c.b16 %v1288, %v1287
        %v1382 = vpack.c.b16 %v1290, %v1289
        %v1383 = vpack.c.b16 %v1292, %v1291
        %v1384 = vpack.c.b16 %v1294, %v1293
        %v1385 = vpack.c.b16 %v1296, %v1295
        %v1386 = vpack.c.b16 %v1298, %v1297
        %v1387 = vpack.c.b16 %v1300, %v1299
        %v1388 = vpack.c.b16 %v1302, %v1301
        %v1389 = vpack.c.b16 %v1304, %v1303
        %v1390 = vpack.c.b16 %v1306, %v1305
        %v1391 = vpack.c.b16 %v1308, %v1307
        %v1392 = vpack.c.b16 %v1310, %v1309
        %v1393 = vpack.c.b16 %v1312, %v1311
        %v1394 = vpack.c.b16 %v1314, %v1313
        %v1395 = vpack.c.b16 %v1316, %v1315
        %v1396 = vpack.c.b16 %v1318, %v1317
        %v1397 = vpack.c.b16 %v1320, %v1319
        %v1398 = vpack.c.b16 %v1322, %v1321
        %v1399 = vpack.c.b16 %v1324, %v1323
        %v1400 = vpack.c.b16 %v1326, %v1325
        %v1401 = vpack.c.b16 %v1328, %v1327
        %v1402 = vpack.c.b16 %v1330, %v1329
        %v1403 = vpack.c.b16 %v1332, %v1331
        %v1404 = vpack.c.b16 %v1334, %v1333
        %v1405 = vpack.c.b16 %v1336, %v1335
        %v1406 = vpack.c.b16 %v1338, %v1337
        %v1407 = vpack.c.b16 %v1340, %v1339
        %v1408 = vpack.c.b16 %v1342, %v1341
        %v1409 = vpack.c.b16 %v1344, %v1343
        %v1410 = vpack.c.b16 %v1346, %v1345
        %v1411 = vpack.c.b16 %v1348, %v1347
        %v1412 = vpack.c.b16 %v1350, %v1349
        %v1413 = vpack.c.b16 %v1352, %v1351
        %v1414 = vpack.c.b16 %v1354, %v1353
        %v1415 = vpack.c.b16 %v1356, %v1355
        %v1416 = vpack.c.b16 %v1358, %v1357
        %v1417 = vpack.c.b16 %v1360, %v1359
        %v1418 = vpack.c.b16 %v1362, %v1361
        %1475 = vmatprep.subr.bf16.mxu0 0
        %1476 = vmatpush1.bf16.msra.mxu0 %v1370
        %1477 = vmatprep.subr.bf16.mxu0 0
        %1478 = vmatpush1.bf16.msra.mxu0 %v1369
        %1479 = vmatprep.subr.bf16.mxu0 0
        %1480 = vmatpush1.bf16.msra.mxu0 %v1368
        %1481 = vmatprep.subr.bf16.mxu0 0
        %1482 = vmatpush1.bf16.msra.mxu0 %v1367
        %1483 = vmatprep.subr.bf16.mxu0 0
        %1484 = vmatpush1.bf16.msra.mxu0 %v1366
        %1485 = vmatprep.subr.bf16.mxu0 0
        %1486 = vmatpush1.bf16.msra.mxu0 %v1365
        %1487 = vmatprep.subr.bf16.mxu0 0
        %1488 = vmatpush1.bf16.msra.mxu0 %v1364
        %1489 = vmatprep.subr.bf16.mxu0 0
        %1490 = vmatpush1.bf16.msra.mxu0 %v1363
        %1491 = vmatprep.subr.bf16.mxu0 0
        %1492 = vmatpush2.bf16.msra.mxu0 %v1378
        %1493 = vmatprep.subr.bf16.mxu0 0
        %1494 = vmatpush2.bf16.msra.mxu0 %v1377
        %1495 = vmatprep.subr.bf16.mxu0 0
        %1496 = vmatpush2.bf16.msra.mxu0 %v1376
        %1497 = vmatprep.subr.bf16.mxu0 0
        %1498 = vmatpush2.bf16.msra.mxu0 %v1375
        %1499 = vmatprep.subr.bf16.mxu0 0
        %1500 = vmatpush2.bf16.msra.mxu0 %v1374
        %1501 = vmatprep.subr.bf16.mxu0 0
        %1502 = vmatpush2.bf16.msra.mxu0 %v1373
        %1503 = vmatprep.subr.bf16.mxu0 0
        %1504 = vmatpush2.bf16.msra.mxu0 %v1372
        %1505 = vmatprep.subr.bf16.mxu0 0
        %1506 = vmatpush2.bf16.msra.mxu0 %v1371
        %1507 = vmatprep.mubr.bf16.mxu0 %v916
        %1508 = vmatmul.mubr.bf16.gmra.mxu0 %v915
        %v1509 = vpop.f32.mrf.mxu0
        %v1510 = vadd.f32 %v561, %v1509
        %v1511 = vpop.f32.mrf.mxu0
        %v1512 = vpop.f32.mrf.mxu0
        %v1513 = vadd.f32 %v561, %v1512
        %v1514 = vpop.f32.mrf.mxu0
        %1515 = vmatprep.mubr.bf16.mxu0 %v923
        %1516 = vmatmul.mubr.bf16.gmra.mxu0 %v922
        %v1517 = vpop.f32.mrf.mxu0
        %v1518 = vadd.f32 %v561, %v1517
        %v1519 = vpop.f32.mrf.mxu0
        %v1520 = vpop.f32.mrf.mxu0
        %v1521 = vadd.f32 %v561, %v1520
        %v1522 = vpop.f32.mrf.mxu0
        %1523 = vmatprep.mubr.bf16.mxu0 %v930
        %1524 = vmatmul.mubr.bf16.gmra.mxu0 %v929
        %v1525 = vpop.f32.mrf.mxu0
        %v1526 = vadd.f32 %v561, %v1525
        %v1527 = vpop.f32.mrf.mxu0
        %v1528 = vpop.f32.mrf.mxu0
        %v1529 = vadd.f32 %v561, %v1528
        %v1530 = vpop.f32.mrf.mxu0
        %1531 = vmatprep.mubr.bf16.mxu0 %v937
        %1532 = vmatmul.mubr.bf16.gmra.mxu0 %v936
        %v1533 = vpop.f32.mrf.mxu0
        %v1534 = vadd.f32 %v561, %v1533
        %v1535 = vpop.f32.mrf.mxu0
        %v1536 = vpop.f32.mrf.mxu0
        %v1537 = vadd.f32 %v561, %v1536
        %v1538 = vpop.f32.mrf.mxu0
        %1539 = vmatprep.mubr.bf16.mxu0 %v944
        %1540 = vmatmul.mubr.bf16.gmra.mxu0 %v943
        %v1541 = vpop.f32.mrf.mxu0
        %v1542 = vadd.f32 %v561, %v1541
        %v1543 = vpop.f32.mrf.mxu0
        %v1544 = vpop.f32.mrf.mxu0
        %v1545 = vadd.f32 %v561, %v1544
        %v1546 = vpop.f32.mrf.mxu0
        %1547 = vmatprep.mubr.bf16.mxu0 %v951
        %1548 = vmatmul.mubr.bf16.gmra.mxu0 %v950
        %v1549 = vpop.f32.mrf.mxu0
        %v1550 = vadd.f32 %v561, %v1549
        %v1551 = vpop.f32.mrf.mxu0
        %v1552 = vpop.f32.mrf.mxu0
        %v1553 = vadd.f32 %v561, %v1552
        %v1554 = vpop.f32.mrf.mxu0
        %1555 = vmatprep.mubr.bf16.mxu0 %v958
        %1556 = vmatmul.mubr.bf16.gmra.mxu0 %v957
        %v1557 = vpop.f32.mrf.mxu0
        %v1558 = vadd.f32 %v561, %v1557
        %v1559 = vpop.f32.mrf.mxu0
        %v1560 = vpop.f32.mrf.mxu0
        %v1561 = vadd.f32 %v561, %v1560
        %v1562 = vpop.f32.mrf.mxu0
        %1563 = vmatprep.mubr.bf16.mxu0 %v965
        %1564 = vmatmul.mubr.bf16.gmra.mxu0 %v964
        %v1565 = vpop.f32.mrf.mxu0
        %v1566 = vadd.f32 %v561, %v1565
        %v1567 = vpop.f32.mrf.mxu0
        %v1568 = vpop.f32.mrf.mxu0
        %v1569 = vadd.f32 %v561, %v1568
        %v1570 = vpop.f32.mrf.mxu0
        %1571 = vmatprep.mubr.bf16.mxu0 %v972
        %1572 = vmatmul.mubr.bf16.gmra.mxu0 %v971
        %v1573 = vpop.f32.mrf.mxu0
        %v1574 = vadd.f32 %v561, %v1573
        %v1575 = vpop.f32.mrf.mxu0
        %v1576 = vpop.f32.mrf.mxu0
        %v1577 = vadd.f32 %v561, %v1576
        %v1578 = vpop.f32.mrf.mxu0
        %1579 = vmatprep.mubr.bf16.mxu0 %v979
        %1580 = vmatmul.mubr.bf16.gmra.mxu0 %v978
        %v1581 = vpop.f32.mrf.mxu0
        %v1582 = vadd.f32 %v561, %v1581
        %v1583 = vpop.f32.mrf.mxu0
        %v1584 = vpop.f32.mrf.mxu0
        %v1585 = vadd.f32 %v561, %v1584
        %v1586 = vpop.f32.mrf.mxu0
        %1587 = vmatprep.mubr.bf16.mxu0 %v986
        %1588 = vmatmul.mubr.bf16.gmra.mxu0 %v985
        %v1589 = vpop.f32.mrf.mxu0
        %v1590 = vadd.f32 %v561, %v1589
        %v1591 = vpop.f32.mrf.mxu0
        %v1592 = vpop.f32.mrf.mxu0
        %v1593 = vadd.f32 %v561, %v1592
        %v1594 = vpop.f32.mrf.mxu0
        %1595 = vmatprep.mubr.bf16.mxu0 %v993
        %1596 = vmatmul.mubr.bf16.gmra.mxu0 %v992
        %v1597 = vpop.f32.mrf.mxu0
        %v1598 = vadd.f32 %v561, %v1597
        %v1599 = vpop.f32.mrf.mxu0
        %v1600 = vpop.f32.mrf.mxu0
        %v1601 = vadd.f32 %v561, %v1600
        %v1602 = vpop.f32.mrf.mxu0
        %1603 = vmatprep.mubr.bf16.mxu0 %v1000
        %1604 = vmatmul.mubr.bf16.gmra.mxu0 %v999
        %v1605 = vpop.f32.mrf.mxu0
        %v1606 = vadd.f32 %v561, %v1605
        %v1607 = vpop.f32.mrf.mxu0
        %v1608 = vpop.f32.mrf.mxu0
        %v1609 = vadd.f32 %v561, %v1608
        %v1610 = vpop.f32.mrf.mxu0
        %1611 = vmatprep.mubr.bf16.mxu0 %v1007
        %1612 = vmatmul.mubr.bf16.gmra.mxu0 %v1006
        %v1613 = vpop.f32.mrf.mxu0
        %v1614 = vadd.f32 %v561, %v1613
        %v1615 = vpop.f32.mrf.mxu0
        %v1616 = vpop.f32.mrf.mxu0
        %v1617 = vadd.f32 %v561, %v1616
        %v1618 = vpop.f32.mrf.mxu0
        %1619 = vmatprep.mubr.bf16.mxu0 %v1014
        %1620 = vmatmul.mubr.bf16.gmra.mxu0 %v1013
        %v1621 = vpop.f32.mrf.mxu0
        %v1622 = vadd.f32 %v561, %v1621
        %v1623 = vpop.f32.mrf.mxu0
        %v1624 = vpop.f32.mrf.mxu0
        %v1625 = vadd.f32 %v561, %v1624
        %v1626 = vpop.f32.mrf.mxu0
        %1627 = vmatprep.mubr.bf16.mxu0 %v1021
        %1628 = vmatmul.mubr.bf16.gmra.mxu0 %v1020
        %v1629 = vpop.f32.mrf.mxu0
        %v1630 = vadd.f32 %v561, %v1629
        %v1631 = vpop.f32.mrf.mxu0
        %v1632 = vpop.f32.mrf.mxu0
        %v1633 = vadd.f32 %v561, %v1632
        %v1634 = vpop.f32.mrf.mxu0
        %1635 = vdwg.mxu0
        %1636 = vmatprep.subr.bf16.mxu0 0
        %1637 = vmatpush1.bf16.msra.mxu0 %v1386
        %1638 = vmatprep.subr.bf16.mxu0 0
        %1639 = vmatpush1.bf16.msra.mxu0 %v1385
        %1640 = vmatprep.subr.bf16.mxu0 0
        %1641 = vmatpush1.bf16.msra.mxu0 %v1384
        %1642 = vmatprep.subr.bf16.mxu0 0
        %1643 = vmatpush1.bf16.msra.mxu0 %v1383
        %1644 = vmatprep.subr.bf16.mxu0 0
        %1645 = vmatpush1.bf16.msra.mxu0 %v1382
        %1646 = vmatprep.subr.bf16.mxu0 0
        %1647 = vmatpush1.bf16.msra.mxu0 %v1381
        %1648 = vmatprep.subr.bf16.mxu0 0
        %1649 = vmatpush1.bf16.msra.mxu0 %v1380
        %1650 = vmatprep.subr.bf16.mxu0 0
        %1651 = vmatpush1.bf16.msra.mxu0 %v1379
        %1652 = vmatprep.subr.bf16.mxu0 0
        %1653 = vmatpush2.bf16.msra.mxu0 %v1394
        %1654 = vmatprep.subr.bf16.mxu0 0
        %1655 = vmatpush2.bf16.msra.mxu0 %v1393
        %1656 = vmatprep.subr.bf16.mxu0 0
        %1657 = vmatpush2.bf16.msra.mxu0 %v1392
        %1658 = vmatprep.subr.bf16.mxu0 0
        %1659 = vmatpush2.bf16.msra.mxu0 %v1391
        %1660 = vmatprep.subr.bf16.mxu0 0
        %1661 = vmatpush2.bf16.msra.mxu0 %v1390
        %1662 = vmatprep.subr.bf16.mxu0 0
        %1663 = vmatpush2.bf16.msra.mxu0 %v1389
        %1664 = vmatprep.subr.bf16.mxu0 0
        %1665 = vmatpush2.bf16.msra.mxu0 %v1388
        %1666 = vmatprep.subr.bf16.mxu0 0
        %1667 = vmatpush2.bf16.msra.mxu0 %v1387
        %1668 = vmatprep.mubr.bf16.mxu0 %v918
        %1669 = vmatmul.mubr.bf16.gmra.mxu0 %v917
        %v1670 = vpop.f32.mrf.mxu0
        %v1671 = vadd.f32 %v1510, %v1670
        %v1672 = vpop.f32.mrf.mxu0
        %v1673 = vpop.f32.mrf.mxu0
        %v1674 = vadd.f32 %v1513, %v1673
        %v1675 = vpop.f32.mrf.mxu0
        %1676 = vmatprep.mubr.bf16.mxu0 %v925
        %1677 = vmatmul.mubr.bf16.gmra.mxu0 %v924
        %v1678 = vpop.f32.mrf.mxu0
        %v1679 = vadd.f32 %v1518, %v1678
        %v1680 = vpop.f32.mrf.mxu0
        %v1681 = vpop.f32.mrf.mxu0
        %v1682 = vadd.f32 %v1521, %v1681
        %v1683 = vpop.f32.mrf.mxu0
        %1684 = vmatprep.mubr.bf16.mxu0 %v932
        %1685 = vmatmul.mubr.bf16.gmra.mxu0 %v931
        %v1686 = vpop.f32.mrf.mxu0
        %v1687 = vadd.f32 %v1526, %v1686
        %v1688 = vpop.f32.mrf.mxu0
        %v1689 = vpop.f32.mrf.mxu0
        %v1690 = vadd.f32 %v1529, %v1689
        %v1691 = vpop.f32.mrf.mxu0
        %1692 = vmatprep.mubr.bf16.mxu0 %v939
        %1693 = vmatmul.mubr.bf16.gmra.mxu0 %v938
        %v1694 = vpop.f32.mrf.mxu0
        %v1695 = vadd.f32 %v1534, %v1694
        %v1696 = vpop.f32.mrf.mxu0
        %v1697 = vpop.f32.mrf.mxu0
        %v1698 = vadd.f32 %v1537, %v1697
        %v1699 = vpop.f32.mrf.mxu0
        %1700 = vmatprep.mubr.bf16.mxu0 %v946
        %1701 = vmatmul.mubr.bf16.gmra.mxu0 %v945
        %v1702 = vpop.f32.mrf.mxu0
        %v1703 = vadd.f32 %v1542, %v1702
        %v1704 = vpop.f32.mrf.mxu0
        %v1705 = vpop.f32.mrf.mxu0
        %v1706 = vadd.f32 %v1545, %v1705
        %v1707 = vpop.f32.mrf.mxu0
        %1708 = vmatprep.mubr.bf16.mxu0 %v953
        %1709 = vmatmul.mubr.bf16.gmra.mxu0 %v952
        %v1710 = vpop.f32.mrf.mxu0
        %v1711 = vadd.f32 %v1550, %v1710
        %v1712 = vpop.f32.mrf.mxu0
        %v1713 = vpop.f32.mrf.mxu0
        %v1714 = vadd.f32 %v1553, %v1713
        %v1715 = vpop.f32.mrf.mxu0
        %1716 = vmatprep.mubr.bf16.mxu0 %v960
        %1717 = vmatmul.mubr.bf16.gmra.mxu0 %v959
        %v1718 = vpop.f32.mrf.mxu0
        %v1719 = vadd.f32 %v1558, %v1718
        %v1720 = vpop.f32.mrf.mxu0
        %v1721 = vpop.f32.mrf.mxu0
        %v1722 = vadd.f32 %v1561, %v1721
        %v1723 = vpop.f32.mrf.mxu0
        %1724 = vmatprep.mubr.bf16.mxu0 %v967
        %1725 = vmatmul.mubr.bf16.gmra.mxu0 %v966
        %v1726 = vpop.f32.mrf.mxu0
        %v1727 = vadd.f32 %v1566, %v1726
        %v1728 = vpop.f32.mrf.mxu0
        %v1729 = vpop.f32.mrf.mxu0
        %v1730 = vadd.f32 %v1569, %v1729
        %v1731 = vpop.f32.mrf.mxu0
        %1732 = vmatprep.mubr.bf16.mxu0 %v974
        %1733 = vmatmul.mubr.bf16.gmra.mxu0 %v973
        %v1734 = vpop.f32.mrf.mxu0
        %v1735 = vadd.f32 %v1574, %v1734
        %v1736 = vpop.f32.mrf.mxu0
        %v1737 = vpop.f32.mrf.mxu0
        %v1738 = vadd.f32 %v1577, %v1737
        %v1739 = vpop.f32.mrf.mxu0
        %1740 = vmatprep.mubr.bf16.mxu0 %v981
        %1741 = vmatmul.mubr.bf16.gmra.mxu0 %v980
        %v1742 = vpop.f32.mrf.mxu0
        %v1743 = vadd.f32 %v1582, %v1742
        %v1744 = vpop.f32.mrf.mxu0
        %v1745 = vpop.f32.mrf.mxu0
        %v1746 = vadd.f32 %v1585, %v1745
        %v1747 = vpop.f32.mrf.mxu0
        %1748 = vmatprep.mubr.bf16.mxu0 %v988
        %1749 = vmatmul.mubr.bf16.gmra.mxu0 %v987
        %v1750 = vpop.f32.mrf.mxu0
        %v1751 = vadd.f32 %v1590, %v1750
        %v1752 = vpop.f32.mrf.mxu0
        %v1753 = vpop.f32.mrf.mxu0
        %v1754 = vadd.f32 %v1593, %v1753
        %v1755 = vpop.f32.mrf.mxu0
        %1756 = vmatprep.mubr.bf16.mxu0 %v995
        %1757 = vmatmul.mubr.bf16.gmra.mxu0 %v994
        %v1758 = vpop.f32.mrf.mxu0
        %v1759 = vadd.f32 %v1598, %v1758
        %v1760 = vpop.f32.mrf.mxu0
        %v1761 = vpop.f32.mrf.mxu0
        %v1762 = vadd.f32 %v1601, %v1761
        %v1763 = vpop.f32.mrf.mxu0
        %1764 = vmatprep.mubr.bf16.mxu0 %v1002
        %1765 = vmatmul.mubr.bf16.gmra.mxu0 %v1001
        %v1766 = vpop.f32.mrf.mxu0
        %v1767 = vadd.f32 %v1606, %v1766
        %v1768 = vpop.f32.mrf.mxu0
        %v1769 = vpop.f32.mrf.mxu0
        %v1770 = vadd.f32 %v1609, %v1769
        %v1771 = vpop.f32.mrf.mxu0
        %1772 = vmatprep.mubr.bf16.mxu0 %v1009
        %1773 = vmatmul.mubr.bf16.gmra.mxu0 %v1008
        %v1774 = vpop.f32.mrf.mxu0
        %v1775 = vadd.f32 %v1614, %v1774
        %v1776 = vpop.f32.mrf.mxu0
        %v1777 = vpop.f32.mrf.mxu0
        %v1778 = vadd.f32 %v1617, %v1777
        %v1779 = vpop.f32.mrf.mxu0
        %1780 = vmatprep.mubr.bf16.mxu0 %v1016
        %1781 = vmatmul.mubr.bf16.gmra.mxu0 %v1015
        %v1782 = vpop.f32.mrf.mxu0
        %v1783 = vadd.f32 %v1622, %v1782
        %v1784 = vpop.f32.mrf.mxu0
        %v1785 = vpop.f32.mrf.mxu0
        %v1786 = vadd.f32 %v1625, %v1785
        %v1787 = vpop.f32.mrf.mxu0
        %1788 = vmatprep.mubr.bf16.mxu0 %v1023
        %1789 = vmatmul.mubr.bf16.gmra.mxu0 %v1022
        %v1790 = vpop.f32.mrf.mxu0
        %v1791 = vadd.f32 %v1630, %v1790
        %v1792 = vpop.f32.mrf.mxu0
        %v1793 = vpop.f32.mrf.mxu0
        %v1794 = vadd.f32 %v1633, %v1793
        %v1795 = vpop.f32.mrf.mxu0
        %1796 = vdwg.mxu0
        %1797 = vmatprep.subr.bf16.mxu0 0
        %1798 = vmatpush1.bf16.msra.mxu0 %v1402
        %1799 = vmatprep.subr.bf16.mxu0 0
        %1800 = vmatpush1.bf16.msra.mxu0 %v1401
        %1801 = vmatprep.subr.bf16.mxu0 0
        %1802 = vmatpush1.bf16.msra.mxu0 %v1400
        %1803 = vmatprep.subr.bf16.mxu0 0
        %1804 = vmatpush1.bf16.msra.mxu0 %v1399
        %1805 = vmatprep.subr.bf16.mxu0 0
        %1806 = vmatpush1.bf16.msra.mxu0 %v1398
        %1807 = vmatprep.subr.bf16.mxu0 0
        %1808 = vmatpush1.bf16.msra.mxu0 %v1397
        %1809 = vmatprep.subr.bf16.mxu0 0
        %1810 = vmatpush1.bf16.msra.mxu0 %v1396
        %1811 = vmatprep.subr.bf16.mxu0 0
        %1812 = vmatpush1.bf16.msra.mxu0 %v1395
        %1813 = vmatprep.subr.bf16.mxu0 0
        %1814 = vmatpush2.bf16.msra.mxu0 %v1410
        %1815 = vmatprep.subr.bf16.mxu0 0
        %1816 = vmatpush2.bf16.msra.mxu0 %v1409
        %1817 = vmatprep.subr.bf16.mxu0 0
        %1818 = vmatpush2.bf16.msra.mxu0 %v1408
        %1819 = vmatprep.subr.bf16.mxu0 0
        %1820 = vmatpush2.bf16.msra.mxu0 %v1407
        %1821 = vmatprep.subr.bf16.mxu0 0
        %1822 = vmatpush2.bf16.msra.mxu0 %v1406
        %1823 = vmatprep.subr.bf16.mxu0 0
        %1824 = vmatpush2.bf16.msra.mxu0 %v1405
        %1825 = vmatprep.subr.bf16.mxu0 0
        %1826 = vmatpush2.bf16.msra.mxu0 %v1404
        %1827 = vmatprep.subr.bf16.mxu0 0
        %1828 = vmatpush2.bf16.msra.mxu0 %v1403
        %1829 = vmatprep.mubr.bf16.mxu0 %v920
        %1830 = vmatmul.mubr.bf16.gmra.mxu0 %v919
        %v1831 = vpop.f32.mrf.mxu0
        %v1832 = vadd.f32 %v1671, %v1831
        %v1833 = vpop.f32.mrf.mxu0
        %v1834 = vpop.f32.mrf.mxu0
        %v1835 = vadd.f32 %v1674, %v1834
        %v1836 = vpop.f32.mrf.mxu0
        %1837 = vmatprep.mubr.bf16.mxu0 %v927
        %1838 = vmatmul.mubr.bf16.gmra.mxu0 %v926
        %v1839 = vpop.f32.mrf.mxu0
        %v1840 = vadd.f32 %v1679, %v1839
        %v1841 = vpop.f32.mrf.mxu0
        %v1842 = vpop.f32.mrf.mxu0
        %v1843 = vadd.f32 %v1682, %v1842
        %v1844 = vpop.f32.mrf.mxu0
        %1845 = vmatprep.mubr.bf16.mxu0 %v934
        %1846 = vmatmul.mubr.bf16.gmra.mxu0 %v933
        %v1847 = vpop.f32.mrf.mxu0
        %v1848 = vadd.f32 %v1687, %v1847
        %v1849 = vpop.f32.mrf.mxu0
        %v1850 = vpop.f32.mrf.mxu0
        %v1851 = vadd.f32 %v1690, %v1850
        %v1852 = vpop.f32.mrf.mxu0
        %1853 = vmatprep.mubr.bf16.mxu0 %v941
        %1854 = vmatmul.mubr.bf16.gmra.mxu0 %v940
        %v1855 = vpop.f32.mrf.mxu0
        %v1856 = vadd.f32 %v1695, %v1855
        %v1857 = vpop.f32.mrf.mxu0
        %v1858 = vpop.f32.mrf.mxu0
        %v1859 = vadd.f32 %v1698, %v1858
        %v1860 = vpop.f32.mrf.mxu0
        %1861 = vmatprep.mubr.bf16.mxu0 %v948
        %1862 = vmatmul.mubr.bf16.gmra.mxu0 %v947
        %v1863 = vpop.f32.mrf.mxu0
        %v1864 = vadd.f32 %v1703, %v1863
        %v1865 = vpop.f32.mrf.mxu0
        %v1866 = vpop.f32.mrf.mxu0
        %v1867 = vadd.f32 %v1706, %v1866
        %v1868 = vpop.f32.mrf.mxu0
        %1869 = vmatprep.mubr.bf16.mxu0 %v955
        %1870 = vmatmul.mubr.bf16.gmra.mxu0 %v954
        %v1871 = vpop.f32.mrf.mxu0
        %v1872 = vadd.f32 %v1711, %v1871
        %v1873 = vpop.f32.mrf.mxu0
        %v1874 = vpop.f32.mrf.mxu0
        %v1875 = vadd.f32 %v1714, %v1874
        %v1876 = vpop.f32.mrf.mxu0
        %1877 = vmatprep.mubr.bf16.mxu0 %v962
        %1878 = vmatmul.mubr.bf16.gmra.mxu0 %v961
        %v1879 = vpop.f32.mrf.mxu0
        %v1880 = vadd.f32 %v1719, %v1879
        %v1881 = vpop.f32.mrf.mxu0
        %v1882 = vpop.f32.mrf.mxu0
        %v1883 = vadd.f32 %v1722, %v1882
        %v1884 = vpop.f32.mrf.mxu0
        %1885 = vmatprep.mubr.bf16.mxu0 %v969
        %1886 = vmatmul.mubr.bf16.gmra.mxu0 %v968
        %v1887 = vpop.f32.mrf.mxu0
        %v1888 = vadd.f32 %v1727, %v1887
        %v1889 = vpop.f32.mrf.mxu0
        %v1890 = vpop.f32.mrf.mxu0
        %v1891 = vadd.f32 %v1730, %v1890
        %v1892 = vpop.f32.mrf.mxu0
        %1893 = vmatprep.mubr.bf16.mxu0 %v976
        %1894 = vmatmul.mubr.bf16.gmra.mxu0 %v975
        %v1895 = vpop.f32.mrf.mxu0
        %v1896 = vadd.f32 %v1735, %v1895
        %v1897 = vpop.f32.mrf.mxu0
        %v1898 = vpop.f32.mrf.mxu0
        %v1899 = vadd.f32 %v1738, %v1898
        %v1900 = vpop.f32.mrf.mxu0
        %1901 = vmatprep.mubr.bf16.mxu0 %v983
        %1902 = vmatmul.mubr.bf16.gmra.mxu0 %v982
        %v1903 = vpop.f32.mrf.mxu0
        %v1904 = vadd.f32 %v1743, %v1903
        %v1905 = vpop.f32.mrf.mxu0
        %v1906 = vpop.f32.mrf.mxu0
        %v1907 = vadd.f32 %v1746, %v1906
        %v1908 = vpop.f32.mrf.mxu0
        %1909 = vmatprep.mubr.bf16.mxu0 %v990
        %1910 = vmatmul.mubr.bf16.gmra.mxu0 %v989
        %v1911 = vpop.f32.mrf.mxu0
        %v1912 = vadd.f32 %v1751, %v1911
        %v1913 = vpop.f32.mrf.mxu0
        %v1914 = vpop.f32.mrf.mxu0
        %v1915 = vadd.f32 %v1754, %v1914
        %v1916 = vpop.f32.mrf.mxu0
        %1917 = vmatprep.mubr.bf16.mxu0 %v997
        %1918 = vmatmul.mubr.bf16.gmra.mxu0 %v996
        %v1919 = vpop.f32.mrf.mxu0
        %v1920 = vadd.f32 %v1759, %v1919
        %v1921 = vpop.f32.mrf.mxu0
        %v1922 = vpop.f32.mrf.mxu0
        %v1923 = vadd.f32 %v1762, %v1922
        %v1924 = vpop.f32.mrf.mxu0
        %1925 = vmatprep.mubr.bf16.mxu0 %v1004
        %1926 = vmatmul.mubr.bf16.gmra.mxu0 %v1003
        %v1927 = vpop.f32.mrf.mxu0
        %v1928 = vadd.f32 %v1767, %v1927
        %v1929 = vpop.f32.mrf.mxu0
        %v1930 = vpop.f32.mrf.mxu0
        %v1931 = vadd.f32 %v1770, %v1930
        %v1932 = vpop.f32.mrf.mxu0
        %1933 = vmatprep.mubr.bf16.mxu0 %v1011
        %1934 = vmatmul.mubr.bf16.gmra.mxu0 %v1010
        %v1935 = vpop.f32.mrf.mxu0
        %v1936 = vadd.f32 %v1775, %v1935
        %v1937 = vpop.f32.mrf.mxu0
        %v1938 = vpop.f32.mrf.mxu0
        %v1939 = vadd.f32 %v1778, %v1938
        %v1940 = vpop.f32.mrf.mxu0
        %1941 = vmatprep.mubr.bf16.mxu0 %v1018
        %1942 = vmatmul.mubr.bf16.gmra.mxu0 %v1017
        %v1943 = vpop.f32.mrf.mxu0
        %v1944 = vadd.f32 %v1783, %v1943
        %v1945 = vpop.f32.mrf.mxu0
        %v1946 = vpop.f32.mrf.mxu0
        %v1947 = vadd.f32 %v1786, %v1946
        %v1948 = vpop.f32.mrf.mxu0
        %1949 = vmatprep.mubr.bf16.mxu0 %v1025
        %1950 = vmatmul.mubr.bf16.gmra.mxu0 %v1024
        %v1951 = vpop.f32.mrf.mxu0
        %v1952 = vadd.f32 %v1791, %v1951
        %v1953 = vpop.f32.mrf.mxu0
        %v1954 = vpop.f32.mrf.mxu0
        %v1955 = vadd.f32 %v1794, %v1954
        %v1956 = vpop.f32.mrf.mxu0
        %1957 = vdwg.mxu0
        %1958 = vmatprep.subr.bf16.mxu0 0
        %1959 = vmatpush1.bf16.msra.mxu0 %v1418
        %1960 = vmatprep.subr.bf16.mxu0 0
        %1961 = vmatpush1.bf16.msra.mxu0 %v1417
        %1962 = vmatprep.subr.bf16.mxu0 0
        %1963 = vmatpush1.bf16.msra.mxu0 %v1416
        %1964 = vmatprep.subr.bf16.mxu0 0
        %1965 = vmatpush1.bf16.msra.mxu0 %v1415
        %1966 = vmatprep.subr.bf16.mxu0 0
        %1967 = vmatpush1.bf16.msra.mxu0 %v1414
        %1968 = vmatprep.subr.bf16.mxu0 0
        %1969 = vmatpush1.bf16.msra.mxu0 %v1413
        %1970 = vmatprep.subr.bf16.mxu0 0
        %1971 = vmatpush1.bf16.msra.mxu0 %v1412
        %1972 = vmatprep.subr.bf16.mxu0 0
        %1973 = vmatpush1.bf16.msra.mxu0 %v1411
        %1974 = vmatprep.subr.bf16.mxu0 0
        %1975 = vmatpush2.bf16.msra.mxu0 0
        %1976 = vmatprep.subr.bf16.mxu0 0
        %1977 = vmatpush2.bf16.msra.mxu0 0
        %1978 = vmatprep.subr.bf16.mxu0 0
        %1979 = vmatpush2.bf16.msra.mxu0 0
        %1980 = vmatprep.subr.bf16.mxu0 0
        %1981 = vmatpush2.bf16.msra.mxu0 0
        %1982 = vmatprep.subr.bf16.mxu0 0
        %1983 = vmatpush2.bf16.msra.mxu0 0
        %1984 = vmatprep.subr.bf16.mxu0 0
        %1985 = vmatpush2.bf16.msra.mxu0 0
        %1986 = vmatprep.subr.bf16.mxu0 0
        %1987 = vmatpush2.bf16.msra.mxu0 0
        %1988 = vmatprep.subr.bf16.mxu0 0
        %1989 = vmatpush2.bf16.msra.mxu0 0
        %1990 = vmatprep.mubr.bf16.mxu0 0
        %1991 = vmatmul.mubr.bf16.gmra.mxu0 %v921
        %v1992 = vpop.f32.mrf.mxu0
        %v1993 = vadd.f32 %v1832, %v1992
        %v1994 = vpop.f32.mrf.mxu0
        %v1995 = vpop.f32.mrf.mxu0
        %v1996 = vadd.f32 %v1835, %v1995
        %v1997 = vpop.f32.mrf.mxu0
        %1998 = vmatprep.mubr.bf16.mxu0 0
        %1999 = vmatmul.mubr.bf16.gmra.mxu0 %v928
        %v2000 = vpop.f32.mrf.mxu0
        %v2001 = vadd.f32 %v1840, %v2000
        %v2002 = vpop.f32.mrf.mxu0
        %v2003 = vpop.f32.mrf.mxu0
        %v2004 = vadd.f32 %v1843, %v2003
        %v2005 = vpop.f32.mrf.mxu0
        %2006 = vmatprep.mubr.bf16.mxu0 0
        %2007 = vmatmul.mubr.bf16.gmra.mxu0 %v935
        %v2008 = vpop.f32.mrf.mxu0
        %v2009 = vadd.f32 %v1848, %v2008
        %v2010 = vpop.f32.mrf.mxu0
        %v2011 = vpop.f32.mrf.mxu0
        %v2012 = vadd.f32 %v1851, %v2011
        %v2013 = vpop.f32.mrf.mxu0
        %2014 = vmatprep.mubr.bf16.mxu0 0
        %2015 = vmatmul.mubr.bf16.gmra.mxu0 %v942
        %v2016 = vpop.f32.mrf.mxu0
        %v2017 = vadd.f32 %v1856, %v2016
        %v2018 = vpop.f32.mrf.mxu0
        %v2019 = vpop.f32.mrf.mxu0
        %v2020 = vadd.f32 %v1859, %v2019
        %v2021 = vpop.f32.mrf.mxu0
        %2022 = vmatprep.mubr.bf16.mxu0 0
        %2023 = vmatmul.mubr.bf16.gmra.mxu0 %v949
        %v2024 = vpop.f32.mrf.mxu0
        %v2025 = vadd.f32 %v1864, %v2024
        %v2026 = vpop.f32.mrf.mxu0
        %v2027 = vpop.f32.mrf.mxu0
        %v2028 = vadd.f32 %v1867, %v2027
        %v2029 = vpop.f32.mrf.mxu0
        %2030 = vmatprep.mubr.bf16.mxu0 0
        %2031 = vmatmul.mubr.bf16.gmra.mxu0 %v956
        %v2032 = vpop.f32.mrf.mxu0
        %v2033 = vadd.f32 %v1872, %v2032
        %v2034 = vpop.f32.mrf.mxu0
        %v2035 = vpop.f32.mrf.mxu0
        %v2036 = vadd.f32 %v1875, %v2035
        %v2037 = vpop.f32.mrf.mxu0
        %2038 = vmatprep.mubr.bf16.mxu0 0
        %2039 = vmatmul.mubr.bf16.gmra.mxu0 %v963
        %v2040 = vpop.f32.mrf.mxu0
        %v2041 = vadd.f32 %v1880, %v2040
        %v2042 = vpop.f32.mrf.mxu0
        %v2043 = vpop.f32.mrf.mxu0
        %v2044 = vadd.f32 %v1883, %v2043
        %v2045 = vpop.f32.mrf.mxu0
        %2046 = vmatprep.mubr.bf16.mxu0 0
        %2047 = vmatmul.mubr.bf16.gmra.mxu0 %v970
        %v2048 = vpop.f32.mrf.mxu0
        %v2049 = vadd.f32 %v1888, %v2048
        %v2050 = vpop.f32.mrf.mxu0
        %v2051 = vpop.f32.mrf.mxu0
        %v2052 = vadd.f32 %v1891, %v2051
        %v2053 = vpop.f32.mrf.mxu0
        %2054 = vmatprep.mubr.bf16.mxu0 0
        %2055 = vmatmul.mubr.bf16.gmra.mxu0 %v977
        %v2056 = vpop.f32.mrf.mxu0
        %v2057 = vadd.f32 %v1896, %v2056
        %v2058 = vpop.f32.mrf.mxu0
        %v2059 = vpop.f32.mrf.mxu0
        %v2060 = vadd.f32 %v1899, %v2059
        %v2061 = vpop.f32.mrf.mxu0
        %2062 = vmatprep.mubr.bf16.mxu0 0
        %2063 = vmatmul.mubr.bf16.gmra.mxu0 %v984
        %v2064 = vpop.f32.mrf.mxu0
        %v2065 = vadd.f32 %v1904, %v2064
        %v2066 = vpop.f32.mrf.mxu0
        %v2067 = vpop.f32.mrf.mxu0
        %v2068 = vadd.f32 %v1907, %v2067
        %v2069 = vpop.f32.mrf.mxu0
        %2070 = vmatprep.mubr.bf16.mxu0 0
        %2071 = vmatmul.mubr.bf16.gmra.mxu0 %v991
        %v2072 = vpop.f32.mrf.mxu0
        %v2073 = vadd.f32 %v1912, %v2072
        %v2074 = vpop.f32.mrf.mxu0
        %v2075 = vpop.f32.mrf.mxu0
        %v2076 = vadd.f32 %v1915, %v2075
        %v2077 = vpop.f32.mrf.mxu0
        %2078 = vmatprep.mubr.bf16.mxu0 0
        %2079 = vmatmul.mubr.bf16.gmra.mxu0 %v998
        %v2080 = vpop.f32.mrf.mxu0
        %v2081 = vadd.f32 %v1920, %v2080
        %v2082 = vpop.f32.mrf.mxu0
        %v2083 = vpop.f32.mrf.mxu0
        %v2084 = vadd.f32 %v1923, %v2083
        %v2085 = vpop.f32.mrf.mxu0
        %2086 = vmatprep.mubr.bf16.mxu0 0
        %2087 = vmatmul.mubr.bf16.gmra.mxu0 %v1005
        %v2088 = vpop.f32.mrf.mxu0
        %v2089 = vadd.f32 %v1928, %v2088
        %v2090 = vpop.f32.mrf.mxu0
        %v2091 = vpop.f32.mrf.mxu0
        %v2092 = vadd.f32 %v1931, %v2091
        %v2093 = vpop.f32.mrf.mxu0
        %2094 = vmatprep.mubr.bf16.mxu0 0
        %2095 = vmatmul.mubr.bf16.gmra.mxu0 %v1012
        %v2096 = vpop.f32.mrf.mxu0
        %v2097 = vadd.f32 %v1936, %v2096
        %v2098 = vpop.f32.mrf.mxu0
        %v2099 = vpop.f32.mrf.mxu0
        %v2100 = vadd.f32 %v1939, %v2099
        %v2101 = vpop.f32.mrf.mxu0
        %2102 = vmatprep.mubr.bf16.mxu0 0
        %2103 = vmatmul.mubr.bf16.gmra.mxu0 %v1019
        %v2104 = vpop.f32.mrf.mxu0
        %v2105 = vadd.f32 %v1944, %v2104
        %v2106 = vpop.f32.mrf.mxu0
        %v2107 = vpop.f32.mrf.mxu0
        %v2108 = vadd.f32 %v1947, %v2107
        %v2109 = vpop.f32.mrf.mxu0
        %2110 = vmatprep.mubr.bf16.mxu0 0
        %2111 = vmatmul.mubr.bf16.gmra.mxu0 %v1026
        %v2112 = vpop.f32.mrf.mxu0
        %v2113 = vadd.f32 %v1952, %v2112
        %v2114 = vpop.f32.mrf.mxu0
        %v2115 = vpop.f32.mrf.mxu0
        %v2116 = vadd.f32 %v1955, %v2115
        %v2117 = vpop.f32.mrf.mxu0
        %2118 = vdwg.mxu0
        %s2119 = smul.u32 %s25, 3266489917
        %s2120 = sadd.s32 %s2119, 579034437
        %v2121 = vlaneseq
        %v2122 = vshrl.u32 %v2121, 7
        %v2123 = vadd.s32 %v2122, 8
        %v2124 = vadd.s32 %v2122, 16
        %v2125 = vadd.s32 %v2122, 24
        %v2126 = vadd.s32 %v2122, 32
        %v2127 = vadd.s32 %v2122, 40
        %v2128 = vadd.s32 %v2122, 48
        %v2129 = vadd.s32 %v2122, 56
        %v2130 = vadd.s32 %v2122, 64
        %v2131 = vadd.s32 %v2122, 72
        %v2132 = vadd.s32 %v2122, 80
        %v2133 = vadd.s32 %v2122, 88
        %v2134 = vadd.s32 %v2122, 96
        %v2135 = vadd.s32 %v2122, 104
        %v2136 = vadd.s32 %v2122, 112
        %v2137 = vadd.s32 %v2122, 120
        %v2138 = vadd.s32 %v2122, 128
        %v2139 = vadd.s32 %v2122, 136
        %v2140 = vadd.s32 %v2122, 144
        %v2141 = vadd.s32 %v2122, 152
        %v2142 = vadd.s32 %v2122, 160
        %v2143 = vadd.s32 %v2122, 168
        %v2144 = vadd.s32 %v2122, 176
        %v2145 = vadd.s32 %v2122, 184
        %v2146 = vadd.s32 %v2122, 192
        %v2147 = vadd.s32 %v2122, 200
        %v2148 = vadd.s32 %v2122, 208
        %v2149 = vadd.s32 %v2122, 216
        %v2150 = vadd.s32 %v2122, 224
        %v2151 = vadd.s32 %v2122, 232
        %v2152 = vadd.s32 %v2122, 240
        %v2153 = vadd.s32 %v2122, 248
        %v2154 = vlaneseq
        %v2155 = vand.u32 %v2154, 127
        %v2156 = vmul.u32 %v2122, 2654435769
        %v2157 = vmul.u32 %v2123, 2654435769
        %v2158 = vmul.u32 %v2124, 2654435769
        %v2159 = vmul.u32 %v2125, 2654435769
        %v2160 = vmul.u32 %v2126, 2654435769
        %v2161 = vmul.u32 %v2127, 2654435769
        %v2162 = vmul.u32 %v2128, 2654435769
        %v2163 = vmul.u32 %v2129, 2654435769
        %v2164 = vmul.u32 %v2130, 2654435769
        %v2165 = vmul.u32 %v2131, 2654435769
        %v2166 = vmul.u32 %v2132, 2654435769
        %v2167 = vmul.u32 %v2133, 2654435769
        %v2168 = vmul.u32 %v2134, 2654435769
        %v2169 = vmul.u32 %v2135, 2654435769
        %v2170 = vmul.u32 %v2136, 2654435769
        %v2171 = vmul.u32 %v2137, 2654435769
        %v2172 = vmul.u32 %v2138, 2654435769
        %v2173 = vmul.u32 %v2139, 2654435769
        %v2174 = vmul.u32 %v2140, 2654435769
        %v2175 = vmul.u32 %v2141, 2654435769
        %v2176 = vmul.u32 %v2142, 2654435769
        %v2177 = vmul.u32 %v2143, 2654435769
        %v2178 = vmul.u32 %v2144, 2654435769
        %v2179 = vmul.u32 %v2145, 2654435769
        %v2180 = vmul.u32 %v2146, 2654435769
        %v2181 = vmul.u32 %v2147, 2654435769
        %v2182 = vmul.u32 %v2148, 2654435769
        %v2183 = vmul.u32 %v2149, 2654435769
        %v2184 = vmul.u32 %v2150, 2654435769
        %v2185 = vmul.u32 %v2151, 2654435769
        %v2186 = vmul.u32 %v2152, 2654435769
        %v2187 = vmul.u32 %v2153, 2654435769
        %v2188 = vmul.u32 %v2155, 2246822507
        %v2189 = vadd.s32 %v2156, %v2188
        %v2190 = vadd.s32 %v2157, %v2188
        %v2191 = vadd.s32 %v2158, %v2188
        %v2192 = vadd.s32 %v2159, %v2188
        %v2193 = vadd.s32 %v2160, %v2188
        %v2194 = vadd.s32 %v2161, %v2188
        %v2195 = vadd.s32 %v2162, %v2188
        %v2196 = vadd.s32 %v2163, %v2188
        %v2197 = vadd.s32 %v2164, %v2188
        %v2198 = vadd.s32 %v2165, %v2188
        %v2199 = vadd.s32 %v2166, %v2188
        %v2200 = vadd.s32 %v2167, %v2188
        %v2201 = vadd.s32 %v2168, %v2188
        %v2202 = vadd.s32 %v2169, %v2188
        %v2203 = vadd.s32 %v2170, %v2188
        %v2204 = vadd.s32 %v2171, %v2188
        %v2205 = vadd.s32 %v2172, %v2188
        %v2206 = vadd.s32 %v2173, %v2188
        %v2207 = vadd.s32 %v2174, %v2188
        %v2208 = vadd.s32 %v2175, %v2188
        %v2209 = vadd.s32 %v2176, %v2188
        %v2210 = vadd.s32 %v2177, %v2188
        %v2211 = vadd.s32 %v2178, %v2188
        %v2212 = vadd.s32 %v2179, %v2188
        %v2213 = vadd.s32 %v2180, %v2188
        %v2214 = vadd.s32 %v2181, %v2188
        %v2215 = vadd.s32 %v2182, %v2188
        %v2216 = vadd.s32 %v2183, %v2188
        %v2217 = vadd.s32 %v2184, %v2188
        %v2218 = vadd.s32 %v2185, %v2188
        %v2219 = vadd.s32 %v2186, %v2188
        %v2220 = vadd.s32 %v2187, %v2188
        %v2221 = vstv %s2120
        %v2222 = vadd.s32 %v2189, %v2221
        %v2223 = vadd.s32 %v2190, %v2221
        %v2224 = vadd.s32 %v2191, %v2221
        %v2225 = vadd.s32 %v2192, %v2221
        %v2226 = vadd.s32 %v2193, %v2221
        %v2227 = vadd.s32 %v2194, %v2221
        %v2228 = vadd.s32 %v2195, %v2221
        %v2229 = vadd.s32 %v2196, %v2221
        %v2230 = vadd.s32 %v2197, %v2221
        %v2231 = vadd.s32 %v2198, %v2221
        %v2232 = vadd.s32 %v2199, %v2221
        %v2233 = vadd.s32 %v2200, %v2221
        %v2234 = vadd.s32 %v2201, %v2221
        %v2235 = vadd.s32 %v2202, %v2221
        %v2236 = vadd.s32 %v2203, %v2221
        %v2237 = vadd.s32 %v2204, %v2221
        %v2238 = vadd.s32 %v2205, %v2221
        %v2239 = vadd.s32 %v2206, %v2221
        %v2240 = vadd.s32 %v2207, %v2221
        %v2241 = vadd.s32 %v2208, %v2221
        %v2242 = vadd.s32 %v2209, %v2221
        %v2243 = vadd.s32 %v2210, %v2221
        %v2244 = vadd.s32 %v2211, %v2221
        %v2245 = vadd.s32 %v2212, %v2221
        %v2246 = vadd.s32 %v2213, %v2221
        %v2247 = vadd.s32 %v2214, %v2221
        %v2248 = vadd.s32 %v2215, %v2221
        %v2249 = vadd.s32 %v2216, %v2221
        %v2250 = vadd.s32 %v2217, %v2221
        %v2251 = vadd.s32 %v2218, %v2221
        %v2252 = vadd.s32 %v2219, %v2221
        %v2253 = vadd.s32 %v2220, %v2221
        %v2254 = vshrl.u32 %v2222, 16
        %v2255 = vshrl.u32 %v2223, 16
        %v2256 = vshrl.u32 %v2224, 16
        %v2257 = vshrl.u32 %v2225, 16
        %v2258 = vshrl.u32 %v2226, 16
        %v2259 = vshrl.u32 %v2227, 16
        %v2260 = vshrl.u32 %v2228, 16
        %v2261 = vshrl.u32 %v2229, 16
        %v2262 = vshrl.u32 %v2230, 16
        %v2263 = vshrl.u32 %v2231, 16
        %v2264 = vshrl.u32 %v2232, 16
        %v2265 = vshrl.u32 %v2233, 16
        %v2266 = vshrl.u32 %v2234, 16
        %v2267 = vshrl.u32 %v2235, 16
        %v2268 = vshrl.u32 %v2236, 16
        %v2269 = vshrl.u32 %v2237, 16
        %v2270 = vshrl.u32 %v2238, 16
        %v2271 = vshrl.u32 %v2239, 16
        %v2272 = vshrl.u32 %v2240, 16
        %v2273 = vshrl.u32 %v2241, 16
        %v2274 = vshrl.u32 %v2242, 16
        %v2275 = vshrl.u32 %v2243, 16
        %v2276 = vshrl.u32 %v2244, 16
        %v2277 = vshrl.u32 %v2245, 16
        %v2278 = vshrl.u32 %v2246, 16
        %v2279 = vshrl.u32 %v2247, 16
        %v2280 = vshrl.u32 %v2248, 16
        %v2281 = vshrl.u32 %v2249, 16
        %v2282 = vshrl.u32 %v2250, 16
        %v2283 = vshrl.u32 %v2251, 16
        %v2284 = vshrl.u32 %v2252, 16
        %v2285 = vshrl.u32 %v2253, 16
        %v2286 = vxor.u32 %v2222, %v2254
        %v2287 = vxor.u32 %v2223, %v2255
        %v2288 = vxor.u32 %v2224, %v2256
        %v2289 = vxor.u32 %v2225, %v2257
        %v2290 = vxor.u32 %v2226, %v2258
        %v2291 = vxor.u32 %v2227, %v2259
        %v2292 = vxor.u32 %v2228, %v2260
        %v2293 = vxor.u32 %v2229, %v2261
        %v2294 = vxor.u32 %v2230, %v2262
        %v2295 = vxor.u32 %v2231, %v2263
        %v2296 = vxor.u32 %v2232, %v2264
        %v2297 = vxor.u32 %v2233, %v2265
        %v2298 = vxor.u32 %v2234, %v2266
        %v2299 = vxor.u32 %v2235, %v2267
        %v2300 = vxor.u32 %v2236, %v2268
        %v2301 = vxor.u32 %v2237, %v2269
        %v2302 = vxor.u32 %v2238, %v2270
        %v2303 = vxor.u32 %v2239, %v2271
        %v2304 = vxor.u32 %v2240, %v2272
        %v2305 = vxor.u32 %v2241, %v2273
        %v2306 = vxor.u32 %v2242, %v2274
        %v2307 = vxor.u32 %v2243, %v2275
        %v2308 = vxor.u32 %v2244, %v2276
        %v2309 = vxor.u32 %v2245, %v2277
        %v2310 = vxor.u32 %v2246, %v2278
        %v2311 = vxor.u32 %v2247, %v2279
        %v2312 = vxor.u32 %v2248, %v2280
        %v2313 = vxor.u32 %v2249, %v2281
        %v2314 = vxor.u32 %v2250, %v2282
        %v2315 = vxor.u32 %v2251, %v2283
        %v2316 = vxor.u32 %v2252, %v2284
        %v2317 = vxor.u32 %v2253, %v2285
        %v2318 = vmul.u32 %v2286, 2146121005
        %v2319 = vmul.u32 %v2287, 2146121005
        %v2320 = vmul.u32 %v2288, 2146121005
        %v2321 = vmul.u32 %v2289, 2146121005
        %v2322 = vmul.u32 %v2290, 2146121005
        %v2323 = vmul.u32 %v2291, 2146121005
        %v2324 = vmul.u32 %v2292, 2146121005
        %v2325 = vmul.u32 %v2293, 2146121005
        %v2326 = vmul.u32 %v2294, 2146121005
        %v2327 = vmul.u32 %v2295, 2146121005
        %v2328 = vmul.u32 %v2296, 2146121005
        %v2329 = vmul.u32 %v2297, 2146121005
        %v2330 = vmul.u32 %v2298, 2146121005
        %v2331 = vmul.u32 %v2299, 2146121005
        %v2332 = vmul.u32 %v2300, 2146121005
        %v2333 = vmul.u32 %v2301, 2146121005
        %v2334 = vmul.u32 %v2302, 2146121005
        %v2335 = vmul.u32 %v2303, 2146121005
        %v2336 = vmul.u32 %v2304, 2146121005
        %v2337 = vmul.u32 %v2305, 2146121005
        %v2338 = vmul.u32 %v2306, 2146121005
        %v2339 = vmul.u32 %v2307, 2146121005
        %v2340 = vmul.u32 %v2308, 2146121005
        %v2341 = vmul.u32 %v2309, 2146121005
        %v2342 = vmul.u32 %v2310, 2146121005
        %v2343 = vmul.u32 %v2311, 2146121005
        %v2344 = vmul.u32 %v2312, 2146121005
        %v2345 = vmul.u32 %v2313, 2146121005
        %v2346 = vmul.u32 %v2314, 2146121005
        %v2347 = vmul.u32 %v2315, 2146121005
        %v2348 = vmul.u32 %v2316, 2146121005
        %v2349 = vmul.u32 %v2317, 2146121005
        %v2350 = vshrl.u32 %v2318, 15
        %v2351 = vshrl.u32 %v2319, 15
        %v2352 = vshrl.u32 %v2320, 15
        %v2353 = vshrl.u32 %v2321, 15
        %v2354 = vshrl.u32 %v2322, 15
        %v2355 = vshrl.u32 %v2323, 15
        %v2356 = vshrl.u32 %v2324, 15
        %v2357 = vshrl.u32 %v2325, 15
        %v2358 = vshrl.u32 %v2326, 15
        %v2359 = vshrl.u32 %v2327, 15
        %v2360 = vshrl.u32 %v2328, 15
        %v2361 = vshrl.u32 %v2329, 15
        %v2362 = vshrl.u32 %v2330, 15
        %v2363 = vshrl.u32 %v2331, 15
        %v2364 = vshrl.u32 %v2332, 15
        %v2365 = vshrl.u32 %v2333, 15
        %v2366 = vshrl.u32 %v2334, 15
        %v2367 = vshrl.u32 %v2335, 15
        %v2368 = vshrl.u32 %v2336, 15
        %v2369 = vshrl.u32 %v2337, 15
        %v2370 = vshrl.u32 %v2338, 15
        %v2371 = vshrl.u32 %v2339, 15
        %v2372 = vshrl.u32 %v2340, 15
        %v2373 = vshrl.u32 %v2341, 15
        %v2374 = vshrl.u32 %v2342, 15
        %v2375 = vshrl.u32 %v2343, 15
        %v2376 = vshrl.u32 %v2344, 15
        %v2377 = vshrl.u32 %v2345, 15
        %v2378 = vshrl.u32 %v2346, 15
        %v2379 = vshrl.u32 %v2347, 15
        %v2380 = vshrl.u32 %v2348, 15
        %v2381 = vshrl.u32 %v2349, 15
        %v2382 = vxor.u32 %v2318, %v2350
        %v2383 = vxor.u32 %v2319, %v2351
        %v2384 = vxor.u32 %v2320, %v2352
        %v2385 = vxor.u32 %v2321, %v2353
        %v2386 = vxor.u32 %v2322, %v2354
        %v2387 = vxor.u32 %v2323, %v2355
        %v2388 = vxor.u32 %v2324, %v2356
        %v2389 = vxor.u32 %v2325, %v2357
        %v2390 = vxor.u32 %v2326, %v2358
        %v2391 = vxor.u32 %v2327, %v2359
        %v2392 = vxor.u32 %v2328, %v2360
        %v2393 = vxor.u32 %v2329, %v2361
        %v2394 = vxor.u32 %v2330, %v2362
        %v2395 = vxor.u32 %v2331, %v2363
        %v2396 = vxor.u32 %v2332, %v2364
        %v2397 = vxor.u32 %v2333, %v2365
        %v2398 = vxor.u32 %v2334, %v2366
        %v2399 = vxor.u32 %v2335, %v2367
        %v2400 = vxor.u32 %v2336, %v2368
        %v2401 = vxor.u32 %v2337, %v2369
        %v2402 = vxor.u32 %v2338, %v2370
        %v2403 = vxor.u32 %v2339, %v2371
        %v2404 = vxor.u32 %v2340, %v2372
        %v2405 = vxor.u32 %v2341, %v2373
        %v2406 = vxor.u32 %v2342, %v2374
        %v2407 = vxor.u32 %v2343, %v2375
        %v2408 = vxor.u32 %v2344, %v2376
        %v2409 = vxor.u32 %v2345, %v2377
        %v2410 = vxor.u32 %v2346, %v2378
        %v2411 = vxor.u32 %v2347, %v2379
        %v2412 = vxor.u32 %v2348, %v2380
        %v2413 = vxor.u32 %v2349, %v2381
        %v2414 = vmul.u32 %v2382, 2221713035
        %v2415 = vmul.u32 %v2383, 2221713035
        %v2416 = vmul.u32 %v2384, 2221713035
        %v2417 = vmul.u32 %v2385, 2221713035
        %v2418 = vmul.u32 %v2386, 2221713035
        %v2419 = vmul.u32 %v2387, 2221713035
        %v2420 = vmul.u32 %v2388, 2221713035
        %v2421 = vmul.u32 %v2389, 2221713035
        %v2422 = vmul.u32 %v2390, 2221713035
        %v2423 = vmul.u32 %v2391, 2221713035
        %v2424 = vmul.u32 %v2392, 2221713035
        %v2425 = vmul.u32 %v2393, 2221713035
        %v2426 = vmul.u32 %v2394, 2221713035
        %v2427 = vmul.u32 %v2395, 2221713035
        %v2428 = vmul.u32 %v2396, 2221713035
        %v2429 = vmul.u32 %v2397, 2221713035
        %v2430 = vmul.u32 %v2398, 2221713035
        %v2431 = vmul.u32 %v2399, 2221713035
        %v2432 = vmul.u32 %v2400, 2221713035
        %v2433 = vmul.u32 %v2401, 2221713035
        %v2434 = vmul.u32 %v2402, 2221713035
        %v2435 = vmul.u32 %v2403, 2221713035
        %v2436 = vmul.u32 %v2404, 2221713035
        %v2437 = vmul.u32 %v2405, 2221713035
        %v2438 = vmul.u32 %v2406, 2221713035
        %v2439 = vmul.u32 %v2407, 2221713035
        %v2440 = vmul.u32 %v2408, 2221713035
        %v2441 = vmul.u32 %v2409, 2221713035
        %v2442 = vmul.u32 %v2410, 2221713035
        %v2443 = vmul.u32 %v2411, 2221713035
        %v2444 = vmul.u32 %v2412, 2221713035
        %v2445 = vmul.u32 %v2413, 2221713035
        %v2446 = vshrl.u32 %v2414, 16
        %v2447 = vshrl.u32 %v2415, 16
        %v2448 = vshrl.u32 %v2416, 16
        %v2449 = vshrl.u32 %v2417, 16
        %v2450 = vshrl.u32 %v2418, 16
        %v2451 = vshrl.u32 %v2419, 16
        %v2452 = vshrl.u32 %v2420, 16
        %v2453 = vshrl.u32 %v2421, 16
        %v2454 = vshrl.u32 %v2422, 16
        %v2455 = vshrl.u32 %v2423, 16
        %v2456 = vshrl.u32 %v2424, 16
        %v2457 = vshrl.u32 %v2425, 16
        %v2458 = vshrl.u32 %v2426, 16
        %v2459 = vshrl.u32 %v2427, 16
        %v2460 = vshrl.u32 %v2428, 16
        %v2461 = vshrl.u32 %v2429, 16
        %v2462 = vshrl.u32 %v2430, 16
        %v2463 = vshrl.u32 %v2431, 16
        %v2464 = vshrl.u32 %v2432, 16
        %v2465 = vshrl.u32 %v2433, 16
        %v2466 = vshrl.u32 %v2434, 16
        %v2467 = vshrl.u32 %v2435, 16
        %v2468 = vshrl.u32 %v2436, 16
        %v2469 = vshrl.u32 %v2437, 16
        %v2470 = vshrl.u32 %v2438, 16
        %v2471 = vshrl.u32 %v2439, 16
        %v2472 = vshrl.u32 %v2440, 16
        %v2473 = vshrl.u32 %v2441, 16
        %v2474 = vshrl.u32 %v2442, 16
        %v2475 = vshrl.u32 %v2443, 16
        %v2476 = vshrl.u32 %v2444, 16
        %v2477 = vshrl.u32 %v2445, 16
        %v2478 = vxor.u32 %v2414, %v2446
        %v2479 = vxor.u32 %v2415, %v2447
        %v2480 = vxor.u32 %v2416, %v2448
        %v2481 = vxor.u32 %v2417, %v2449
        %v2482 = vxor.u32 %v2418, %v2450
        %v2483 = vxor.u32 %v2419, %v2451
        %v2484 = vxor.u32 %v2420, %v2452
        %v2485 = vxor.u32 %v2421, %v2453
        %v2486 = vxor.u32 %v2422, %v2454
        %v2487 = vxor.u32 %v2423, %v2455
        %v2488 = vxor.u32 %v2424, %v2456
        %v2489 = vxor.u32 %v2425, %v2457
        %v2490 = vxor.u32 %v2426, %v2458
        %v2491 = vxor.u32 %v2427, %v2459
        %v2492 = vxor.u32 %v2428, %v2460
        %v2493 = vxor.u32 %v2429, %v2461
        %v2494 = vxor.u32 %v2430, %v2462
        %v2495 = vxor.u32 %v2431, %v2463
        %v2496 = vxor.u32 %v2432, %v2464
        %v2497 = vxor.u32 %v2433, %v2465
        %v2498 = vxor.u32 %v2434, %v2466
        %v2499 = vxor.u32 %v2435, %v2467
        %v2500 = vxor.u32 %v2436, %v2468
        %v2501 = vxor.u32 %v2437, %v2469
        %v2502 = vxor.u32 %v2438, %v2470
        %v2503 = vxor.u32 %v2439, %v2471
        %v2504 = vxor.u32 %v2440, %v2472
        %v2505 = vxor.u32 %v2441, %v2473
        %v2506 = vxor.u32 %v2442, %v2474
        %v2507 = vxor.u32 %v2443, %v2475
        %v2508 = vxor.u32 %v2444, %v2476
        %v2509 = vxor.u32 %v2445, %v2477
        %v2510 = vshrl.u32 %v2478, 1
        %v2511 = vshrl.u32 %v2479, 1
        %v2512 = vshrl.u32 %v2480, 1
        %v2513 = vshrl.u32 %v2481, 1
        %v2514 = vshrl.u32 %v2482, 1
        %v2515 = vshrl.u32 %v2483, 1
        %v2516 = vshrl.u32 %v2484, 1
        %v2517 = vshrl.u32 %v2485, 1
        %v2518 = vshrl.u32 %v2486, 1
        %v2519 = vshrl.u32 %v2487, 1
        %v2520 = vshrl.u32 %v2488, 1
        %v2521 = vshrl.u32 %v2489, 1
        %v2522 = vshrl.u32 %v2490, 1
        %v2523 = vshrl.u32 %v2491, 1
        %v2524 = vshrl.u32 %v2492, 1
        %v2525 = vshrl.u32 %v2493, 1
        %v2526 = vshrl.u32 %v2494, 1
        %v2527 = vshrl.u32 %v2495, 1
        %v2528 = vshrl.u32 %v2496, 1
        %v2529 = vshrl.u32 %v2497, 1
        %v2530 = vshrl.u32 %v2498, 1
        %v2531 = vshrl.u32 %v2499, 1
        %v2532 = vshrl.u32 %v2500, 1
        %v2533 = vshrl.u32 %v2501, 1
        %v2534 = vshrl.u32 %v2502, 1
        %v2535 = vshrl.u32 %v2503, 1
        %v2536 = vshrl.u32 %v2504, 1
        %v2537 = vshrl.u32 %v2505, 1
        %v2538 = vshrl.u32 %v2506, 1
        %v2539 = vshrl.u32 %v2507, 1
        %v2540 = vshrl.u32 %v2508, 1
        %v2541 = vshrl.u32 %v2509, 1
        %vm2542 = vcmp.ge.s32.totalorder %v2510, 536870912
        %vm2543 = vcmp.ge.s32.totalorder %v2511, 536870912
        %vm2544 = vcmp.ge.s32.totalorder %v2512, 536870912
        %vm2545 = vcmp.ge.s32.totalorder %v2513, 536870912
        %vm2546 = vcmp.ge.s32.totalorder %v2514, 536870912
        %vm2547 = vcmp.ge.s32.totalorder %v2515, 536870912
        %vm2548 = vcmp.ge.s32.totalorder %v2516, 536870912
        %vm2549 = vcmp.ge.s32.totalorder %v2517, 536870912
        %vm2550 = vcmp.ge.s32.totalorder %v2518, 536870912
        %vm2551 = vcmp.ge.s32.totalorder %v2519, 536870912
        %vm2552 = vcmp.ge.s32.totalorder %v2520, 536870912
        %vm2553 = vcmp.ge.s32.totalorder %v2521, 536870912
        %vm2554 = vcmp.ge.s32.totalorder %v2522, 536870912
        %vm2555 = vcmp.ge.s32.totalorder %v2523, 536870912
        %vm2556 = vcmp.ge.s32.totalorder %v2524, 536870912
        %vm2557 = vcmp.ge.s32.totalorder %v2525, 536870912
        %vm2558 = vcmp.ge.s32.totalorder %v2526, 536870912
        %vm2559 = vcmp.ge.s32.totalorder %v2527, 536870912
        %vm2560 = vcmp.ge.s32.totalorder %v2528, 536870912
        %vm2561 = vcmp.ge.s32.totalorder %v2529, 536870912
        %vm2562 = vcmp.ge.s32.totalorder %v2530, 536870912
        %vm2563 = vcmp.ge.s32.totalorder %v2531, 536870912
        %vm2564 = vcmp.ge.s32.totalorder %v2532, 536870912
        %vm2565 = vcmp.ge.s32.totalorder %v2533, 536870912
        %vm2566 = vcmp.ge.s32.totalorder %v2534, 536870912
        %vm2567 = vcmp.ge.s32.totalorder %v2535, 536870912
        %vm2568 = vcmp.ge.s32.totalorder %v2536, 536870912
        %vm2569 = vcmp.ge.s32.totalorder %v2537, 536870912
        %vm2570 = vcmp.ge.s32.totalorder %v2538, 536870912
        %vm2571 = vcmp.ge.s32.totalorder %v2539, 536870912
        %vm2572 = vcmp.ge.s32.totalorder %v2540, 536870912
        %vm2573 = vcmp.ge.s32.totalorder %v2541, 536870912
        %vm2574 = vcmp.gt.f32.partialorder %v1993, 0.0
        %vm2575 = vcmp.gt.f32.partialorder %v1996, 0.0
        %vm2576 = vcmp.gt.f32.partialorder %v2001, 0.0
        %vm2577 = vcmp.gt.f32.partialorder %v2004, 0.0
        %vm2578 = vcmp.gt.f32.partialorder %v2009, 0.0
        %vm2579 = vcmp.gt.f32.partialorder %v2012, 0.0
        %vm2580 = vcmp.gt.f32.partialorder %v2017, 0.0
        %vm2581 = vcmp.gt.f32.partialorder %v2020, 0.0
        %vm2582 = vcmp.gt.f32.partialorder %v2025, 0.0
        %vm2583 = vcmp.gt.f32.partialorder %v2028, 0.0
        %vm2584 = vcmp.gt.f32.partialorder %v2033, 0.0
        %vm2585 = vcmp.gt.f32.partialorder %v2036, 0.0
        %vm2586 = vcmp.gt.f32.partialorder %v2041, 0.0
        %vm2587 = vcmp.gt.f32.partialorder %v2044, 0.0
        %vm2588 = vcmp.gt.f32.partialorder %v2049, 0.0
        %vm2589 = vcmp.gt.f32.partialorder %v2052, 0.0
        %vm2590 = vcmp.gt.f32.partialorder %v2057, 0.0
        %vm2591 = vcmp.gt.f32.partialorder %v2060, 0.0
        %vm2592 = vcmp.gt.f32.partialorder %v2065, 0.0
        %vm2593 = vcmp.gt.f32.partialorder %v2068, 0.0
        %vm2594 = vcmp.gt.f32.partialorder %v2073, 0.0
        %vm2595 = vcmp.gt.f32.partialorder %v2076, 0.0
        %vm2596 = vcmp.gt.f32.partialorder %v2081, 0.0
        %vm2597 = vcmp.gt.f32.partialorder %v2084, 0.0
        %vm2598 = vcmp.gt.f32.partialorder %v2089, 0.0
        %vm2599 = vcmp.gt.f32.partialorder %v2092, 0.0
        %vm2600 = vcmp.gt.f32.partialorder %v2097, 0.0
        %vm2601 = vcmp.gt.f32.partialorder %v2100, 0.0
        %vm2602 = vcmp.gt.f32.partialorder %v2105, 0.0
        %vm2603 = vcmp.gt.f32.partialorder %v2108, 0.0
        %vm2604 = vcmp.gt.f32.partialorder %v2113, 0.0
        %vm2605 = vcmp.gt.f32.partialorder %v2116, 0.0
        %vm2606 = vmand %vm2542, %vm2574
        %vm2607 = vmand %vm2543, %vm2575
        %vm2608 = vmand %vm2544, %vm2576
        %vm2609 = vmand %vm2545, %vm2577
        %vm2610 = vmand %vm2546, %vm2578
        %vm2611 = vmand %vm2547, %vm2579
        %vm2612 = vmand %vm2548, %vm2580
        %vm2613 = vmand %vm2549, %vm2581
        %vm2614 = vmand %vm2550, %vm2582
        %vm2615 = vmand %vm2551, %vm2583
        %vm2616 = vmand %vm2552, %vm2584
        %vm2617 = vmand %vm2553, %vm2585
        %vm2618 = vmand %vm2554, %vm2586
        %vm2619 = vmand %vm2555, %vm2587
        %vm2620 = vmand %vm2556, %vm2588
        %vm2621 = vmand %vm2557, %vm2589
        %vm2622 = vmand %vm2558, %vm2590
        %vm2623 = vmand %vm2559, %vm2591
        %vm2624 = vmand %vm2560, %vm2592
        %vm2625 = vmand %vm2561, %vm2593
        %vm2626 = vmand %vm2562, %vm2594
        %vm2627 = vmand %vm2563, %vm2595
        %vm2628 = vmand %vm2564, %vm2596
        %vm2629 = vmand %vm2565, %vm2597
        %vm2630 = vmand %vm2566, %vm2598
        %vm2631 = vmand %vm2567, %vm2599
        %vm2632 = vmand %vm2568, %vm2600
        %vm2633 = vmand %vm2569, %vm2601
        %vm2634 = vmand %vm2570, %vm2602
        %vm2635 = vmand %vm2571, %vm2603
        %vm2636 = vmand %vm2572, %vm2604
        %vm2637 = vmand %vm2573, %vm2605
        %v2638 = vmul.f32 %v1993, 1.3333334
        %v2639 = vmul.f32 %v1996, 1.3333334
        %v2640 = vmul.f32 %v2001, 1.3333334
        %v2641 = vmul.f32 %v2004, 1.3333334
        %v2642 = vmul.f32 %v2009, 1.3333334
        %v2643 = vmul.f32 %v2012, 1.3333334
        %v2644 = vmul.f32 %v2017, 1.3333334
        %v2645 = vmul.f32 %v2020, 1.3333334
        %v2646 = vmul.f32 %v2025, 1.3333334
        %v2647 = vmul.f32 %v2028, 1.3333334
        %v2648 = vmul.f32 %v2033, 1.3333334
        %v2649 = vmul.f32 %v2036, 1.3333334
        %v2650 = vmul.f32 %v2041, 1.3333334
        %v2651 = vmul.f32 %v2044, 1.3333334
        %v2652 = vmul.f32 %v2049, 1.3333334
        %v2653 = vmul.f32 %v2052, 1.3333334
        %v2654 = vmul.f32 %v2057, 1.3333334
        %v2655 = vmul.f32 %v2060, 1.3333334
        %v2656 = vmul.f32 %v2065, 1.3333334
        %v2657 = vmul.f32 %v2068, 1.3333334
        %v2658 = vmul.f32 %v2073, 1.3333334
        %v2659 = vmul.f32 %v2076, 1.3333334
        %v2660 = vmul.f32 %v2081, 1.3333334
        %v2661 = vmul.f32 %v2084, 1.3333334
        %v2662 = vmul.f32 %v2089, 1.3333334
        %v2663 = vmul.f32 %v2092, 1.3333334
        %v2664 = vmul.f32 %v2097, 1.3333334
        %v2665 = vmul.f32 %v2100, 1.3333334
        %v2666 = vmul.f32 %v2105, 1.3333334
        %v2667 = vmul.f32 %v2108, 1.3333334
        %v2668 = vmul.f32 %v2113, 1.3333334
        %v2669 = vmul.f32 %v2116, 1.3333334
        %v2670 = vsel %vm2606, %v2638, 0.0
        %v2671 = vsel %vm2607, %v2639, 0.0
        %v2672 = vsel %vm2608, %v2640, 0.0
        %v2673 = vsel %vm2609, %v2641, 0.0
        %v2674 = vsel %vm2610, %v2642, 0.0
        %v2675 = vsel %vm2611, %v2643, 0.0
        %v2676 = vsel %vm2612, %v2644, 0.0
        %v2677 = vsel %vm2613, %v2645, 0.0
        %v2678 = vsel %vm2614, %v2646, 0.0
        %v2679 = vsel %vm2615, %v2647, 0.0
        %v2680 = vsel %vm2616, %v2648, 0.0
        %v2681 = vsel %vm2617, %v2649, 0.0
        %v2682 = vsel %vm2618, %v2650, 0.0
        %v2683 = vsel %vm2619, %v2651, 0.0
        %v2684 = vsel %vm2620, %v2652, 0.0
        %v2685 = vsel %vm2621, %v2653, 0.0
        %v2686 = vsel %vm2622, %v2654, 0.0
        %v2687 = vsel %vm2623, %v2655, 0.0
        %v2688 = vsel %vm2624, %v2656, 0.0
        %v2689 = vsel %vm2625, %v2657, 0.0
        %v2690 = vsel %vm2626, %v2658, 0.0
        %v2691 = vsel %vm2627, %v2659, 0.0
        %v2692 = vsel %vm2628, %v2660, 0.0
        %v2693 = vsel %vm2629, %v2661, 0.0
        %v2694 = vsel %vm2630, %v2662, 0.0
        %v2695 = vsel %vm2631, %v2663, 0.0
        %v2696 = vsel %vm2632, %v2664, 0.0
        %v2697 = vsel %vm2633, %v2665, 0.0
        %v2698 = vsel %vm2634, %v2666, 0.0
        %v2699 = vsel %vm2635, %v2667, 0.0
        %v2700 = vsel %vm2636, %v2668, 0.0
        %v2701 = vsel %vm2637, %v2669, 0.0
        %v2702 = vpack.c.bf16 %v2671, %v2670
        %v2703 = vpack.c.bf16 %v2673, %v2672
        %v2704 = vpack.c.bf16 %v2675, %v2674
        %v2705 = vpack.c.bf16 %v2677, %v2676
        %v2706 = vpack.c.bf16 %v2679, %v2678
        %v2707 = vpack.c.bf16 %v2681, %v2680
        %v2708 = vpack.c.bf16 %v2683, %v2682
        %v2709 = vpack.c.bf16 %v2685, %v2684
        %v2710 = vpack.c.bf16 %v2687, %v2686
        %v2711 = vpack.c.bf16 %v2689, %v2688
        %v2712 = vpack.c.bf16 %v2691, %v2690
        %v2713 = vpack.c.bf16 %v2693, %v2692
        %v2714 = vpack.c.bf16 %v2695, %v2694
        %v2715 = vpack.c.bf16 %v2697, %v2696
        %v2716 = vpack.c.bf16 %v2699, %v2698
        %v2717 = vpack.c.bf16 %v2701, %v2700
        %v2718 = vld [vmem:[%s3] sm:$0xf]
        %v2719 = vld [vmem:[%s3 + $0x4] sm:$0xf]
        %v2720 = vld [vmem:[%s3 + $0x8] sm:$0xf]
        %v2721 = vld [vmem:[%s3 + $0xc] sm:$0xf]
        %v2722 = vld [vmem:[%s3 + $0x10] sm:$0xf]
        %v2723 = vld [vmem:[%s3 + $0x14] sm:$0xf]
        %v2724 = vld [vmem:[%s3 + $0x18] sm:$0xf]
        %v2725 = vld [vmem:[%s3 + $0x1c] sm:$0xf]
        %v2726 = vld [vmem:[%s3 + $0x20] sm:$0xf]
        %v2727 = vld [vmem:[%s3 + $0x24] sm:$0xf]
        %v2728 = vld [vmem:[%s3 + $0x28] sm:$0xf]
        %v2729 = vld [vmem:[%s3 + $0x2c] sm:$0xf]
        %v2730 = vld [vmem:[%s3 + $0x30] sm:$0xf]
        %v2731 = vld [vmem:[%s3 + $0x34] sm:$0xf]
        %v2732 = vld [vmem:[%s3 + $0x38] sm:$0xf]
        %v2733 = vld [vmem:[%s3 + $0x3c] sm:$0xf]
        %v2734 = vld [vmem:[%s4] sm:$0x1]
        %v2736 = vlaneseq
        %v2737 = vshrl.u32 %v2736, 7
        %v2738 = vsub.s32 0, %v2737
        %v2739 = vrot.slane %v2734, %v2738
        %v2757 = vunpack.c.l.b16 %v2718
        %v2758 = vunpack.c.l.b16 %v2719
        %v2759 = vunpack.c.l.b16 %v2720
        %v2760 = vunpack.c.l.b16 %v2721
        %v2761 = vunpack.c.l.b16 %v2722
        %v2762 = vunpack.c.l.b16 %v2723
        %v2763 = vunpack.c.l.b16 %v2724
        %v2764 = vunpack.c.l.b16 %v2725
        %v2765 = vunpack.c.l.b16 %v2726
        %v2766 = vunpack.c.l.b16 %v2727
        %v2767 = vunpack.c.l.b16 %v2728
        %v2768 = vunpack.c.l.b16 %v2729
        %v2769 = vunpack.c.l.b16 %v2730
        %v2770 = vunpack.c.l.b16 %v2731
        %v2771 = vunpack.c.l.b16 %v2732
        %v2772 = vunpack.c.l.b16 %v2733
        %v2773 = vpack.c.b16 %v2758, %v2757
        %v2774 = vpack.c.b16 %v2760, %v2759
        %v2775 = vpack.c.b16 %v2762, %v2761
        %v2776 = vpack.c.b16 %v2764, %v2763
        %v2777 = vpack.c.b16 %v2766, %v2765
        %v2778 = vpack.c.b16 %v2768, %v2767
        %v2779 = vpack.c.b16 %v2770, %v2769
        %v2780 = vpack.c.b16 %v2772, %v2771
        %2789 = vmatprep.subr.bf16.mxu0 0
        %2790 = vmatpush1.bf16.msra.mxu0 %v2780
        %2791 = vmatprep.subr.bf16.mxu0 0
        %2792 = vmatpush1.bf16.msra.mxu0 %v2779
        %2793 = vmatprep.subr.bf16.mxu0 0
        %2794 = vmatpush1.bf16.msra.mxu0 %v2778
        %2795 = vmatprep.subr.bf16.mxu0 0
        %2796 = vmatpush1.bf16.msra.mxu0 %v2777
        %2797 = vmatprep.subr.bf16.mxu0 0
        %2798 = vmatpush1.bf16.msra.mxu0 %v2776
        %2799 = vmatprep.subr.bf16.mxu0 0
        %2800 = vmatpush1.bf16.msra.mxu0 %v2775
        %2801 = vmatprep.subr.bf16.mxu0 0
        %2802 = vmatpush1.bf16.msra.mxu0 %v2774
        %2803 = vmatprep.subr.bf16.mxu0 0
        %2804 = vmatpush1.bf16.msra.mxu0 %v2773
        %2805 = vmatprep.subr.bf16.mxu0 0
        %2806 = vmatpush2.bf16.msra.mxu0 0
        %2807 = vmatprep.subr.bf16.mxu0 0
        %2808 = vmatpush2.bf16.msra.mxu0 0
        %2809 = vmatprep.subr.bf16.mxu0 0
        %2810 = vmatpush2.bf16.msra.mxu0 0
        %2811 = vmatprep.subr.bf16.mxu0 0
        %2812 = vmatpush2.bf16.msra.mxu0 0
        %2813 = vmatprep.subr.bf16.mxu0 0
        %2814 = vmatpush2.bf16.msra.mxu0 0
        %2815 = vmatprep.subr.bf16.mxu0 0
        %2816 = vmatpush2.bf16.msra.mxu0 0
        %2817 = vmatprep.subr.bf16.mxu0 0
        %2818 = vmatpush2.bf16.msra.mxu0 0
        %2819 = vmatprep.subr.bf16.mxu0 0
        %2820 = vmatpush2.bf16.msra.mxu0 0
        %2821 = vmatprep.mubr.bf16.mxu0 0
        %2822 = vmatmul.mubr.bf16.gmra.mxu0 %v2702
        %v2823 = vpop.f32.mrf.mxu0
        %v2824 = vadd.f32 %v2739, %v2823
        %v2825 = vpop.f32.mrf.mxu0
        %v2826 = vpop.f32.mrf.mxu0
        %v2827 = vadd.f32 %v2739, %v2826
        %v2828 = vpop.f32.mrf.mxu0
        %2829 = vmatprep.mubr.bf16.mxu0 0
        %2830 = vmatmul.mubr.bf16.gmra.mxu0 %v2703
        %v2831 = vpop.f32.mrf.mxu0
        %v2832 = vadd.f32 %v2739, %v2831
        %v2833 = vpop.f32.mrf.mxu0
        %v2834 = vpop.f32.mrf.mxu0
        %v2835 = vadd.f32 %v2739, %v2834
        %v2836 = vpop.f32.mrf.mxu0
        %2837 = vmatprep.mubr.bf16.mxu0 0
        %2838 = vmatmul.mubr.bf16.gmra.mxu0 %v2704
        %v2839 = vpop.f32.mrf.mxu0
        %v2840 = vadd.f32 %v2739, %v2839
        %v2841 = vpop.f32.mrf.mxu0
        %v2842 = vpop.f32.mrf.mxu0
        %v2843 = vadd.f32 %v2739, %v2842
        %v2844 = vpop.f32.mrf.mxu0
        %2845 = vmatprep.mubr.bf16.mxu0 0
        %2846 = vmatmul.mubr.bf16.gmra.mxu0 %v2705
        %v2847 = vpop.f32.mrf.mxu0
        %v2848 = vadd.f32 %v2739, %v2847
        %v2849 = vpop.f32.mrf.mxu0
        %v2850 = vpop.f32.mrf.mxu0
        %v2851 = vadd.f32 %v2739, %v2850
        %v2852 = vpop.f32.mrf.mxu0
        %2853 = vmatprep.mubr.bf16.mxu0 0
        %2854 = vmatmul.mubr.bf16.gmra.mxu0 %v2706
        %v2855 = vpop.f32.mrf.mxu0
        %v2856 = vadd.f32 %v2739, %v2855
        %v2857 = vpop.f32.mrf.mxu0
        %v2858 = vpop.f32.mrf.mxu0
        %v2859 = vadd.f32 %v2739, %v2858
        %v2860 = vpop.f32.mrf.mxu0
        %2861 = vmatprep.mubr.bf16.mxu0 0
        %2862 = vmatmul.mubr.bf16.gmra.mxu0 %v2707
        %v2863 = vpop.f32.mrf.mxu0
        %v2864 = vadd.f32 %v2739, %v2863
        %v2865 = vpop.f32.mrf.mxu0
        %v2866 = vpop.f32.mrf.mxu0
        %v2867 = vadd.f32 %v2739, %v2866
        %v2868 = vpop.f32.mrf.mxu0
        %2869 = vmatprep.mubr.bf16.mxu0 0
        %2870 = vmatmul.mubr.bf16.gmra.mxu0 %v2708
        %v2871 = vpop.f32.mrf.mxu0
        %v2872 = vadd.f32 %v2739, %v2871
        %v2873 = vpop.f32.mrf.mxu0
        %v2874 = vpop.f32.mrf.mxu0
        %v2875 = vadd.f32 %v2739, %v2874
        %v2876 = vpop.f32.mrf.mxu0
        %2877 = vmatprep.mubr.bf16.mxu0 0
        %2878 = vmatmul.mubr.bf16.gmra.mxu0 %v2709
        %v2879 = vpop.f32.mrf.mxu0
        %v2880 = vadd.f32 %v2739, %v2879
        %v2881 = vpop.f32.mrf.mxu0
        %v2882 = vpop.f32.mrf.mxu0
        %v2883 = vadd.f32 %v2739, %v2882
        %v2884 = vpop.f32.mrf.mxu0
        %2885 = vmatprep.mubr.bf16.mxu0 0
        %2886 = vmatmul.mubr.bf16.gmra.mxu0 %v2710
        %v2887 = vpop.f32.mrf.mxu0
        %v2888 = vadd.f32 %v2739, %v2887
        %v2889 = vpop.f32.mrf.mxu0
        %v2890 = vpop.f32.mrf.mxu0
        %v2891 = vadd.f32 %v2739, %v2890
        %v2892 = vpop.f32.mrf.mxu0
        %2893 = vmatprep.mubr.bf16.mxu0 0
        %2894 = vmatmul.mubr.bf16.gmra.mxu0 %v2711
        %v2895 = vpop.f32.mrf.mxu0
        %v2896 = vadd.f32 %v2739, %v2895
        %v2897 = vpop.f32.mrf.mxu0
        %v2898 = vpop.f32.mrf.mxu0
        %v2899 = vadd.f32 %v2739, %v2898
        %v2900 = vpop.f32.mrf.mxu0
        %2901 = vmatprep.mubr.bf16.mxu0 0
        %2902 = vmatmul.mubr.bf16.gmra.mxu0 %v2712
        %v2903 = vpop.f32.mrf.mxu0
        %v2904 = vadd.f32 %v2739, %v2903
        %v2905 = vpop.f32.mrf.mxu0
        %v2906 = vpop.f32.mrf.mxu0
        %v2907 = vadd.f32 %v2739, %v2906
        %v2908 = vpop.f32.mrf.mxu0
        %2909 = vmatprep.mubr.bf16.mxu0 0
        %2910 = vmatmul.mubr.bf16.gmra.mxu0 %v2713
        %v2911 = vpop.f32.mrf.mxu0
        %v2912 = vadd.f32 %v2739, %v2911
        %v2913 = vpop.f32.mrf.mxu0
        %v2914 = vpop.f32.mrf.mxu0
        %v2915 = vadd.f32 %v2739, %v2914
        %v2916 = vpop.f32.mrf.mxu0
        %2917 = vmatprep.mubr.bf16.mxu0 0
        %2918 = vmatmul.mubr.bf16.gmra.mxu0 %v2714
        %v2919 = vpop.f32.mrf.mxu0
        %v2920 = vadd.f32 %v2739, %v2919
        %v2921 = vpop.f32.mrf.mxu0
        %v2922 = vpop.f32.mrf.mxu0
        %v2923 = vadd.f32 %v2739, %v2922
        %v2924 = vpop.f32.mrf.mxu0
        %2925 = vmatprep.mubr.bf16.mxu0 0
        %2926 = vmatmul.mubr.bf16.gmra.mxu0 %v2715
        %v2927 = vpop.f32.mrf.mxu0
        %v2928 = vadd.f32 %v2739, %v2927
        %v2929 = vpop.f32.mrf.mxu0
        %v2930 = vpop.f32.mrf.mxu0
        %v2931 = vadd.f32 %v2739, %v2930
        %v2932 = vpop.f32.mrf.mxu0
        %2933 = vmatprep.mubr.bf16.mxu0 0
        %2934 = vmatmul.mubr.bf16.gmra.mxu0 %v2716
        %v2935 = vpop.f32.mrf.mxu0
        %v2936 = vadd.f32 %v2739, %v2935
        %v2937 = vpop.f32.mrf.mxu0
        %v2938 = vpop.f32.mrf.mxu0
        %v2939 = vadd.f32 %v2739, %v2938
        %v2940 = vpop.f32.mrf.mxu0
        %2941 = vmatprep.mubr.bf16.mxu0 0
        %2942 = vmatmul.mubr.bf16.gmra.mxu0 %v2717
        %v2943 = vpop.f32.mrf.mxu0
        %v2944 = vadd.f32 %v2739, %v2943
        %v2945 = vpop.f32.mrf.mxu0
        %v2946 = vpop.f32.mrf.mxu0
        %v2947 = vadd.f32 %v2739, %v2946
        %v2948 = vpop.f32.mrf.mxu0
        %2949 = vdwg.mxu0
        %s2950 = sadd.s32 %s2119, 2898199516
        %v2951 = vstv %s2950
        %v2952 = vadd.s32 %v2189, %v2951
        %v2953 = vadd.s32 %v2190, %v2951
        %v2954 = vadd.s32 %v2191, %v2951
        %v2955 = vadd.s32 %v2192, %v2951
        %v2956 = vadd.s32 %v2193, %v2951
        %v2957 = vadd.s32 %v2194, %v2951
        %v2958 = vadd.s32 %v2195, %v2951
        %v2959 = vadd.s32 %v2196, %v2951
        %v2960 = vadd.s32 %v2197, %v2951
        %v2961 = vadd.s32 %v2198, %v2951
        %v2962 = vadd.s32 %v2199, %v2951
        %v2963 = vadd.s32 %v2200, %v2951
        %v2964 = vadd.s32 %v2201, %v2951
        %v2965 = vadd.s32 %v2202, %v2951
        %v2966 = vadd.s32 %v2203, %v2951
        %v2967 = vadd.s32 %v2204, %v2951
        %v2968 = vadd.s32 %v2205, %v2951
        %v2969 = vadd.s32 %v2206, %v2951
        %v2970 = vadd.s32 %v2207, %v2951
        %v2971 = vadd.s32 %v2208, %v2951
        %v2972 = vadd.s32 %v2209, %v2951
        %v2973 = vadd.s32 %v2210, %v2951
        %v2974 = vadd.s32 %v2211, %v2951
        %v2975 = vadd.s32 %v2212, %v2951
        %v2976 = vadd.s32 %v2213, %v2951
        %v2977 = vadd.s32 %v2214, %v2951
        %v2978 = vadd.s32 %v2215, %v2951
        %v2979 = vadd.s32 %v2216, %v2951
        %v2980 = vadd.s32 %v2217, %v2951
        %v2981 = vadd.s32 %v2218, %v2951
        %v2982 = vadd.s32 %v2219, %v2951
        %v2983 = vadd.s32 %v2220, %v2951
        %v2984 = vshrl.u32 %v2952, 16
        %v2985 = vshrl.u32 %v2953, 16
        %v2986 = vshrl.u32 %v2954, 16
        %v2987 = vshrl.u32 %v2955, 16
        %v2988 = vshrl.u32 %v2956, 16
        %v2989 = vshrl.u32 %v2957, 16
        %v2990 = vshrl.u32 %v2958, 16
        %v2991 = vshrl.u32 %v2959, 16
        %v2992 = vshrl.u32 %v2960, 16
        %v2993 = vshrl.u32 %v2961, 16
        %v2994 = vshrl.u32 %v2962, 16
        %v2995 = vshrl.u32 %v2963, 16
        %v2996 = vshrl.u32 %v2964, 16
        %v2997 = vshrl.u32 %v2965, 16
        %v2998 = vshrl.u32 %v2966, 16
        %v2999 = vshrl.u32 %v2967, 16
        %v3000 = vshrl.u32 %v2968, 16
        %v3001 = vshrl.u32 %v2969, 16
        %v3002 = vshrl.u32 %v2970, 16
        %v3003 = vshrl.u32 %v2971, 16
        %v3004 = vshrl.u32 %v2972, 16
        %v3005 = vshrl.u32 %v2973, 16
        %v3006 = vshrl.u32 %v2974, 16
        %v3007 = vshrl.u32 %v2975, 16
        %v3008 = vshrl.u32 %v2976, 16
        %v3009 = vshrl.u32 %v2977, 16
        %v3010 = vshrl.u32 %v2978, 16
        %v3011 = vshrl.u32 %v2979, 16
        %v3012 = vshrl.u32 %v2980, 16
        %v3013 = vshrl.u32 %v2981, 16
        %v3014 = vshrl.u32 %v2982, 16
        %v3015 = vshrl.u32 %v2983, 16
        %v3016 = vxor.u32 %v2952, %v2984
        %v3017 = vxor.u32 %v2953, %v2985
        %v3018 = vxor.u32 %v2954, %v2986
        %v3019 = vxor.u32 %v2955, %v2987
        %v3020 = vxor.u32 %v2956, %v2988
        %v3021 = vxor.u32 %v2957, %v2989
        %v3022 = vxor.u32 %v2958, %v2990
        %v3023 = vxor.u32 %v2959, %v2991
        %v3024 = vxor.u32 %v2960, %v2992
        %v3025 = vxor.u32 %v2961, %v2993
        %v3026 = vxor.u32 %v2962, %v2994
        %v3027 = vxor.u32 %v2963, %v2995
        %v3028 = vxor.u32 %v2964, %v2996
        %v3029 = vxor.u32 %v2965, %v2997
        %v3030 = vxor.u32 %v2966, %v2998
        %v3031 = vxor.u32 %v2967, %v2999
        %v3032 = vxor.u32 %v2968, %v3000
        %v3033 = vxor.u32 %v2969, %v3001
        %v3034 = vxor.u32 %v2970, %v3002
        %v3035 = vxor.u32 %v2971, %v3003
        %v3036 = vxor.u32 %v2972, %v3004
        %v3037 = vxor.u32 %v2973, %v3005
        %v3038 = vxor.u32 %v2974, %v3006
        %v3039 = vxor.u32 %v2975, %v3007
        %v3040 = vxor.u32 %v2976, %v3008
        %v3041 = vxor.u32 %v2977, %v3009
        %v3042 = vxor.u32 %v2978, %v3010
        %v3043 = vxor.u32 %v2979, %v3011
        %v3044 = vxor.u32 %v2980, %v3012
        %v3045 = vxor.u32 %v2981, %v3013
        %v3046 = vxor.u32 %v2982, %v3014
        %v3047 = vxor.u32 %v2983, %v3015
        %v3048 = vmul.u32 %v3016, 2146121005
        %v3049 = vmul.u32 %v3017, 2146121005
        %v3050 = vmul.u32 %v3018, 2146121005
        %v3051 = vmul.u32 %v3019, 2146121005
        %v3052 = vmul.u32 %v3020, 2146121005
        %v3053 = vmul.u32 %v3021, 2146121005
        %v3054 = vmul.u32 %v3022, 2146121005
        %v3055 = vmul.u32 %v3023, 2146121005
        %v3056 = vmul.u32 %v3024, 2146121005
        %v3057 = vmul.u32 %v3025, 2146121005
        %v3058 = vmul.u32 %v3026, 2146121005
        %v3059 = vmul.u32 %v3027, 2146121005
        %v3060 = vmul.u32 %v3028, 2146121005
        %v3061 = vmul.u32 %v3029, 2146121005
        %v3062 = vmul.u32 %v3030, 2146121005
        %v3063 = vmul.u32 %v3031, 2146121005
        %v3064 = vmul.u32 %v3032, 2146121005
        %v3065 = vmul.u32 %v3033, 2146121005
        %v3066 = vmul.u32 %v3034, 2146121005
        %v3067 = vmul.u32 %v3035, 2146121005
        %v3068 = vmul.u32 %v3036, 2146121005
        %v3069 = vmul.u32 %v3037, 2146121005
        %v3070 = vmul.u32 %v3038, 2146121005
        %v3071 = vmul.u32 %v3039, 2146121005
        %v3072 = vmul.u32 %v3040, 2146121005
        %v3073 = vmul.u32 %v3041, 2146121005
        %v3074 = vmul.u32 %v3042, 2146121005
        %v3075 = vmul.u32 %v3043, 2146121005
        %v3076 = vmul.u32 %v3044, 2146121005
        %v3077 = vmul.u32 %v3045, 2146121005
        %v3078 = vmul.u32 %v3046, 2146121005
        %v3079 = vmul.u32 %v3047, 2146121005
        %v3080 = vshrl.u32 %v3048, 15
        %v3081 = vshrl.u32 %v3049, 15
        %v3082 = vshrl.u32 %v3050, 15
        %v3083 = vshrl.u32 %v3051, 15
        %v3084 = vshrl.u32 %v3052, 15
        %v3085 = vshrl.u32 %v3053, 15
        %v3086 = vshrl.u32 %v3054, 15
        %v3087 = vshrl.u32 %v3055, 15
        %v3088 = vshrl.u32 %v3056, 15
        %v3089 = vshrl.u32 %v3057, 15
        %v3090 = vshrl.u32 %v3058, 15
        %v3091 = vshrl.u32 %v3059, 15
        %v3092 = vshrl.u32 %v3060, 15
        %v3093 = vshrl.u32 %v3061, 15
        %v3094 = vshrl.u32 %v3062, 15
        %v3095 = vshrl.u32 %v3063, 15
        %v3096 = vshrl.u32 %v3064, 15
        %v3097 = vshrl.u32 %v3065, 15
        %v3098 = vshrl.u32 %v3066, 15
        %v3099 = vshrl.u32 %v3067, 15
        %v3100 = vshrl.u32 %v3068, 15
        %v3101 = vshrl.u32 %v3069, 15
        %v3102 = vshrl.u32 %v3070, 15
        %v3103 = vshrl.u32 %v3071, 15
        %v3104 = vshrl.u32 %v3072, 15
        %v3105 = vshrl.u32 %v3073, 15
        %v3106 = vshrl.u32 %v3074, 15
        %v3107 = vshrl.u32 %v3075, 15
        %v3108 = vshrl.u32 %v3076, 15
        %v3109 = vshrl.u32 %v3077, 15
        %v3110 = vshrl.u32 %v3078, 15
        %v3111 = vshrl.u32 %v3079, 15
        %v3112 = vxor.u32 %v3048, %v3080
        %v3113 = vxor.u32 %v3049, %v3081
        %v3114 = vxor.u32 %v3050, %v3082
        %v3115 = vxor.u32 %v3051, %v3083
        %v3116 = vxor.u32 %v3052, %v3084
        %v3117 = vxor.u32 %v3053, %v3085
        %v3118 = vxor.u32 %v3054, %v3086
        %v3119 = vxor.u32 %v3055, %v3087
        %v3120 = vxor.u32 %v3056, %v3088
        %v3121 = vxor.u32 %v3057, %v3089
        %v3122 = vxor.u32 %v3058, %v3090
        %v3123 = vxor.u32 %v3059, %v3091
        %v3124 = vxor.u32 %v3060, %v3092
        %v3125 = vxor.u32 %v3061, %v3093
        %v3126 = vxor.u32 %v3062, %v3094
        %v3127 = vxor.u32 %v3063, %v3095
        %v3128 = vxor.u32 %v3064, %v3096
        %v3129 = vxor.u32 %v3065, %v3097
        %v3130 = vxor.u32 %v3066, %v3098
        %v3131 = vxor.u32 %v3067, %v3099
        %v3132 = vxor.u32 %v3068, %v3100
        %v3133 = vxor.u32 %v3069, %v3101
        %v3134 = vxor.u32 %v3070, %v3102
        %v3135 = vxor.u32 %v3071, %v3103
        %v3136 = vxor.u32 %v3072, %v3104
        %v3137 = vxor.u32 %v3073, %v3105
        %v3138 = vxor.u32 %v3074, %v3106
        %v3139 = vxor.u32 %v3075, %v3107
        %v3140 = vxor.u32 %v3076, %v3108
        %v3141 = vxor.u32 %v3077, %v3109
        %v3142 = vxor.u32 %v3078, %v3110
        %v3143 = vxor.u32 %v3079, %v3111
        %v3144 = vmul.u32 %v3112, 2221713035
        %v3145 = vmul.u32 %v3113, 2221713035
        %v3146 = vmul.u32 %v3114, 2221713035
        %v3147 = vmul.u32 %v3115, 2221713035
        %v3148 = vmul.u32 %v3116, 2221713035
        %v3149 = vmul.u32 %v3117, 2221713035
        %v3150 = vmul.u32 %v3118, 2221713035
        %v3151 = vmul.u32 %v3119, 2221713035
        %v3152 = vmul.u32 %v3120, 2221713035
        %v3153 = vmul.u32 %v3121, 2221713035
        %v3154 = vmul.u32 %v3122, 2221713035
        %v3155 = vmul.u32 %v3123, 2221713035
        %v3156 = vmul.u32 %v3124, 2221713035
        %v3157 = vmul.u32 %v3125, 2221713035
        %v3158 = vmul.u32 %v3126, 2221713035
        %v3159 = vmul.u32 %v3127, 2221713035
        %v3160 = vmul.u32 %v3128, 2221713035
        %v3161 = vmul.u32 %v3129, 2221713035
        %v3162 = vmul.u32 %v3130, 2221713035
        %v3163 = vmul.u32 %v3131, 2221713035
        %v3164 = vmul.u32 %v3132, 2221713035
        %v3165 = vmul.u32 %v3133, 2221713035
        %v3166 = vmul.u32 %v3134, 2221713035
        %v3167 = vmul.u32 %v3135, 2221713035
        %v3168 = vmul.u32 %v3136, 2221713035
        %v3169 = vmul.u32 %v3137, 2221713035
        %v3170 = vmul.u32 %v3138, 2221713035
        %v3171 = vmul.u32 %v3139, 2221713035
        %v3172 = vmul.u32 %v3140, 2221713035
        %v3173 = vmul.u32 %v3141, 2221713035
        %v3174 = vmul.u32 %v3142, 2221713035
        %v3175 = vmul.u32 %v3143, 2221713035
        %v3176 = vshrl.u32 %v3144, 16
        %v3177 = vshrl.u32 %v3145, 16
        %v3178 = vshrl.u32 %v3146, 16
        %v3179 = vshrl.u32 %v3147, 16
        %v3180 = vshrl.u32 %v3148, 16
        %v3181 = vshrl.u32 %v3149, 16
        %v3182 = vshrl.u32 %v3150, 16
        %v3183 = vshrl.u32 %v3151, 16
        %v3184 = vshrl.u32 %v3152, 16
        %v3185 = vshrl.u32 %v3153, 16
        %v3186 = vshrl.u32 %v3154, 16
        %v3187 = vshrl.u32 %v3155, 16
        %v3188 = vshrl.u32 %v3156, 16
        %v3189 = vshrl.u32 %v3157, 16
        %v3190 = vshrl.u32 %v3158, 16
        %v3191 = vshrl.u32 %v3159, 16
        %v3192 = vshrl.u32 %v3160, 16
        %v3193 = vshrl.u32 %v3161, 16
        %v3194 = vshrl.u32 %v3162, 16
        %v3195 = vshrl.u32 %v3163, 16
        %v3196 = vshrl.u32 %v3164, 16
        %v3197 = vshrl.u32 %v3165, 16
        %v3198 = vshrl.u32 %v3166, 16
        %v3199 = vshrl.u32 %v3167, 16
        %v3200 = vshrl.u32 %v3168, 16
        %v3201 = vshrl.u32 %v3169, 16
        %v3202 = vshrl.u32 %v3170, 16
        %v3203 = vshrl.u32 %v3171, 16
        %v3204 = vshrl.u32 %v3172, 16
        %v3205 = vshrl.u32 %v3173, 16
        %v3206 = vshrl.u32 %v3174, 16
        %v3207 = vshrl.u32 %v3175, 16
        %v3208 = vxor.u32 %v3144, %v3176
        %v3209 = vxor.u32 %v3145, %v3177
        %v3210 = vxor.u32 %v3146, %v3178
        %v3211 = vxor.u32 %v3147, %v3179
        %v3212 = vxor.u32 %v3148, %v3180
        %v3213 = vxor.u32 %v3149, %v3181
        %v3214 = vxor.u32 %v3150, %v3182
        %v3215 = vxor.u32 %v3151, %v3183
        %v3216 = vxor.u32 %v3152, %v3184
        %v3217 = vxor.u32 %v3153, %v3185
        %v3218 = vxor.u32 %v3154, %v3186
        %v3219 = vxor.u32 %v3155, %v3187
        %v3220 = vxor.u32 %v3156, %v3188
        %v3221 = vxor.u32 %v3157, %v3189
        %v3222 = vxor.u32 %v3158, %v3190
        %v3223 = vxor.u32 %v3159, %v3191
        %v3224 = vxor.u32 %v3160, %v3192
        %v3225 = vxor.u32 %v3161, %v3193
        %v3226 = vxor.u32 %v3162, %v3194
        %v3227 = vxor.u32 %v3163, %v3195
        %v3228 = vxor.u32 %v3164, %v3196
        %v3229 = vxor.u32 %v3165, %v3197
        %v3230 = vxor.u32 %v3166, %v3198
        %v3231 = vxor.u32 %v3167, %v3199
        %v3232 = vxor.u32 %v3168, %v3200
        %v3233 = vxor.u32 %v3169, %v3201
        %v3234 = vxor.u32 %v3170, %v3202
        %v3235 = vxor.u32 %v3171, %v3203
        %v3236 = vxor.u32 %v3172, %v3204
        %v3237 = vxor.u32 %v3173, %v3205
        %v3238 = vxor.u32 %v3174, %v3206
        %v3239 = vxor.u32 %v3175, %v3207
        %v3240 = vshrl.u32 %v3208, 1
        %v3241 = vshrl.u32 %v3209, 1
        %v3242 = vshrl.u32 %v3210, 1
        %v3243 = vshrl.u32 %v3211, 1
        %v3244 = vshrl.u32 %v3212, 1
        %v3245 = vshrl.u32 %v3213, 1
        %v3246 = vshrl.u32 %v3214, 1
        %v3247 = vshrl.u32 %v3215, 1
        %v3248 = vshrl.u32 %v3216, 1
        %v3249 = vshrl.u32 %v3217, 1
        %v3250 = vshrl.u32 %v3218, 1
        %v3251 = vshrl.u32 %v3219, 1
        %v3252 = vshrl.u32 %v3220, 1
        %v3253 = vshrl.u32 %v3221, 1
        %v3254 = vshrl.u32 %v3222, 1
        %v3255 = vshrl.u32 %v3223, 1
        %v3256 = vshrl.u32 %v3224, 1
        %v3257 = vshrl.u32 %v3225, 1
        %v3258 = vshrl.u32 %v3226, 1
        %v3259 = vshrl.u32 %v3227, 1
        %v3260 = vshrl.u32 %v3228, 1
        %v3261 = vshrl.u32 %v3229, 1
        %v3262 = vshrl.u32 %v3230, 1
        %v3263 = vshrl.u32 %v3231, 1
        %v3264 = vshrl.u32 %v3232, 1
        %v3265 = vshrl.u32 %v3233, 1
        %v3266 = vshrl.u32 %v3234, 1
        %v3267 = vshrl.u32 %v3235, 1
        %v3268 = vshrl.u32 %v3236, 1
        %v3269 = vshrl.u32 %v3237, 1
        %v3270 = vshrl.u32 %v3238, 1
        %v3271 = vshrl.u32 %v3239, 1
        %vm3272 = vcmp.ge.s32.totalorder %v3240, 536870912
        %vm3273 = vcmp.ge.s32.totalorder %v3241, 536870912
        %vm3274 = vcmp.ge.s32.totalorder %v3242, 536870912
        %vm3275 = vcmp.ge.s32.totalorder %v3243, 536870912
        %vm3276 = vcmp.ge.s32.totalorder %v3244, 536870912
        %vm3277 = vcmp.ge.s32.totalorder %v3245, 536870912
        %vm3278 = vcmp.ge.s32.totalorder %v3246, 536870912
        %vm3279 = vcmp.ge.s32.totalorder %v3247, 536870912
        %vm3280 = vcmp.ge.s32.totalorder %v3248, 536870912
        %vm3281 = vcmp.ge.s32.totalorder %v3249, 536870912
        %vm3282 = vcmp.ge.s32.totalorder %v3250, 536870912
        %vm3283 = vcmp.ge.s32.totalorder %v3251, 536870912
        %vm3284 = vcmp.ge.s32.totalorder %v3252, 536870912
        %vm3285 = vcmp.ge.s32.totalorder %v3253, 536870912
        %vm3286 = vcmp.ge.s32.totalorder %v3254, 536870912
        %vm3287 = vcmp.ge.s32.totalorder %v3255, 536870912
        %vm3288 = vcmp.ge.s32.totalorder %v3256, 536870912
        %vm3289 = vcmp.ge.s32.totalorder %v3257, 536870912
        %vm3290 = vcmp.ge.s32.totalorder %v3258, 536870912
        %vm3291 = vcmp.ge.s32.totalorder %v3259, 536870912
        %vm3292 = vcmp.ge.s32.totalorder %v3260, 536870912
        %vm3293 = vcmp.ge.s32.totalorder %v3261, 536870912
        %vm3294 = vcmp.ge.s32.totalorder %v3262, 536870912
        %vm3295 = vcmp.ge.s32.totalorder %v3263, 536870912
        %vm3296 = vcmp.ge.s32.totalorder %v3264, 536870912
        %vm3297 = vcmp.ge.s32.totalorder %v3265, 536870912
        %vm3298 = vcmp.ge.s32.totalorder %v3266, 536870912
        %vm3299 = vcmp.ge.s32.totalorder %v3267, 536870912
        %vm3300 = vcmp.ge.s32.totalorder %v3268, 536870912
        %vm3301 = vcmp.ge.s32.totalorder %v3269, 536870912
        %vm3302 = vcmp.ge.s32.totalorder %v3270, 536870912
        %vm3303 = vcmp.ge.s32.totalorder %v3271, 536870912
        %vm3304 = vcmp.gt.f32.partialorder %v2824, 0.0
        %vm3305 = vcmp.gt.f32.partialorder %v2827, 0.0
        %vm3306 = vcmp.gt.f32.partialorder %v2832, 0.0
        %vm3307 = vcmp.gt.f32.partialorder %v2835, 0.0
        %vm3308 = vcmp.gt.f32.partialorder %v2840, 0.0
        %vm3309 = vcmp.gt.f32.partialorder %v2843, 0.0
        %vm3310 = vcmp.gt.f32.partialorder %v2848, 0.0
        %vm3311 = vcmp.gt.f32.partialorder %v2851, 0.0
        %vm3312 = vcmp.gt.f32.partialorder %v2856, 0.0
        %vm3313 = vcmp.gt.f32.partialorder %v2859, 0.0
        %vm3314 = vcmp.gt.f32.partialorder %v2864, 0.0
        %vm3315 = vcmp.gt.f32.partialorder %v2867, 0.0
        %vm3316 = vcmp.gt.f32.partialorder %v2872, 0.0
        %vm3317 = vcmp.gt.f32.partialorder %v2875, 0.0
        %vm3318 = vcmp.gt.f32.partialorder %v2880, 0.0
        %vm3319 = vcmp.gt.f32.partialorder %v2883, 0.0
        %vm3320 = vcmp.gt.f32.partialorder %v2888, 0.0
        %vm3321 = vcmp.gt.f32.partialorder %v2891, 0.0
        %vm3322 = vcmp.gt.f32.partialorder %v2896, 0.0
        %vm3323 = vcmp.gt.f32.partialorder %v2899, 0.0
        %vm3324 = vcmp.gt.f32.partialorder %v2904, 0.0
        %vm3325 = vcmp.gt.f32.partialorder %v2907, 0.0
        %vm3326 = vcmp.gt.f32.partialorder %v2912, 0.0
        %vm3327 = vcmp.gt.f32.partialorder %v2915, 0.0
        %vm3328 = vcmp.gt.f32.partialorder %v2920, 0.0
        %vm3329 = vcmp.gt.f32.partialorder %v2923, 0.0
        %vm3330 = vcmp.gt.f32.partialorder %v2928, 0.0
        %vm3331 = vcmp.gt.f32.partialorder %v2931, 0.0
        %vm3332 = vcmp.gt.f32.partialorder %v2936, 0.0
        %vm3333 = vcmp.gt.f32.partialorder %v2939, 0.0
        %vm3334 = vcmp.gt.f32.partialorder %v2944, 0.0
        %vm3335 = vcmp.gt.f32.partialorder %v2947, 0.0
        %vm3336 = vmand %vm3272, %vm3304
        %vm3337 = vmand %vm3273, %vm3305
        %vm3338 = vmand %vm3274, %vm3306
        %vm3339 = vmand %vm3275, %vm3307
        %vm3340 = vmand %vm3276, %vm3308
        %vm3341 = vmand %vm3277, %vm3309
        %vm3342 = vmand %vm3278, %vm3310
        %vm3343 = vmand %vm3279, %vm3311
        %vm3344 = vmand %vm3280, %vm3312
        %vm3345 = vmand %vm3281, %vm3313
        %vm3346 = vmand %vm3282, %vm3314
        %vm3347 = vmand %vm3283, %vm3315
        %vm3348 = vmand %vm3284, %vm3316
        %vm3349 = vmand %vm3285, %vm3317
        %vm3350 = vmand %vm3286, %vm3318
        %vm3351 = vmand %vm3287, %vm3319
        %vm3352 = vmand %vm3288, %vm3320
        %vm3353 = vmand %vm3289, %vm3321
        %vm3354 = vmand %vm3290, %vm3322
        %vm3355 = vmand %vm3291, %vm3323
        %vm3356 = vmand %vm3292, %vm3324
        %vm3357 = vmand %vm3293, %vm3325
        %vm3358 = vmand %vm3294, %vm3326
        %vm3359 = vmand %vm3295, %vm3327
        %vm3360 = vmand %vm3296, %vm3328
        %vm3361 = vmand %vm3297, %vm3329
        %vm3362 = vmand %vm3298, %vm3330
        %vm3363 = vmand %vm3299, %vm3331
        %vm3364 = vmand %vm3300, %vm3332
        %vm3365 = vmand %vm3301, %vm3333
        %vm3366 = vmand %vm3302, %vm3334
        %vm3367 = vmand %vm3303, %vm3335
        %v3368 = vmul.f32 %v2824, 1.3333334
        %v3369 = vmul.f32 %v2827, 1.3333334
        %v3370 = vmul.f32 %v2832, 1.3333334
        %v3371 = vmul.f32 %v2835, 1.3333334
        %v3372 = vmul.f32 %v2840, 1.3333334
        %v3373 = vmul.f32 %v2843, 1.3333334
        %v3374 = vmul.f32 %v2848, 1.3333334
        %v3375 = vmul.f32 %v2851, 1.3333334
        %v3376 = vmul.f32 %v2856, 1.3333334
        %v3377 = vmul.f32 %v2859, 1.3333334
        %v3378 = vmul.f32 %v2864, 1.3333334
        %v3379 = vmul.f32 %v2867, 1.3333334
        %v3380 = vmul.f32 %v2872, 1.3333334
        %v3381 = vmul.f32 %v2875, 1.3333334
        %v3382 = vmul.f32 %v2880, 1.3333334
        %v3383 = vmul.f32 %v2883, 1.3333334
        %v3384 = vmul.f32 %v2888, 1.3333334
        %v3385 = vmul.f32 %v2891, 1.3333334
        %v3386 = vmul.f32 %v2896, 1.3333334
        %v3387 = vmul.f32 %v2899, 1.3333334
        %v3388 = vmul.f32 %v2904, 1.3333334
        %v3389 = vmul.f32 %v2907, 1.3333334
        %v3390 = vmul.f32 %v2912, 1.3333334
        %v3391 = vmul.f32 %v2915, 1.3333334
        %v3392 = vmul.f32 %v2920, 1.3333334
        %v3393 = vmul.f32 %v2923, 1.3333334
        %v3394 = vmul.f32 %v2928, 1.3333334
        %v3395 = vmul.f32 %v2931, 1.3333334
        %v3396 = vmul.f32 %v2936, 1.3333334
        %v3397 = vmul.f32 %v2939, 1.3333334
        %v3398 = vmul.f32 %v2944, 1.3333334
        %v3399 = vmul.f32 %v2947, 1.3333334
        %v3400 = vsel %vm3336, %v3368, 0.0
        %v3401 = vsel %vm3337, %v3369, 0.0
        %v3402 = vsel %vm3338, %v3370, 0.0
        %v3403 = vsel %vm3339, %v3371, 0.0
        %v3404 = vsel %vm3340, %v3372, 0.0
        %v3405 = vsel %vm3341, %v3373, 0.0
        %v3406 = vsel %vm3342, %v3374, 0.0
        %v3407 = vsel %vm3343, %v3375, 0.0
        %v3408 = vsel %vm3344, %v3376, 0.0
        %v3409 = vsel %vm3345, %v3377, 0.0
        %v3410 = vsel %vm3346, %v3378, 0.0
        %v3411 = vsel %vm3347, %v3379, 0.0
        %v3412 = vsel %vm3348, %v3380, 0.0
        %v3413 = vsel %vm3349, %v3381, 0.0
        %v3414 = vsel %vm3350, %v3382, 0.0
        %v3415 = vsel %vm3351, %v3383, 0.0
        %v3416 = vsel %vm3352, %v3384, 0.0
        %v3417 = vsel %vm3353, %v3385, 0.0
        %v3418 = vsel %vm3354, %v3386, 0.0
        %v3419 = vsel %vm3355, %v3387, 0.0
        %v3420 = vsel %vm3356, %v3388, 0.0
        %v3421 = vsel %vm3357, %v3389, 0.0
        %v3422 = vsel %vm3358, %v3390, 0.0
        %v3423 = vsel %vm3359, %v3391, 0.0
        %v3424 = vsel %vm3360, %v3392, 0.0
        %v3425 = vsel %vm3361, %v3393, 0.0
        %v3426 = vsel %vm3362, %v3394, 0.0
        %v3427 = vsel %vm3363, %v3395, 0.0
        %v3428 = vsel %vm3364, %v3396, 0.0
        %v3429 = vsel %vm3365, %v3397, 0.0
        %v3430 = vsel %vm3366, %v3398, 0.0
        %v3431 = vsel %vm3367, %v3399, 0.0
        %v3432 = vpack.c.bf16 %v3401, %v3400
        %v3433 = vpack.c.bf16 %v3403, %v3402
        %v3434 = vpack.c.bf16 %v3405, %v3404
        %v3435 = vpack.c.bf16 %v3407, %v3406
        %v3436 = vpack.c.bf16 %v3409, %v3408
        %v3437 = vpack.c.bf16 %v3411, %v3410
        %v3438 = vpack.c.bf16 %v3413, %v3412
        %v3439 = vpack.c.bf16 %v3415, %v3414
        %v3440 = vpack.c.bf16 %v3417, %v3416
        %v3441 = vpack.c.bf16 %v3419, %v3418
        %v3442 = vpack.c.bf16 %v3421, %v3420
        %v3443 = vpack.c.bf16 %v3423, %v3422
        %v3444 = vpack.c.bf16 %v3425, %v3424
        %v3445 = vpack.c.bf16 %v3427, %v3426
        %v3446 = vpack.c.bf16 %v3429, %v3428
        %v3447 = vpack.c.bf16 %v3431, %v3430
        %v3448 = vld [vmem:[%s5] sm:$0xf]
        %v3449 = vld [vmem:[%s5 + $0x4] sm:$0xf]
        %v3450 = vld [vmem:[%s5 + $0x8] sm:$0xf]
        %v3451 = vld [vmem:[%s5 + $0xc] sm:$0xf]
        %v3452 = vld [vmem:[%s5 + $0x10] sm:$0xf]
        %v3453 = vld [vmem:[%s5 + $0x14] sm:$0xf]
        %v3454 = vld [vmem:[%s5 + $0x18] sm:$0xf]
        %v3455 = vld [vmem:[%s5 + $0x1c] sm:$0xf]
        %v3456 = vld [vmem:[%s6] sm:$0x1]
        %v3458 = vlaneseq
        %v3459 = vshrl.u32 %v3458, 7
        %v3460 = vsub.s32 0, %v3459
        %v3461 = vrot.slane %v3456, %v3460
        %v3471 = vunpack.c.l.b16 %v3448
        %v3472 = vunpack.c.l.b16 %v3449
        %v3473 = vunpack.c.l.b16 %v3450
        %v3474 = vunpack.c.l.b16 %v3451
        %v3475 = vunpack.c.l.b16 %v3452
        %v3476 = vunpack.c.l.b16 %v3453
        %v3477 = vunpack.c.l.b16 %v3454
        %v3478 = vunpack.c.l.b16 %v3455
        %v3479 = vpack.c.b16 %v3472, %v3471
        %v3480 = vpack.c.b16 %v3474, %v3473
        %v3481 = vpack.c.b16 %v3476, %v3475
        %v3482 = vpack.c.b16 %v3478, %v3477
        %vm3487 = vcmask 523264
        %v3489 = vsel %vm3487, %v3432, 0
        %v3492 = vsel %vm3487, %v3433, 0
        %v3495 = vsel %vm3487, %v3434, 0
        %v3498 = vsel %vm3487, %v3435, 0
        %v3501 = vsel %vm3487, %v3436, 0
        %v3504 = vsel %vm3487, %v3437, 0
        %v3507 = vsel %vm3487, %v3438, 0
        %v3510 = vsel %vm3487, %v3439, 0
        %v3513 = vsel %vm3487, %v3440, 0
        %v3516 = vsel %vm3487, %v3441, 0
        %v3519 = vsel %vm3487, %v3442, 0
        %v3522 = vsel %vm3487, %v3443, 0
        %v3525 = vsel %vm3487, %v3444, 0
        %v3528 = vsel %vm3487, %v3445, 0
        %v3531 = vsel %vm3487, %v3446, 0
        %v3534 = vsel %vm3487, %v3447, 0
        %3536 = vmatprep.subr.bf16.mxu0 0
        %3537 = vmatpush1.bf16.msra.mxu0 0
        %3538 = vmatprep.subr.bf16.mxu0 0
        %3539 = vmatpush1.bf16.msra.mxu0 0
        %3540 = vmatprep.subr.bf16.mxu0 0
        %3541 = vmatpush1.bf16.msra.mxu0 0
        %3542 = vmatprep.subr.bf16.mxu0 0
        %3543 = vmatpush1.bf16.msra.mxu0 0
        %3544 = vmatprep.subr.bf16.mxu0 0
        %3545 = vmatpush1.bf16.msra.mxu0 %v3482
        %3546 = vmatprep.subr.bf16.mxu0 0
        %3547 = vmatpush1.bf16.msra.mxu0 %v3481
        %3548 = vmatprep.subr.bf16.mxu0 0
        %3549 = vmatpush1.bf16.msra.mxu0 %v3480
        %3550 = vmatprep.subr.bf16.mxu0 0
        %3551 = vmatpush1.bf16.msra.mxu0 %v3479
        %3552 = vmatprep.subr.bf16.mxu0 0
        %3553 = vmatpush2.bf16.msra.mxu0 0
        %3554 = vmatprep.subr.bf16.mxu0 0
        %3555 = vmatpush2.bf16.msra.mxu0 0
        %3556 = vmatprep.subr.bf16.mxu0 0
        %3557 = vmatpush2.bf16.msra.mxu0 0
        %3558 = vmatprep.subr.bf16.mxu0 0
        %3559 = vmatpush2.bf16.msra.mxu0 0
        %3560 = vmatprep.subr.bf16.mxu0 0
        %3561 = vmatpush2.bf16.msra.mxu0 0
        %3562 = vmatprep.subr.bf16.mxu0 0
        %3563 = vmatpush2.bf16.msra.mxu0 0
        %3564 = vmatprep.subr.bf16.mxu0 0
        %3565 = vmatpush2.bf16.msra.mxu0 0
        %3566 = vmatprep.subr.bf16.mxu0 0
        %3567 = vmatpush2.bf16.msra.mxu0 0
        %3568 = vmatprep.mubr.bf16.mxu0 0
        %3569 = vmatmul.mubr.bf16.gmra.mxu0 %v3489
        %v3570 = vpop.f32.mrf.mxu0
        %v3571 = vadd.f32 %v3461, %v3570
        %v3572 = vpop.f32.mrf.mxu0
        %v3573 = vpop.f32.mrf.mxu0
        %v3574 = vadd.f32 %v3461, %v3573
        %v3575 = vpop.f32.mrf.mxu0
        %3576 = vmatprep.mubr.bf16.mxu0 0
        %3577 = vmatmul.mubr.bf16.gmra.mxu0 %v3492
        %v3578 = vpop.f32.mrf.mxu0
        %v3579 = vadd.f32 %v3461, %v3578
        %v3580 = vpop.f32.mrf.mxu0
        %v3581 = vpop.f32.mrf.mxu0
        %v3582 = vadd.f32 %v3461, %v3581
        %v3583 = vpop.f32.mrf.mxu0
        %3584 = vmatprep.mubr.bf16.mxu0 0
        %3585 = vmatmul.mubr.bf16.gmra.mxu0 %v3495
        %v3586 = vpop.f32.mrf.mxu0
        %v3587 = vadd.f32 %v3461, %v3586
        %v3588 = vpop.f32.mrf.mxu0
        %v3589 = vpop.f32.mrf.mxu0
        %v3590 = vadd.f32 %v3461, %v3589
        %v3591 = vpop.f32.mrf.mxu0
        %3592 = vmatprep.mubr.bf16.mxu0 0
        %3593 = vmatmul.mubr.bf16.gmra.mxu0 %v3498
        %v3594 = vpop.f32.mrf.mxu0
        %v3595 = vadd.f32 %v3461, %v3594
        %v3596 = vpop.f32.mrf.mxu0
        %v3597 = vpop.f32.mrf.mxu0
        %v3598 = vadd.f32 %v3461, %v3597
        %v3599 = vpop.f32.mrf.mxu0
        %3600 = vmatprep.mubr.bf16.mxu0 0
        %3601 = vmatmul.mubr.bf16.gmra.mxu0 %v3501
        %v3602 = vpop.f32.mrf.mxu0
        %v3603 = vadd.f32 %v3461, %v3602
        %v3604 = vpop.f32.mrf.mxu0
        %v3605 = vpop.f32.mrf.mxu0
        %v3606 = vadd.f32 %v3461, %v3605
        %v3607 = vpop.f32.mrf.mxu0
        %3608 = vmatprep.mubr.bf16.mxu0 0
        %3609 = vmatmul.mubr.bf16.gmra.mxu0 %v3504
        %v3610 = vpop.f32.mrf.mxu0
        %v3611 = vadd.f32 %v3461, %v3610
        %v3612 = vpop.f32.mrf.mxu0
        %v3613 = vpop.f32.mrf.mxu0
        %v3614 = vadd.f32 %v3461, %v3613
        %v3615 = vpop.f32.mrf.mxu0
        %3616 = vmatprep.mubr.bf16.mxu0 0
        %3617 = vmatmul.mubr.bf16.gmra.mxu0 %v3507
        %v3618 = vpop.f32.mrf.mxu0
        %v3619 = vadd.f32 %v3461, %v3618
        %v3620 = vpop.f32.mrf.mxu0
        %v3621 = vpop.f32.mrf.mxu0
        %v3622 = vadd.f32 %v3461, %v3621
        %v3623 = vpop.f32.mrf.mxu0
        %3624 = vmatprep.mubr.bf16.mxu0 0
        %3625 = vmatmul.mubr.bf16.gmra.mxu0 %v3510
        %v3626 = vpop.f32.mrf.mxu0
        %v3627 = vadd.f32 %v3461, %v3626
        %v3628 = vpop.f32.mrf.mxu0
        %v3629 = vpop.f32.mrf.mxu0
        %v3630 = vadd.f32 %v3461, %v3629
        %v3631 = vpop.f32.mrf.mxu0
        %3632 = vmatprep.mubr.bf16.mxu0 0
        %3633 = vmatmul.mubr.bf16.gmra.mxu0 %v3513
        %v3634 = vpop.f32.mrf.mxu0
        %v3635 = vadd.f32 %v3461, %v3634
        %v3636 = vpop.f32.mrf.mxu0
        %v3637 = vpop.f32.mrf.mxu0
        %v3638 = vadd.f32 %v3461, %v3637
        %v3639 = vpop.f32.mrf.mxu0
        %3640 = vmatprep.mubr.bf16.mxu0 0
        %3641 = vmatmul.mubr.bf16.gmra.mxu0 %v3516
        %v3642 = vpop.f32.mrf.mxu0
        %v3643 = vadd.f32 %v3461, %v3642
        %v3644 = vpop.f32.mrf.mxu0
        %v3645 = vpop.f32.mrf.mxu0
        %v3646 = vadd.f32 %v3461, %v3645
        %v3647 = vpop.f32.mrf.mxu0
        %3648 = vmatprep.mubr.bf16.mxu0 0
        %3649 = vmatmul.mubr.bf16.gmra.mxu0 %v3519
        %v3650 = vpop.f32.mrf.mxu0
        %v3651 = vadd.f32 %v3461, %v3650
        %v3652 = vpop.f32.mrf.mxu0
        %v3653 = vpop.f32.mrf.mxu0
        %v3654 = vadd.f32 %v3461, %v3653
        %v3655 = vpop.f32.mrf.mxu0
        %3656 = vmatprep.mubr.bf16.mxu0 0
        %3657 = vmatmul.mubr.bf16.gmra.mxu0 %v3522
        %v3658 = vpop.f32.mrf.mxu0
        %v3659 = vadd.f32 %v3461, %v3658
        %v3660 = vpop.f32.mrf.mxu0
        %v3661 = vpop.f32.mrf.mxu0
        %v3662 = vadd.f32 %v3461, %v3661
        %v3663 = vpop.f32.mrf.mxu0
        %3664 = vmatprep.mubr.bf16.mxu0 0
        %3665 = vmatmul.mubr.bf16.gmra.mxu0 %v3525
        %v3666 = vpop.f32.mrf.mxu0
        %v3667 = vadd.f32 %v3461, %v3666
        %v3668 = vpop.f32.mrf.mxu0
        %v3669 = vpop.f32.mrf.mxu0
        %v3670 = vadd.f32 %v3461, %v3669
        %v3671 = vpop.f32.mrf.mxu0
        %3672 = vmatprep.mubr.bf16.mxu0 0
        %3673 = vmatmul.mubr.bf16.gmra.mxu0 %v3528
        %v3674 = vpop.f32.mrf.mxu0
        %v3675 = vadd.f32 %v3461, %v3674
        %v3676 = vpop.f32.mrf.mxu0
        %v3677 = vpop.f32.mrf.mxu0
        %v3678 = vadd.f32 %v3461, %v3677
        %v3679 = vpop.f32.mrf.mxu0
        %3680 = vmatprep.mubr.bf16.mxu0 0
        %3681 = vmatmul.mubr.bf16.gmra.mxu0 %v3531
        %v3682 = vpop.f32.mrf.mxu0
        %v3683 = vadd.f32 %v3461, %v3682
        %v3684 = vpop.f32.mrf.mxu0
        %v3685 = vpop.f32.mrf.mxu0
        %v3686 = vadd.f32 %v3461, %v3685
        %v3687 = vpop.f32.mrf.mxu0
        %3688 = vmatprep.mubr.bf16.mxu0 0
        %3689 = vmatmul.mubr.bf16.gmra.mxu0 %v3534
        %v3690 = vpop.f32.mrf.mxu0
        %v3691 = vadd.f32 %v3461, %v3690
        %v3692 = vpop.f32.mrf.mxu0
        %v3693 = vpop.f32.mrf.mxu0
        %v3694 = vadd.f32 %v3461, %v3693
        %v3695 = vpop.f32.mrf.mxu0
        %3696 = vdwg.mxu0
        %3697 = vst [vmem:[%s312] sm:$0xff] %v3571
        %3698 = vst [vmem:[%s312 + $0x8] sm:$0xff] %v3574
        %3699 = vst [vmem:[%s312 + $0x10] sm:$0xff] %v3579
        %3700 = vst [vmem:[%s312 + $0x18] sm:$0xff] %v3582
        %3701 = vst [vmem:[%s312 + $0x20] sm:$0xff] %v3587
        %3702 = vst [vmem:[%s312 + $0x28] sm:$0xff] %v3590
        %3703 = vst [vmem:[%s312 + $0x30] sm:$0xff] %v3595
        %3704 = vst [vmem:[%s312 + $0x38] sm:$0xff] %v3598
        %3705 = vst [vmem:[%s312 + $0x40] sm:$0xff] %v3603
        %3706 = vst [vmem:[%s312 + $0x48] sm:$0xff] %v3606
        %3707 = vst [vmem:[%s312 + $0x50] sm:$0xff] %v3611
        %3708 = vst [vmem:[%s312 + $0x58] sm:$0xff] %v3614
        %3709 = vst [vmem:[%s312 + $0x60] sm:$0xff] %v3619
        %3710 = vst [vmem:[%s312 + $0x68] sm:$0xff] %v3622
        %3711 = vst [vmem:[%s312 + $0x70] sm:$0xff] %v3627
        %3712 = vst [vmem:[%s312 + $0x78] sm:$0xff] %v3630
        %3713 = vst [vmem:[%s312 + $0x80] sm:$0xff] %v3635
        %3714 = vst [vmem:[%s312 + $0x88] sm:$0xff] %v3638
        %3715 = vst [vmem:[%s312 + $0x90] sm:$0xff] %v3643
        %3716 = vst [vmem:[%s312 + $0x98] sm:$0xff] %v3646
        %3717 = vst [vmem:[%s312 + $0xa0] sm:$0xff] %v3651
        %3718 = vst [vmem:[%s312 + $0xa8] sm:$0xff] %v3654
        %3719 = vst [vmem:[%s312 + $0xb0] sm:$0xff] %v3659
        %3720 = vst [vmem:[%s312 + $0xb8] sm:$0xff] %v3662
        %3721 = vst [vmem:[%s312 + $0xc0] sm:$0xff] %v3667
        %3722 = vst [vmem:[%s312 + $0xc8] sm:$0xff] %v3670
        %3723 = vst [vmem:[%s312 + $0xd0] sm:$0xff] %v3675
        %3724 = vst [vmem:[%s312 + $0xd8] sm:$0xff] %v3678
        %3725 = vst [vmem:[%s312 + $0xe0] sm:$0xff] %v3683
        %3726 = vst [vmem:[%s312 + $0xe8] sm:$0xff] %v3686
        %3727 = vst [vmem:[%s312 + $0xf0] sm:$0xff] %v3691
        %3728 = vst [vmem:[%s312 + $0xf8] sm:$0xff] %v3694
        %s3729 = sand.u32 %s185, 1
        %s3730 = scalar_lea.sflag [#allocation4], %s3729
        %s3731 = sand.u32 %s185, 1
        %s3732 = smul.addr %s3731, 256
        %s3733 = scalar_lea.vmem [#allocation7], %s3732
        // Predicated region
        $region57: #{tpu_custom_call.1} parent=47 // pred_check
          %p3734 = pneg %p195
        $region58: #{tpu_custom_call.1} parent=47 // pred_check_branch
          %3736 = sbr.rel (%p3734) target = $region60
        $region59: #{tpu_custom_call.1} parent=47 // pred_region
          %s3737 = smul.u32 32, %s25
          %s3739 = ssub.s32 4096, 4096
          %3740 = vsyncadd %s3730, %s3739
          %s3741 = smul.addr %s3737, 128
          %s3742 = scalar_lea.hbm %s7, %s3741
          %s3743 = sshll.u32 %s3733, 4
          %s3744 = int_to_ptr.vmem [resolvable:$true] %s3743
          %3749 = dma.vmem_to_hbm [thread:$0]  %s3744, 4096, %s3742, %s3730, 128, 128, 8
        $region60: #{tpu_custom_call.1} parent=47 // pred_fallthru
          _
      $region48: #{tpu_custom_call.1} parent=5 // pred_fallthru
        _
      %p3750 = scmp.le.s32.totalorder 2, %s20
      // Predicated region
      $region61: #{tpu_custom_call.1} parent=5 // pred_check
        %p3751 = pneg %p3750
      $region62: #{tpu_custom_call.1} parent=5 // pred_check_branch
        %3753 = sbr.rel (%p3751) target = $region64
      $region63: #{tpu_custom_call.1} parent=5 // pred_region
        %s3754 = ssub.s32 %s20, 2
        // Predicated region
        $region65: #{tpu_custom_call.1} parent=63 // pred_check
          %p3755 = pneg %p201
        $region66: #{tpu_custom_call.1} parent=63 // pred_check_branch
          %3757 = sbr.rel (%p3755) target = $region68
        $region67: #{tpu_custom_call.1} parent=63 // pred_region
          %s3758 = sand.u32 %s186, 1
          %s3759 = scalar_lea.sflag [#allocation4], %s3758
          %s3760 = sand.u32 %s186, 1
          %s3761 = smul.addr %s3760, 256
          %s3762 = scalar_lea.vmem [#allocation7], %s3761
          %3763 = dma.done %s3759, 4096
        $region68: #{tpu_custom_call.1} parent=63 // pred_fallthru
          _
      $region64: #{tpu_custom_call.1} parent=5 // pred_fallthru
        _
    $region6: #{tpu_custom_call.1} parent=1 // loop_footer
      %s24 = sadd.s32 1, %s20
    $region7: #{tpu_custom_call.1} parent=1 // loop_footer_branch
      %19 = sbr.rel target = $region3
    $region8: #{tpu_custom_call.1} parent=1 // loop_exit
      _
    %3764 = vsyncpa [#allocation3], 1
    %s3765 = scalar_lea.sflag [#allocation3], 1
    %3766 = vsyncpa %s3765, 1
    %3767 = vsyncpa [#allocation6], 1
    %3768 = vsyncpa [#allocation4], 1
    %s3769 = scalar_lea.sflag [#allocation4], 1
    %3770 = vsyncpa %s3769, 1

</llo_original>
